<compile_context>
chip_gen: v5e
topology: v5e:2x2
jax: 0.10.0
libtpu: 0.0.40
codegen_flags: <defaults>
</compile_context>

<pallas_src>
import jax
import jax.numpy as jnp
from jax.experimental import pallas as pl
from jax.experimental.pallas import tpu as pltpu


def _round_up(x, m):
    return (x + m - 1) // m * m


# ----------------------------------------------------------------------------
# Pallas kernels
# ----------------------------------------------------------------------------
def _conv_bn_relu_kernel(p_ref, w_ref, scale_ref, shift_ref, o_ref, acc_ref):
    # p_ref:     (bm, bk)  bf16 im2col patch tile
    # w_ref:     (bk, bn)  bf16 weight tile
    # scale_ref: (1, bn)   f32 folded BN scale  = gamma / sqrt(var + eps)
    # shift_ref: (1, bn)   f32 folded BN shift  = beta - mean * scale
    # o_ref:     (bm, bn)  f32 output tile
    # acc_ref:   (bm, bn)  f32 VMEM accumulator (lives across the K grid axis)
    k = pl.program_id(2)

    @pl.when(k == 0)
    def _():
        acc_ref[...] = jnp.zeros_like(acc_ref)

    acc_ref[...] += jnp.dot(p_ref[...], w_ref[...],
                            preferred_element_type=jnp.float32)

    @pl.when(k == pl.num_programs(2) - 1)
    def _():
        y = acc_ref[...] * scale_ref[...] + shift_ref[...]
        o_ref[...] = jnp.maximum(y, 0.0).astype(o_ref.dtype)


def _maxpool_kernel(p_ref, o_ref):
    # p_ref: (T, br, 128) pooling taps (lane-dense), o_ref: (br, 128)
    acc = p_ref[0]
    for t in range(1, p_ref.shape[0]):  # static, T = 9
        acc = jnp.maximum(acc, p_ref[t])
    o_ref[...] = acc


# ----------------------------------------------------------------------------
# pallas_call wrappers (tiled, pipelined)
# ----------------------------------------------------------------------------
def _conv_bn_relu_call(patches, w_mat, scale, shift, *, bm, bn, bk):
    M_pad, K_pad = patches.shape
    Cout_pad = w_mat.shape[1]
    grid = (M_pad // bm, Cout_pad // bn, K_pad // bk)
    return pl.pallas_call(
        _conv_bn_relu_kernel,
        out_shape=jax.ShapeDtypeStruct((M_pad, Cout_pad), jnp.float32),
        grid_spec=pltpu.PrefetchScalarGridSpec(
            num_scalar_prefetch=0,
            grid=grid,
            in_specs=[
                pl.BlockSpec((bm, bk), lambda i, j, k: (i, k)),
                pl.BlockSpec((bk, bn), lambda i, j, k: (k, j)),
                pl.BlockSpec((1, bn), lambda i, j, k: (0, j)),
                pl.BlockSpec((1, bn), lambda i, j, k: (0, j)),
            ],
            out_specs=pl.BlockSpec((bm, bn), lambda i, j, k: (i, j)),
            scratch_shapes=[pltpu.VMEM((bm, bn), jnp.float32)],
        ),
        compiler_params=pltpu.CompilerParams(
            dimension_semantics=("parallel", "parallel", "arbitrary")),
    )(patches, w_mat, scale, shift)


# ----------------------------------------------------------------------------
# Glue: im2col patch extraction (pure JAX slicing, no compute)
# ----------------------------------------------------------------------------
def _extract_patches(x_nhwc, kh, kw, stride, padding):
    """Returns (M, KH*KW*Cin) patches with K index = (i*KW + j)*Cin + c."""
    if padding:
        x_nhwc = jnp.pad(
            x_nhwc, ((0, 0), (padding, padding), (padding, padding), (0, 0)))
    N, H, W, C = x_nhwc.shape
    Ho = (H - kh) // stride + 1
    Wo = (W - kw) // stride + 1
    taps = []
    for i in range(kh):
        for j in range(kw):
            taps.append(
                x_nhwc[:, i:i + stride * (Ho - 1) + 1:stride,
                       j:j + stride * (Wo - 1) + 1:stride, :])
    p = jnp.concatenate(taps, axis=-1)  # (N, Ho, Wo, KH*KW*C)
    return p.reshape(N * Ho * Wo, kh * kw * C), (N, Ho, Wo)


def _extract_pool_taps(x_nhwc, k, stride):
    """Returns (T, M, C) pooling taps (no padding, matches F.max_pool2d)."""
    N, H, W, C = x_nhwc.shape
    Ho = (H - k) // stride + 1
    Wo = (W - k) // stride + 1
    taps = []
    for i in range(k):
        for j in range(k):
            taps.append(
                x_nhwc[:, i:i + stride * (Ho - 1) + 1:stride,
                       j:j + stride * (Wo - 1) + 1:stride, :]
                .reshape(N * Ho * Wo, C))
    return jnp.stack(taps, axis=0), (N, Ho, Wo)


# ----------------------------------------------------------------------------
# BasicConv2d and maxpool branch
# ----------------------------------------------------------------------------
def basic_conv2d(x_nhwc, params, *, kernel_size, stride=1, padding=0,
                 bm=128, bn=128, bk_max=512):
    """conv(bias=False) + BatchNorm2d(eps=1e-3, inference) + ReLU, NHWC."""
    w, gamma, beta, rmean, rvar = params
    cout, cin = int(w.shape[0]), int(w.shape[1])
    kh = kw = kernel_size
    K = kh * kw * cin
    eps = 1e-3
    scale_v = gamma / jnp.sqrt(rvar + eps)
    shift_v = beta - rmean * scale_v

    patches, (N, Ho, Wo) = _extract_patches(x_nhwc, kh, kw, stride, padding)
    M = N * Ho * Wo

    # Tile geometry: pad M / Cout / K so every block is (8,128)-aligned.
    if K <= bk_max:
        bk = _round_up(K, 128)
        K_pad = bk
    else:
        bk = bk_max
        K_pad = _round_up(K, bk)
    M_pad = _round_up(M, bm)
    Cout_pad = _round_up(cout, bn)

    patches = jnp.pad(patches, ((0, M_pad - M), (0, K_pad - K)))
    patches = patches.astype(jnp.bfloat16)

    # PyTorch conv weight (Cout, Cin, KH, KW) -> (KH*KW*Cin, Cout)
    w_mat = jnp.transpose(w, (2, 3, 1, 0)).reshape(K, cout)
    w_mat = jnp.pad(w_mat, ((0, K_pad - K), (0, Cout_pad - cout)))
    w_mat = w_mat.astype(jnp.bfloat16)

    scale = jnp.pad(scale_v, (0, Cout_pad - cout)).reshape(1, Cout_pad)
    shift = jnp.pad(shift_v, (0, Cout_pad - cout)).reshape(1, Cout_pad)

    out = _conv_bn_relu_call(patches, w_mat, scale, shift, bm=bm, bn=bn, bk=bk)
    return out[:M, :cout].reshape(N, Ho, Wo, cout)


def max_pool2d_3x3_s2(x_nhwc):
    taps, (N, Ho, Wo) = _extract_pool_taps(x_nhwc, 3, 2)
    T, M, C = taps.shape
    L = M * C
    lane = 128
    # Lane-dense layout: max over taps is elementwise, so flatten (M, C) and
    # re-chunk into rows of 128 lanes regardless of C.
    R = _round_up(-(-L // lane), 8)
    br = min(256, R)
    R_pad = _round_up(R, br)
    L_pad = R_pad * lane
    flat = jnp.pad(taps.reshape(T, L), ((0, 0), (0, L_pad - L)))
    flat = flat.reshape(T, R_pad, lane)

    out = pl.pallas_call(
        _maxpool_kernel,
        out_shape=jax.ShapeDtypeStruct((R_pad, lane), x_nhwc.dtype),
        grid_spec=pltpu.PrefetchScalarGridSpec(
            num_scalar_prefetch=0,
            grid=(R_pad // br,),
            in_specs=[pl.BlockSpec((T, br, lane), lambda r: (0, r, 0))],
            out_specs=pl.BlockSpec((br, lane), lambda r: (r, 0)),
        ),
        compiler_params=pltpu.CompilerParams(
            dimension_semantics=("parallel",)),
    )(flat)
    return out.reshape(L_pad)[:L].reshape(N, Ho, Wo, C)


# ----------------------------------------------------------------------------
# Parameter initialization (deterministic, synthetic)
# ----------------------------------------------------------------------------
def _init_basic_conv(key, in_channels, out_channels, kernel_size):
    kw_, kg_, kb_ = jax.random.split(key, 3)
    w = 0.1 * jax.random.normal(
        kw_, (out_channels, in_channels, kernel_size, kernel_size), jnp.float32)
    gamma = 1.0 + 0.1 * jax.random.normal(kg_, (out_channels,), jnp.float32)
    beta = 0.1 * jax.random.normal(kb_, (out_channels,), jnp.float32)
    rmean = jnp.zeros((out_channels,), jnp.float32)  # PyTorch BN defaults
    rvar = jnp.ones((out_channels,), jnp.float32)
    return (w, gamma, beta, rmean, rvar)


def init_inception_b(key, in_channels):
    k1, k2, k3, k4 = jax.random.split(key, 4)
    return {
        "branch3x3": _init_basic_conv(k1, in_channels, 384, 3),
        "branch3x3dbl_1": _init_basic_conv(k2, in_channels, 64, 1),
        "branch3x3dbl_2": _init_basic_conv(k3, 64, 96, 3),
        "branch3x3dbl_3": _init_basic_conv(k4, 96, 96, 3),
    }


# ----------------------------------------------------------------------------
# InceptionB forward (NCHW in / NCHW out, matching the PyTorch module)
# ----------------------------------------------------------------------------
@jax.jit
def inception_b_forward(x_nchw, params):
    x = jnp.transpose(x_nchw, (0, 2, 3, 1))  # NCHW -> NHWC

    branch3x3 = basic_conv2d(
        x, params["branch3x3"], kernel_size=3, stride=2, padding=0)

    b = basic_conv2d(x, params["branch3x3dbl_1"], kernel_size=1)
    b = basic_conv2d(b, params["branch3x3dbl_2"], kernel_size=3, padding=1)
    branch3x3dbl = basic_conv2d(
        b, params["branch3x3dbl_3"], kernel_size=3, stride=2, padding=0)

    branch_pool = max_pool2d_3x3_s2(x)

    # back to NCHW and concat on channel dim (matches torch.cat(outputs, 1))
    outs = [
        jnp.transpose(branch3x3, (0, 3, 1, 2)),
        jnp.transpose(branch3x3dbl, (0, 3, 1, 2)),
        jnp.transpose(branch_pool, (0, 3, 1, 2)),
    ]
    return jnp.concatenate(outs, axis=1)


if __name__ == "__main__":
    key = jax.random.PRNGKey(0)
    kx, kp = jax.random.split(key)

    N, C, H, W = 2, 4, 16, 16
    x = jax.random.normal(kx, (N, C, H, W), jnp.float32)
    params = init_inception_b(kp, C)

    out = inception_b_forward(x, params)
    out = jax.block_until_ready(out)

    # Expected: spatial (16-3)//2+1 = 7, channels 384 + 96 + 4 = 484
    assert out.shape == (N, 384 + 96 + C, 7, 7), out.shape
    assert bool(jnp.all(jnp.isfinite(out)))
    print("KERNEL_OK")
</pallas_src>

<mosaic_0001>
module attributes {stable_mosaic.version = 11 : i64} {
  func.func @_conv_bn_relu_kernel(%arg0: i32, %arg1: i32, %arg2: i32, %arg3: memref<128x128xbf16, #tpu.memory_space<vmem>>, %arg4: memref<128x128xbf16, #tpu.memory_space<vmem>>, %arg5: memref<1x128xf32, #tpu.memory_space<vmem>>, %arg6: memref<1x128xf32, #tpu.memory_space<vmem>>, %arg7: memref<128x128xf32, #tpu.memory_space<vmem>>, %arg8: memref<128x128xf32, #tpu.memory_space<vmem>>) attributes {dimension_semantics = [#tpu.dimension_semantics<parallel>, #tpu.dimension_semantics<parallel>, #tpu.dimension_semantics<arbitrary>], iteration_bounds = array<i64: 4, 1, 1>, scalar_prefetch = 0 : i64, scratch_operands = 1 : i64, tpu.core_type = #tpu.core_type<tc>, window_params = [{transform_indices = @transform_0, window_bounds = array<i64: 128, 128>}, {transform_indices = @transform_1, window_bounds = array<i64: 128, 128>}, {transform_indices = @transform_2, window_bounds = array<i64: 1, 128>}, {transform_indices = @transform_3, window_bounds = array<i64: 1, 128>}, {transform_indices = @transform_4, window_bounds = array<i64: 128, 128>}]} {
    %c0_i32 = arith.constant 0 : i32
    %0 = arith.cmpi eq, %arg2, %c0_i32 : i32
    %1 = arith.extui %0 : i1 to i32
    %c0_i32_0 = arith.constant 0 : i32
    %2 = arith.cmpi ne, %1, %c0_i32_0 : i32
    scf.if %2 {
      %cst_10 = arith.constant 0.000000e+00 : f32
      %12 = vector.broadcast %cst_10 : f32 to vector<128x128xf32>
      %c0_11 = arith.constant 0 : index
      %c0_12 = arith.constant 0 : index
      %13 = vector.load %arg8[%c0_11, %c0_12] : memref<128x128xf32, #tpu.memory_space<vmem>>, vector<128x128xf32>
      tpu.vector_store %arg8[%c0_11, %c0_12], %12 {strides = array<i32>} : memref<128x128xf32, #tpu.memory_space<vmem>>, vector<128x128xf32>,
    } else {
    }
    %c0 = arith.constant 0 : index
    %c0_1 = arith.constant 0 : index
    %3 = vector.load %arg8[%c0, %c0_1] : memref<128x128xf32, #tpu.memory_space<vmem>>, vector<128x128xf32>
    %c0_2 = arith.constant 0 : index
    %c0_3 = arith.constant 0 : index
    %4 = vector.load %arg3[%c0_2, %c0_3] : memref<128x128xbf16, #tpu.memory_space<vmem>>, vector<128x128xbf16>
    %c0_4 = arith.constant 0 : index
    %c0_5 = arith.constant 0 : index
    %5 = vector.load %arg4[%c0_4, %c0_5] : memref<128x128xbf16, #tpu.memory_space<vmem>>, vector<128x128xbf16>
    %cst = arith.constant dense<0.000000e+00> : vector<128x128xf32>
    %6 = tpu.matmul %4, %5, %cst {dimension_numbers = #tpu.dot_dimension_numbers<[1], [0], [0], [1], [0, 0, 1, 1], [], []>} : vector<128x128xbf16>, vector<128x128xbf16>, vector<128x128xf32> -> vector<128x128xf32>
    %7 = arith.addf %3, %6 : vector<128x128xf32>
    %c0_6 = arith.constant 0 : index
    %c0_7 = arith.constant 0 : index
    %8 = vector.load %arg8[%c0_6, %c0_7] : memref<128x128xf32, #tpu.memory_space<vmem>>, vector<128x128xf32>
    tpu.vector_store %arg8[%c0_6, %c0_7], %7 {strides = array<i32>} : memref<128x128xf32, #tpu.memory_space<vmem>>, vector<128x128xf32>,
    %c0_i32_8 = arith.constant 0 : i32
    %9 = arith.cmpi eq, %arg2, %c0_i32_8 : i32
    %10 = arith.extui %9 : i1 to i32
    %c0_i32_9 = arith.constant 0 : i32
    %11 = arith.cmpi ne, %10, %c0_i32_9 : i32
    scf.if %11 {
      %c0_10 = arith.constant 0 : index
      %c0_11 = arith.constant 0 : index
      %12 = vector.load %arg8[%c0_10, %c0_11] : memref<128x128xf32, #tpu.memory_space<vmem>>, vector<128x128xf32>
      %c0_12 = arith.constant 0 : index
      %c0_13 = arith.constant 0 : index
      %13 = vector.load %arg5[%c0_12, %c0_13] : memref<1x128xf32, #tpu.memory_space<vmem>>, vector<1x128xf32>
      %14 = vector.broadcast %13 : vector<1x128xf32> to vector<128x128xf32>
      %15 = arith.mulf %12, %14 : vector<128x128xf32>
      %c0_14 = arith.constant 0 : index
      %c0_15 = arith.constant 0 : index
      %16 = vector.load %arg6[%c0_14, %c0_15] : memref<1x128xf32, #tpu.memory_space<vmem>>, vector<1x128xf32>
      %17 = vector.broadcast %16 : vector<1x128xf32> to vector<128x128xf32>
      %18 = arith.addf %15, %17 : vector<128x128xf32>
      %cst_16 = arith.constant 0.000000e+00 : f32
      %19 = vector.broadcast %cst_16 : f32 to vector<128x128xf32>
      %20 = arith.maximumf %18, %19 : vector<128x128xf32>
      %c0_17 = arith.constant 0 : index
      %c0_18 = arith.constant 0 : index
      %21 = vector.load %arg7[%c0_17, %c0_18] : memref<128x128xf32, #tpu.memory_space<vmem>>, vector<128x128xf32>
      tpu.vector_store %arg7[%c0_17, %c0_18], %20 {strides = array<i32>} : memref<128x128xf32, #tpu.memory_space<vmem>>, vector<128x128xf32>,
    } else {
    }
    return
  }
  func.func @transform_0(%arg0: i32, %arg1: i32, %arg2: i32) -> (i32, i32) {
    %c0_i32 = arith.constant 0 : i32
    return %arg0, %arg2 : i32, i32
  }
  func.func @transform_1(%arg0: i32, %arg1: i32, %arg2: i32) -> (i32, i32) {
    %c0_i32 = arith.constant 0 : i32
    return %arg2, %arg1 : i32, i32
  }
  func.func @transform_2(%arg0: i32, %arg1: i32, %arg2: i32) -> (i32, i32) {
    %c0_i32 = arith.constant 0 : i32
    %c0_i32_0 = arith.constant 0 : i32
    return %c0_i32, %arg1 : i32, i32
  }
  func.func @transform_3(%arg0: i32, %arg1: i32, %arg2: i32) -> (i32, i32) {
    %c0_i32 = arith.constant 0 : i32
    %c0_i32_0 = arith.constant 0 : i32
    return %c0_i32, %arg1 : i32, i32
  }
  func.func @transform_4(%arg0: i32, %arg1: i32, %arg2: i32) -> (i32, i32) {
    %c0_i32 = arith.constant 0 : i32
    return %arg0, %arg1 : i32, i32
  }
}

module attributes {stable_mosaic.version = 11 : i64} {
  func.func @_conv_bn_relu_kernel(%arg0: i32, %arg1: i32, %arg2: i32, %arg3: memref<128x512xbf16, #tpu.memory_space<vmem>>, %arg4: memref<512x128xbf16, #tpu.memory_space<vmem>>, %arg5: memref<1x128xf32, #tpu.memory_space<vmem>>, %arg6: memref<1x128xf32, #tpu.memory_space<vmem>>, %arg7: memref<128x128xf32, #tpu.memory_space<vmem>>, %arg8: memref<128x128xf32, #tpu.memory_space<vmem>>) attributes {dimension_semantics = [#tpu.dimension_semantics<parallel>, #tpu.dimension_semantics<parallel>, #tpu.dimension_semantics<arbitrary>], iteration_bounds = array<i64: 4, 1, 2>, scalar_prefetch = 0 : i64, scratch_operands = 1 : i64, tpu.core_type = #tpu.core_type<tc>, window_params = [{transform_indices = @transform_0, window_bounds = array<i64: 128, 512>}, {transform_indices = @transform_1, window_bounds = array<i64: 512, 128>}, {transform_indices = @transform_2, window_bounds = array<i64: 1, 128>}, {transform_indices = @transform_3, window_bounds = array<i64: 1, 128>}, {transform_indices = @transform_4, window_bounds = array<i64: 128, 128>}]} {
    %c0_i32 = arith.constant 0 : i32
    %0 = arith.cmpi eq, %arg2, %c0_i32 : i32
    %1 = arith.extui %0 : i1 to i32
    %c0_i32_0 = arith.constant 0 : i32
    %2 = arith.cmpi ne, %1, %c0_i32_0 : i32
    scf.if %2 {
      %cst_9 = arith.constant 0.000000e+00 : f32
      %12 = vector.broadcast %cst_9 : f32 to vector<128x128xf32>
      %c0_10 = arith.constant 0 : index
      %c0_11 = arith.constant 0 : index
      %13 = vector.load %arg8[%c0_10, %c0_11] : memref<128x128xf32, #tpu.memory_space<vmem>>, vector<128x128xf32>
      tpu.vector_store %arg8[%c0_10, %c0_11], %12 {strides = array<i32>} : memref<128x128xf32, #tpu.memory_space<vmem>>, vector<128x128xf32>,
    } else {
    }
    %c0 = arith.constant 0 : index
    %c0_1 = arith.constant 0 : index
    %3 = vector.load %arg8[%c0, %c0_1] : memref<128x128xf32, #tpu.memory_space<vmem>>, vector<128x128xf32>
    %c0_2 = arith.constant 0 : index
    %c0_3 = arith.constant 0 : index
    %4 = vector.load %arg3[%c0_2, %c0_3] : memref<128x512xbf16, #tpu.memory_space<vmem>>, vector<128x512xbf16>
    %c0_4 = arith.constant 0 : index
    %c0_5 = arith.constant 0 : index
    %5 = vector.load %arg4[%c0_4, %c0_5] : memref<512x128xbf16, #tpu.memory_space<vmem>>, vector<512x128xbf16>
    %cst = arith.constant dense<0.000000e+00> : vector<128x128xf32>
    %6 = tpu.matmul %4, %5, %cst {dimension_numbers = #tpu.dot_dimension_numbers<[1], [0], [0], [1], [0, 0, 1, 1], [], []>} : vector<128x512xbf16>, vector<512x128xbf16>, vector<128x128xf32> -> vector<128x128xf32>
    %7 = arith.addf %3, %6 : vector<128x128xf32>
    %c0_6 = arith.constant 0 : index
    %c0_7 = arith.constant 0 : index
    %8 = vector.load %arg8[%c0_6, %c0_7] : memref<128x128xf32, #tpu.memory_space<vmem>>, vector<128x128xf32>
    tpu.vector_store %arg8[%c0_6, %c0_7], %7 {strides = array<i32>} : memref<128x128xf32, #tpu.memory_space<vmem>>, vector<128x128xf32>,
    %c1_i32 = arith.constant 1 : i32
    %9 = arith.cmpi eq, %arg2, %c1_i32 : i32
    %10 = arith.extui %9 : i1 to i32
    %c0_i32_8 = arith.constant 0 : i32
    %11 = arith.cmpi ne, %10, %c0_i32_8 : i32
    scf.if %11 {
      %c0_9 = arith.constant 0 : index
      %c0_10 = arith.constant 0 : index
      %12 = vector.load %arg8[%c0_9, %c0_10] : memref<128x128xf32, #tpu.memory_space<vmem>>, vector<128x128xf32>
      %c0_11 = arith.constant 0 : index
      %c0_12 = arith.constant 0 : index
      %13 = vector.load %arg5[%c0_11, %c0_12] : memref<1x128xf32, #tpu.memory_space<vmem>>, vector<1x128xf32>
      %14 = vector.broadcast %13 : vector<1x128xf32> to vector<128x128xf32>
      %15 = arith.mulf %12, %14 : vector<128x128xf32>
      %c0_13 = arith.constant 0 : index
      %c0_14 = arith.constant 0 : index
      %16 = vector.load %arg6[%c0_13, %c0_14] : memref<1x128xf32, #tpu.memory_space<vmem>>, vector<1x128xf32>
      %17 = vector.broadcast %16 : vector<1x128xf32> to vector<128x128xf32>
      %18 = arith.addf %15, %17 : vector<128x128xf32>
      %cst_15 = arith.constant 0.000000e+00 : f32
      %19 = vector.broadcast %cst_15 : f32 to vector<128x128xf32>
      %20 = arith.maximumf %18, %19 : vector<128x128xf32>
      %c0_16 = arith.constant 0 : index
      %c0_17 = arith.constant 0 : index
      %21 = vector.load %arg7[%c0_16, %c0_17] : memref<128x128xf32, #tpu.memory_space<vmem>>, vector<128x128xf32>
      tpu.vector_store %arg7[%c0_16, %c0_17], %20 {strides = array<i32>} : memref<128x128xf32, #tpu.memory_space<vmem>>, vector<128x128xf32>,
    } else {
    }
    return
  }
  func.func @transform_0(%arg0: i32, %arg1: i32, %arg2: i32) -> (i32, i32) {
    %c0_i32 = arith.constant 0 : i32
    return %arg0, %arg2 : i32, i32
  }
  func.func @transform_1(%arg0: i32, %arg1: i32, %arg2: i32) -> (i32, i32) {
    %c0_i32 = arith.constant 0 : i32
    return %arg2, %arg1 : i32, i32
  }
  func.func @transform_2(%arg0: i32, %arg1: i32, %arg2: i32) -> (i32, i32) {
    %c0_i32 = arith.constant 0 : i32
    %c0_i32_0 = arith.constant 0 : i32
    return %c0_i32, %arg1 : i32, i32
  }
  func.func @transform_3(%arg0: i32, %arg1: i32, %arg2: i32) -> (i32, i32) {
    %c0_i32 = arith.constant 0 : i32
    %c0_i32_0 = arith.constant 0 : i32
    return %c0_i32, %arg1 : i32, i32
  }
  func.func @transform_4(%arg0: i32, %arg1: i32, %arg2: i32) -> (i32, i32) {
    %c0_i32 = arith.constant 0 : i32
    return %arg0, %arg1 : i32, i32
  }
}

module attributes {stable_mosaic.version = 11 : i64} {
  func.func @_conv_bn_relu_kernel(%arg0: i32, %arg1: i32, %arg2: i32, %arg3: memref<128x512xbf16, #tpu.memory_space<vmem>>, %arg4: memref<512x128xbf16, #tpu.memory_space<vmem>>, %arg5: memref<1x128xf32, #tpu.memory_space<vmem>>, %arg6: memref<1x128xf32, #tpu.memory_space<vmem>>, %arg7: memref<128x128xf32, #tpu.memory_space<vmem>>, %arg8: memref<128x128xf32, #tpu.memory_space<vmem>>) attributes {dimension_semantics = [#tpu.dimension_semantics<parallel>, #tpu.dimension_semantics<parallel>, #tpu.dimension_semantics<arbitrary>], iteration_bounds = array<i64: 1, 1, 2>, scalar_prefetch = 0 : i64, scratch_operands = 1 : i64, tpu.core_type = #tpu.core_type<tc>, window_params = [{transform_indices = @transform_0, window_bounds = array<i64: 128, 512>}, {transform_indices = @transform_1, window_bounds = array<i64: 512, 128>}, {transform_indices = @transform_2, window_bounds = array<i64: 1, 128>}, {transform_indices = @transform_3, window_bounds = array<i64: 1, 128>}, {transform_indices = @transform_4, window_bounds = array<i64: 128, 128>}]} {
    %c0_i32 = arith.constant 0 : i32
    %0 = arith.cmpi eq, %arg2, %c0_i32 : i32
    %1 = arith.extui %0 : i1 to i32
    %c0_i32_0 = arith.constant 0 : i32
    %2 = arith.cmpi ne, %1, %c0_i32_0 : i32
    scf.if %2 {
      %cst_9 = arith.constant 0.000000e+00 : f32
      %12 = vector.broadcast %cst_9 : f32 to vector<128x128xf32>
      %c0_10 = arith.constant 0 : index
      %c0_11 = arith.constant 0 : index
      %13 = vector.load %arg8[%c0_10, %c0_11] : memref<128x128xf32, #tpu.memory_space<vmem>>, vector<128x128xf32>
      tpu.vector_store %arg8[%c0_10, %c0_11], %12 {strides = array<i32>} : memref<128x128xf32, #tpu.memory_space<vmem>>, vector<128x128xf32>,
    } else {
    }
    %c0 = arith.constant 0 : index
    %c0_1 = arith.constant 0 : index
    %3 = vector.load %arg8[%c0, %c0_1] : memref<128x128xf32, #tpu.memory_space<vmem>>, vector<128x128xf32>
    %c0_2 = arith.constant 0 : index
    %c0_3 = arith.constant 0 : index
    %4 = vector.load %arg3[%c0_2, %c0_3] : memref<128x512xbf16, #tpu.memory_space<vmem>>, vector<128x512xbf16>
    %c0_4 = arith.constant 0 : index
    %c0_5 = arith.constant 0 : index
    %5 = vector.load %arg4[%c0_4, %c0_5] : memref<512x128xbf16, #tpu.memory_space<vmem>>, vector<512x128xbf16>
    %cst = arith.constant dense<0.000000e+00> : vector<128x128xf32>
    %6 = tpu.matmul %4, %5, %cst {dimension_numbers = #tpu.dot_dimension_numbers<[1], [0], [0], [1], [0, 0, 1, 1], [], []>} : vector<128x512xbf16>, vector<512x128xbf16>, vector<128x128xf32> -> vector<128x128xf32>
    %7 = arith.addf %3, %6 : vector<128x128xf32>
    %c0_6 = arith.constant 0 : index
    %c0_7 = arith.constant 0 : index
    %8 = vector.load %arg8[%c0_6, %c0_7] : memref<128x128xf32, #tpu.memory_space<vmem>>, vector<128x128xf32>
    tpu.vector_store %arg8[%c0_6, %c0_7], %7 {strides = array<i32>} : memref<128x128xf32, #tpu.memory_space<vmem>>, vector<128x128xf32>,
    %c1_i32 = arith.constant 1 : i32
    %9 = arith.cmpi eq, %arg2, %c1_i32 : i32
    %10 = arith.extui %9 : i1 to i32
    %c0_i32_8 = arith.constant 0 : i32
    %11 = arith.cmpi ne, %10, %c0_i32_8 : i32
    scf.if %11 {
      %c0_9 = arith.constant 0 : index
      %c0_10 = arith.constant 0 : index
      %12 = vector.load %arg8[%c0_9, %c0_10] : memref<128x128xf32, #tpu.memory_space<vmem>>, vector<128x128xf32>
      %c0_11 = arith.constant 0 : index
      %c0_12 = arith.constant 0 : index
      %13 = vector.load %arg5[%c0_11, %c0_12] : memref<1x128xf32, #tpu.memory_space<vmem>>, vector<1x128xf32>
      %14 = vector.broadcast %13 : vector<1x128xf32> to vector<128x128xf32>
      %15 = arith.mulf %12, %14 : vector<128x128xf32>
      %c0_13 = arith.constant 0 : index
      %c0_14 = arith.constant 0 : index
      %16 = vector.load %arg6[%c0_13, %c0_14] : memref<1x128xf32, #tpu.memory_space<vmem>>, vector<1x128xf32>
      %17 = vector.broadcast %16 : vector<1x128xf32> to vector<128x128xf32>
      %18 = arith.addf %15, %17 : vector<128x128xf32>
      %cst_15 = arith.constant 0.000000e+00 : f32
      %19 = vector.broadcast %cst_15 : f32 to vector<128x128xf32>
      %20 = arith.maximumf %18, %19 : vector<128x128xf32>
      %c0_16 = arith.constant 0 : index
      %c0_17 = arith.constant 0 : index
      %21 = vector.load %arg7[%c0_16, %c0_17] : memref<128x128xf32, #tpu.memory_space<vmem>>, vector<128x128xf32>
      tpu.vector_store %arg7[%c0_16, %c0_17], %20 {strides = array<i32>} : memref<128x128xf32, #tpu.memory_space<vmem>>, vector<128x128xf32>,
    } else {
    }
    return
  }
  func.func @transform_0(%arg0: i32, %arg1: i32, %arg2: i32) -> (i32, i32) {
    %c0_i32 = arith.constant 0 : i32
    return %arg0, %arg2 : i32, i32
  }
  func.func @transform_1(%arg0: i32, %arg1: i32, %arg2: i32) -> (i32, i32) {
    %c0_i32 = arith.constant 0 : i32
    return %arg2, %arg1 : i32, i32
  }
  func.func @transform_2(%arg0: i32, %arg1: i32, %arg2: i32) -> (i32, i32) {
    %c0_i32 = arith.constant 0 : i32
    %c0_i32_0 = arith.constant 0 : i32
    return %c0_i32, %arg1 : i32, i32
  }
  func.func @transform_3(%arg0: i32, %arg1: i32, %arg2: i32) -> (i32, i32) {
    %c0_i32 = arith.constant 0 : i32
    %c0_i32_0 = arith.constant 0 : i32
    return %c0_i32, %arg1 : i32, i32
  }
  func.func @transform_4(%arg0: i32, %arg1: i32, %arg2: i32) -> (i32, i32) {
    %c0_i32 = arith.constant 0 : i32
    return %arg0, %arg1 : i32, i32
  }
}

module attributes {stable_mosaic.version = 11 : i64} {
  func.func @_conv_bn_relu_kernel(%arg0: i32, %arg1: i32, %arg2: i32, %arg3: memref<128x128xbf16, #tpu.memory_space<vmem>>, %arg4: memref<128x128xbf16, #tpu.memory_space<vmem>>, %arg5: memref<1x128xf32, #tpu.memory_space<vmem>>, %arg6: memref<1x128xf32, #tpu.memory_space<vmem>>, %arg7: memref<128x128xf32, #tpu.memory_space<vmem>>, %arg8: memref<128x128xf32, #tpu.memory_space<vmem>>) attributes {dimension_semantics = [#tpu.dimension_semantics<parallel>, #tpu.dimension_semantics<parallel>, #tpu.dimension_semantics<arbitrary>], iteration_bounds = array<i64: 1, 3, 1>, scalar_prefetch = 0 : i64, scratch_operands = 1 : i64, tpu.core_type = #tpu.core_type<tc>, window_params = [{transform_indices = @transform_0, window_bounds = array<i64: 128, 128>}, {transform_indices = @transform_1, window_bounds = array<i64: 128, 128>}, {transform_indices = @transform_2, window_bounds = array<i64: 1, 128>}, {transform_indices = @transform_3, window_bounds = array<i64: 1, 128>}, {transform_indices = @transform_4, window_bounds = array<i64: 128, 128>}]} {
    %c0_i32 = arith.constant 0 : i32
    %0 = arith.cmpi eq, %arg2, %c0_i32 : i32
    %1 = arith.extui %0 : i1 to i32
    %c0_i32_0 = arith.constant 0 : i32
    %2 = arith.cmpi ne, %1, %c0_i32_0 : i32
    scf.if %2 {
      %cst_10 = arith.constant 0.000000e+00 : f32
      %12 = vector.broadcast %cst_10 : f32 to vector<128x128xf32>
      %c0_11 = arith.constant 0 : index
      %c0_12 = arith.constant 0 : index
      %13 = vector.load %arg8[%c0_11, %c0_12] : memref<128x128xf32, #tpu.memory_space<vmem>>, vector<128x128xf32>
      tpu.vector_store %arg8[%c0_11, %c0_12], %12 {strides = array<i32>} : memref<128x128xf32, #tpu.memory_space<vmem>>, vector<128x128xf32>,
    } else {
    }
    %c0 = arith.constant 0 : index
    %c0_1 = arith.constant 0 : index
    %3 = vector.load %arg8[%c0, %c0_1] : memref<128x128xf32, #tpu.memory_space<vmem>>, vector<128x128xf32>
    %c0_2 = arith.constant 0 : index
    %c0_3 = arith.constant 0 : index
    %4 = vector.load %arg3[%c0_2, %c0_3] : memref<128x128xbf16, #tpu.memory_space<vmem>>, vector<128x128xbf16>
    %c0_4 = arith.constant 0 : index
    %c0_5 = arith.constant 0 : index
    %5 = vector.load %arg4[%c0_4, %c0_5] : memref<128x128xbf16, #tpu.memory_space<vmem>>, vector<128x128xbf16>
    %cst = arith.constant dense<0.000000e+00> : vector<128x128xf32>
    %6 = tpu.matmul %4, %5, %cst {dimension_numbers = #tpu.dot_dimension_numbers<[1], [0], [0], [1], [0, 0, 1, 1], [], []>} : vector<128x128xbf16>, vector<128x128xbf16>, vector<128x128xf32> -> vector<128x128xf32>
    %7 = arith.addf %3, %6 : vector<128x128xf32>
    %c0_6 = arith.constant 0 : index
    %c0_7 = arith.constant 0 : index
    %8 = vector.load %arg8[%c0_6, %c0_7] : memref<128x128xf32, #tpu.memory_space<vmem>>, vector<128x128xf32>
    tpu.vector_store %arg8[%c0_6, %c0_7], %7 {strides = array<i32>} : memref<128x128xf32, #tpu.memory_space<vmem>>, vector<128x128xf32>,
    %c0_i32_8 = arith.constant 0 : i32
    %9 = arith.cmpi eq, %arg2, %c0_i32_8 : i32
    %10 = arith.extui %9 : i1 to i32
    %c0_i32_9 = arith.constant 0 : i32
    %11 = arith.cmpi ne, %10, %c0_i32_9 : i32
    scf.if %11 {
      %c0_10 = arith.constant 0 : index
      %c0_11 = arith.constant 0 : index
      %12 = vector.load %arg8[%c0_10, %c0_11] : memref<128x128xf32, #tpu.memory_space<vmem>>, vector<128x128xf32>
      %c0_12 = arith.constant 0 : index
      %c0_13 = arith.constant 0 : index
      %13 = vector.load %arg5[%c0_12, %c0_13] : memref<1x128xf32, #tpu.memory_space<vmem>>, vector<1x128xf32>
      %14 = vector.broadcast %13 : vector<1x128xf32> to vector<128x128xf32>
      %15 = arith.mulf %12, %14 : vector<128x128xf32>
      %c0_14 = arith.constant 0 : index
      %c0_15 = arith.constant 0 : index
      %16 = vector.load %arg6[%c0_14, %c0_15] : memref<1x128xf32, #tpu.memory_space<vmem>>, vector<1x128xf32>
      %17 = vector.broadcast %16 : vector<1x128xf32> to vector<128x128xf32>
      %18 = arith.addf %15, %17 : vector<128x128xf32>
      %cst_16 = arith.constant 0.000000e+00 : f32
      %19 = vector.broadcast %cst_16 : f32 to vector<128x128xf32>
      %20 = arith.maximumf %18, %19 : vector<128x128xf32>
      %c0_17 = arith.constant 0 : index
      %c0_18 = arith.constant 0 : index
      %21 = vector.load %arg7[%c0_17, %c0_18] : memref<128x128xf32, #tpu.memory_space<vmem>>, vector<128x128xf32>
      tpu.vector_store %arg7[%c0_17, %c0_18], %20 {strides = array<i32>} : memref<128x128xf32, #tpu.memory_space<vmem>>, vector<128x128xf32>,
    } else {
    }
    return
  }
  func.func @transform_0(%arg0: i32, %arg1: i32, %arg2: i32) -> (i32, i32) {
    %c0_i32 = arith.constant 0 : i32
    return %arg0, %arg2 : i32, i32
  }
  func.func @transform_1(%arg0: i32, %arg1: i32, %arg2: i32) -> (i32, i32) {
    %c0_i32 = arith.constant 0 : i32
    return %arg2, %arg1 : i32, i32
  }
  func.func @transform_2(%arg0: i32, %arg1: i32, %arg2: i32) -> (i32, i32) {
    %c0_i32 = arith.constant 0 : i32
    %c0_i32_0 = arith.constant 0 : i32
    return %c0_i32, %arg1 : i32, i32
  }
  func.func @transform_3(%arg0: i32, %arg1: i32, %arg2: i32) -> (i32, i32) {
    %c0_i32 = arith.constant 0 : i32
    %c0_i32_0 = arith.constant 0 : i32
    return %c0_i32, %arg1 : i32, i32
  }
  func.func @transform_4(%arg0: i32, %arg1: i32, %arg2: i32) -> (i32, i32) {
    %c0_i32 = arith.constant 0 : i32
    return %arg0, %arg1 : i32, i32
  }
}

module attributes {stable_mosaic.version = 11 : i64} {
  func.func @_maxpool_kernel(%arg0: i32, %arg1: memref<9x8x128xf32, #tpu.memory_space<vmem>>, %arg2: memref<8x128xf32, #tpu.memory_space<vmem>>) attributes {dimension_semantics = [#tpu.dimension_semantics<parallel>], iteration_bounds = array<i64: 1>, scalar_prefetch = 0 : i64, scratch_operands = 0 : i64, tpu.core_type = #tpu.core_type<tc>, window_params = [{transform_indices = @transform_0, window_bounds = array<i64: 9, 8, 128>}, {transform_indices = @transform_1, window_bounds = array<i64: 8, 128>}]} {
    %c0 = arith.constant 0 : index
    %c0_0 = arith.constant 0 : index
    %c0_1 = arith.constant 0 : index
    %0 = vector.load %arg1[%c0, %c0_0, %c0_1] : memref<9x8x128xf32, #tpu.memory_space<vmem>>, vector<1x8x128xf32>
    %1 = vector.shape_cast %0 : vector<1x8x128xf32> to vector<8x128xf32>
    %c1 = arith.constant 1 : index
    %c0_2 = arith.constant 0 : index
    %c0_3 = arith.constant 0 : index
    %2 = vector.load %arg1[%c1, %c0_2, %c0_3] : memref<9x8x128xf32, #tpu.memory_space<vmem>>, vector<1x8x128xf32>
    %3 = vector.shape_cast %2 : vector<1x8x128xf32> to vector<8x128xf32>
    %4 = arith.maximumf %1, %3 : vector<8x128xf32>
    %c2 = arith.constant 2 : index
    %c0_4 = arith.constant 0 : index
    %c0_5 = arith.constant 0 : index
    %5 = vector.load %arg1[%c2, %c0_4, %c0_5] : memref<9x8x128xf32, #tpu.memory_space<vmem>>, vector<1x8x128xf32>
    %6 = vector.shape_cast %5 : vector<1x8x128xf32> to vector<8x128xf32>
    %7 = arith.maximumf %4, %6 : vector<8x128xf32>
    %c3 = arith.constant 3 : index
    %c0_6 = arith.constant 0 : index
    %c0_7 = arith.constant 0 : index
    %8 = vector.load %arg1[%c3, %c0_6, %c0_7] : memref<9x8x128xf32, #tpu.memory_space<vmem>>, vector<1x8x128xf32>
    %9 = vector.shape_cast %8 : vector<1x8x128xf32> to vector<8x128xf32>
    %10 = arith.maximumf %7, %9 : vector<8x128xf32>
    %c4 = arith.constant 4 : index
    %c0_8 = arith.constant 0 : index
    %c0_9 = arith.constant 0 : index
    %11 = vector.load %arg1[%c4, %c0_8, %c0_9] : memref<9x8x128xf32, #tpu.memory_space<vmem>>, vector<1x8x128xf32>
    %12 = vector.shape_cast %11 : vector<1x8x128xf32> to vector<8x128xf32>
    %13 = arith.maximumf %10, %12 : vector<8x128xf32>
    %c5 = arith.constant 5 : index
    %c0_10 = arith.constant 0 : index
    %c0_11 = arith.constant 0 : index
    %14 = vector.load %arg1[%c5, %c0_10, %c0_11] : memref<9x8x128xf32, #tpu.memory_space<vmem>>, vector<1x8x128xf32>
    %15 = vector.shape_cast %14 : vector<1x8x128xf32> to vector<8x128xf32>
    %16 = arith.maximumf %13, %15 : vector<8x128xf32>
    %c6 = arith.constant 6 : index
    %c0_12 = arith.constant 0 : index
    %c0_13 = arith.constant 0 : index
    %17 = vector.load %arg1[%c6, %c0_12, %c0_13] : memref<9x8x128xf32, #tpu.memory_space<vmem>>, vector<1x8x128xf32>
    %18 = vector.shape_cast %17 : vector<1x8x128xf32> to vector<8x128xf32>
    %19 = arith.maximumf %16, %18 : vector<8x128xf32>
    %c7 = arith.constant 7 : index
    %c0_14 = arith.constant 0 : index
    %c0_15 = arith.constant 0 : index
    %20 = vector.load %arg1[%c7, %c0_14, %c0_15] : memref<9x8x128xf32, #tpu.memory_space<vmem>>, vector<1x8x128xf32>
    %21 = vector.shape_cast %20 : vector<1x8x128xf32> to vector<8x128xf32>
    %22 = arith.maximumf %19, %21 : vector<8x128xf32>
    %c8 = arith.constant 8 : index
    %c0_16 = arith.constant 0 : index
    %c0_17 = arith.constant 0 : index
    %23 = vector.load %arg1[%c8, %c0_16, %c0_17] : memref<9x8x128xf32, #tpu.memory_space<vmem>>, vector<1x8x128xf32>
    %24 = vector.shape_cast %23 : vector<1x8x128xf32> to vector<8x128xf32>
    %25 = arith.maximumf %22, %24 : vector<8x128xf32>
    %c0_18 = arith.constant 0 : index
    %c0_19 = arith.constant 0 : index
    %26 = vector.load %arg2[%c0_18, %c0_19] : memref<8x128xf32, #tpu.memory_space<vmem>>, vector<8x128xf32>
    tpu.vector_store %arg2[%c0_18, %c0_19], %25 {strides = array<i32>} : memref<8x128xf32, #tpu.memory_space<vmem>>, vector<8x128xf32>,
    return
  }
  func.func @transform_0(%arg0: i32) -> (i32, i32, i32) {
    %c0_i32 = arith.constant 0 : i32
    %c0_i32_0 = arith.constant 0 : i32
    %c0_i32_1 = arith.constant 0 : i32
    return %c0_i32, %arg0, %c0_i32_0 : i32, i32, i32
  }
  func.func @transform_1(%arg0: i32) -> (i32, i32) {
    %c0_i32 = arith.constant 0 : i32
    %c0_i32_0 = arith.constant 0 : i32
    return %arg0, %c0_i32 : i32, i32
  }
}

</mosaic_0001>

<llo_original>
// kernel: inception_b_forward.6
$region0: #{inception_b_forward.6}
  #allocation0 [shape = 'u32[]', space=smem, size = 0x4, offset = 0x4, fixed_abs, tag = 'smem constant byte address 0x4 - core index']
  #allocation1 [shape = 'u32[72,128]{1,0:T(1,128)}', space=vmem, size = 0x9000, scoped, tag = 'internal scratch']
  #allocation2 [shape = 'f32[128,128]{1,0:T(8,128)}', space=vmem, size = 0x10000, scoped, tag = 'scratch operand']
  %s0 = inlined_call_operand.vmem [shape: bf16[512,128], index: 0, kind: input, shape index: {}]
  %s1 = inlined_call_operand.vmem [shape: bf16[128,128], index: 1, kind: input, shape index: {}]
  %s2 = inlined_call_operand.vmem [shape: f32[1,128], index: 2, kind: input, shape index: {}]
  %s3 = inlined_call_operand.vmem [shape: f32[1,128], index: 3, kind: input, shape index: {}]
  %s4 = inlined_call_operand.vmem [shape: f32[512,128], index: 4, kind: output, shape index: {}]
  %s5 = sld [smem:[#allocation0]]
  $region57: #{inception_b_forward.6} parent=0
    _
  %s7 = ssub.s32 1, %s5
  %s8 = scalar_select 0, %s7, %s5
  loop: start=0, step=1, limit=6
  $region2: #{inception_b_forward.6} parent=0 // loop_pre_header
    _
  $region3: #{inception_b_forward.6} parent=0 // loop_header
    %s10 = sphi 0, %s14
    %p11 = scmp.ge.s32.totalorder %s10, 6
    %s17 = sphi 0, %s36
    %s18 = sphi 0, %s32
    %s19 = sphi 0, %s28
    %s20 = sphi 0, %s17
    %s21 = sphi 0, %s18
    %s22 = sphi 0, %s19
    %s23 = sphi 0, %s20
    %s24 = sphi 0, %s21
    %s25 = sphi 0, %s22
    %s41 = sphi 0, %s43
    %s44 = sphi 0, %s41
    %s45 = sphi 0, %s44
    %s61 = sphi 0, %s45
    %s69 = sphi 0, %s71
    %s72 = sphi 0, %s69
    %s73 = sphi 0, %s72
    %s89 = sphi 0, %s73
    %s95 = sphi 0, %s97
    %s98 = sphi 0, %s95
    %s99 = sphi 0, %s98
    %s115 = sphi 0, %s99
    %s121 = sphi 0, %s123
    %s124 = sphi 0, %s121
    %s125 = sphi 0, %s124
    %s141 = sphi 0, %s125
    %s149 = sphi 0, %s151
    %s152 = sphi 0, %s149
    %s153 = sphi 0, %s152
    %s169 = sphi 0, %s153
  $region4: #{inception_b_forward.6} parent=0 // loop_header_branch
    %13 = sbr.rel (%p11) target = $region8
  $region5: #{inception_b_forward.6} parent=0 // loop_body
    %s15 = ssub.s32 %s10, 1
    %s16 = ssub.s32 %s10, 2
    %s26 = sadd.s32 1, %s19
    %p27 = scmp.ge.s32.totalorder %s26, 1
    %s28 = scalar_select %p27, 0, %s26
    %s29 = sadd.s32 1, %s18
    %s30 = scalar_select %p27, %s29, %s18
    %p31 = scmp.ge.s32.totalorder %s30, 1
    %s32 = scalar_select %p31, 0, %s30
    %s33 = sadd.s32 1, %s17
    %s34 = scalar_select %p31, %s33, %s17
    %p35 = scmp.ge.s32.totalorder %s34, 4
    %s36 = scalar_select %p35, 0, %s34
    %s37 = ssub.s32 %s17, %s36
    %s38 = ssub.s32 %s19, %s28
    %s39 = sor.u32 %s37, %s38
    %p40 = scmp.eq.s32.totalorder %s39, 0
    %s42 = sadd.s32 %s41, 1
    %s43 = scalar_select %p40, %s41, %s42
    %p46 = pneg %p40
    %p47 = scmp.eq.s32.totalorder %s10, 3
    %p48 = por %p46, %p47
    %p49 = scmp.ne.s32.totalorder %s41, %s44
    %p50 = scmp.eq.s32.totalorder %s10, 0
    %p51 = por %p49, %p50
    %p52 = scmp.ne.s32.totalorder %s41, %s44
    %p53 = scmp.eq.s32.totalorder %s15, 3
    %p54 = por %p52, %p53
    %p55 = scmp.ne.s32.totalorder %s44, %s45
    %p56 = scmp.eq.s32.totalorder %s15, 0
    %p57 = por %p55, %p56
    %p58 = scmp.ne.s32.totalorder %s44, %s45
    %p59 = scmp.eq.s32.totalorder %s16, 3
    %p60 = por %p58, %p59
    %p62 = scmp.ne.s32.totalorder %s45, %s61
    %p63 = scmp.eq.s32.totalorder %s16, 0
    %p64 = por %p62, %p63
    %s65 = ssub.s32 %s19, %s28
    %s66 = ssub.s32 %s18, %s32
    %s67 = sor.u32 %s65, %s66
    %p68 = scmp.eq.s32.totalorder %s67, 0
    %s70 = sadd.s32 %s69, 1
    %s71 = scalar_select %p68, %s69, %s70
    %p74 = pneg %p68
    %p75 = scmp.eq.s32.totalorder %s10, 3
    %p76 = por %p74, %p75
    %p77 = scmp.ne.s32.totalorder %s69, %s72
    %p78 = scmp.eq.s32.totalorder %s10, 0
    %p79 = por %p77, %p78
    %p80 = scmp.ne.s32.totalorder %s69, %s72
    %p81 = scmp.eq.s32.totalorder %s15, 3
    %p82 = por %p80, %p81
    %p83 = scmp.ne.s32.totalorder %s72, %s73
    %p84 = scmp.eq.s32.totalorder %s15, 0
    %p85 = por %p83, %p84
    %p86 = scmp.ne.s32.totalorder %s72, %s73
    %p87 = scmp.eq.s32.totalorder %s16, 3
    %p88 = por %p86, %p87
    %p90 = scmp.ne.s32.totalorder %s73, %s89
    %p91 = scmp.eq.s32.totalorder %s16, 0
    %p92 = por %p90, %p91
    %s93 = ssub.s32 %s18, %s32
    %p94 = scmp.eq.s32.totalorder %s93, 0
    %s96 = sadd.s32 %s95, 1
    %s97 = scalar_select %p94, %s95, %s96
    %p100 = pneg %p94
    %p101 = scmp.eq.s32.totalorder %s10, 3
    %p102 = por %p100, %p101
    %p103 = scmp.ne.s32.totalorder %s95, %s98
    %p104 = scmp.eq.s32.totalorder %s10, 0
    %p105 = por %p103, %p104
    %p106 = scmp.ne.s32.totalorder %s95, %s98
    %p107 = scmp.eq.s32.totalorder %s15, 3
    %p108 = por %p106, %p107
    %p109 = scmp.ne.s32.totalorder %s98, %s99
    %p110 = scmp.eq.s32.totalorder %s15, 0
    %p111 = por %p109, %p110
    %p112 = scmp.ne.s32.totalorder %s98, %s99
    %p113 = scmp.eq.s32.totalorder %s16, 3
    %p114 = por %p112, %p113
    %p116 = scmp.ne.s32.totalorder %s99, %s115
    %p117 = scmp.eq.s32.totalorder %s16, 0
    %p118 = por %p116, %p117
    %s119 = ssub.s32 %s18, %s32
    %p120 = scmp.eq.s32.totalorder %s119, 0
    %s122 = sadd.s32 %s121, 1
    %s123 = scalar_select %p120, %s121, %s122
    %p126 = pneg %p120
    %p127 = scmp.eq.s32.totalorder %s10, 3
    %p128 = por %p126, %p127
    %p129 = scmp.ne.s32.totalorder %s121, %s124
    %p130 = scmp.eq.s32.totalorder %s10, 0
    %p131 = por %p129, %p130
    %p132 = scmp.ne.s32.totalorder %s121, %s124
    %p133 = scmp.eq.s32.totalorder %s15, 3
    %p134 = por %p132, %p133
    %p135 = scmp.ne.s32.totalorder %s124, %s125
    %p136 = scmp.eq.s32.totalorder %s15, 0
    %p137 = por %p135, %p136
    %p138 = scmp.ne.s32.totalorder %s124, %s125
    %p139 = scmp.eq.s32.totalorder %s16, 3
    %p140 = por %p138, %p139
    %p142 = scmp.ne.s32.totalorder %s125, %s141
    %p143 = scmp.eq.s32.totalorder %s16, 0
    %p144 = por %p142, %p143
    %s145 = ssub.s32 %s17, %s36
    %s146 = ssub.s32 %s18, %s32
    %s147 = sor.u32 %s145, %s146
    %p148 = scmp.eq.s32.totalorder %s147, 0
    %s150 = sadd.s32 %s149, 1
    %s151 = scalar_select %p148, %s149, %s150
    %p154 = pneg %p148
    %p155 = scmp.eq.s32.totalorder %s10, 3
    %p156 = por %p154, %p155
    %p157 = scmp.ne.s32.totalorder %s149, %s152
    %p158 = scmp.eq.s32.totalorder %s10, 0
    %p159 = por %p157, %p158
    %p160 = scmp.ne.s32.totalorder %s149, %s152
    %p161 = scmp.eq.s32.totalorder %s15, 3
    %p162 = por %p160, %p161
    %p163 = scmp.ne.s32.totalorder %s152, %s153
    %p164 = scmp.eq.s32.totalorder %s15, 0
    %p165 = por %p163, %p164
    %p166 = scmp.ne.s32.totalorder %s152, %s153
    %p167 = scmp.eq.s32.totalorder %s16, 3
    %p168 = por %p166, %p167
    %p170 = scmp.ne.s32.totalorder %s153, %s169
    %p171 = scmp.eq.s32.totalorder %s16, 0
    %p172 = por %p170, %p171
    %p173 = scmp.le.s32.totalorder 1, %s10
    %p174 = scmp.lt.s32.totalorder %s10, 5
    %p175 = pnand %p173, %p174
    %p176 = pneg %p175
    // Predicated region
    $region9: #{inception_b_forward.6} parent=5 // pred_check
      _
    $region10: #{inception_b_forward.6} parent=5 // pred_check_branch
      %178 = sbr.rel (%p175) target = $region12
    $region11: #{inception_b_forward.6} parent=5 // pred_region
      %s179 = ssub.s32 %s10, 1
      // Predicated region
      $region13: #{inception_b_forward.6} parent=11 // pred_check
        %p180 = pneg %p85
      $region14: #{inception_b_forward.6} parent=11 // pred_check_branch
        %182 = sbr.rel (%p180) target = $region16
      $region15: #{inception_b_forward.6} parent=11 // pred_region
        %s183 = smul.u32 16, %s22
        %p184 = scmp.lt.s32.totalorder %s183, 15
        %s185 = scalar_select %p184, %s183, 15
        %p186 = scmp.lt.s32.totalorder %s21, 0
        %s187 = scalar_select %p186, %s21, 0
        %s188 = sadd.s32 %s187, %s185
        %s189 = smul.addr %s188, 4
        %s190 = scalar_lea.vmem %s1, %s189
        %s191 = smul.u32 16, %s22
      $region16: #{inception_b_forward.6} parent=11 // pred_fallthru
        _
      // Predicated region
      $region17: #{inception_b_forward.6} parent=11 // pred_check
        %p192 = pneg %p111
      $region18: #{inception_b_forward.6} parent=11 // pred_check_branch
        %194 = sbr.rel (%p192) target = $region20
      $region19: #{inception_b_forward.6} parent=11 // pred_region
        %p195 = scmp.lt.s32.totalorder %s21, 0
        %s196 = scalar_select %p195, %s21, 0
        %s197 = scalar_lea.vmem %s2, %s196
      $region20: #{inception_b_forward.6} parent=11 // pred_fallthru
        _
      // Predicated region
      $region21: #{inception_b_forward.6} parent=11 // pred_check
        %p198 = pneg %p137
      $region22: #{inception_b_forward.6} parent=11 // pred_check_branch
        %200 = sbr.rel (%p198) target = $region24
      $region23: #{inception_b_forward.6} parent=11 // pred_region
        %p201 = scmp.lt.s32.totalorder %s21, 0
        %s202 = scalar_select %p201, %s21, 0
        %s203 = scalar_lea.vmem %s3, %s202
      $region24: #{inception_b_forward.6} parent=11 // pred_fallthru
        _
    $region12: #{inception_b_forward.6} parent=5 // pred_fallthru
      _
    %p204 = scmp.lt.s32.totalorder %s10, 4
    // Predicated region
    $region25: #{inception_b_forward.6} parent=5 // pred_check
      %p205 = pneg %p204
    $region26: #{inception_b_forward.6} parent=5 // pred_check_branch
      %207 = sbr.rel (%p205) target = $region28
    $region27: #{inception_b_forward.6} parent=5 // pred_region
      // Predicated region
      $region29: #{inception_b_forward.6} parent=27 // pred_check
        %p208 = pneg %p51
      $region30: #{inception_b_forward.6} parent=27 // pred_check_branch
        %210 = sbr.rel (%p208) target = $region32
      $region31: #{inception_b_forward.6} parent=27 // pred_region
        %s211 = smul.u32 16, %s17
        %p212 = scmp.lt.s32.totalorder %s211, 63
        %s213 = scalar_select %p212, %s211, 63
        %p214 = scmp.lt.s32.totalorder %s19, 0
        %s215 = scalar_select %p214, %s19, 0
        %s216 = sadd.s32 %s215, %s213
        %s217 = smul.addr %s216, 4
        %s218 = scalar_lea.vmem %s0, %s217
        %s219 = smul.u32 16, %s17
      $region32: #{inception_b_forward.6} parent=27 // pred_fallthru
        _
    $region28: #{inception_b_forward.6} parent=5 // pred_fallthru
      _
    %p220 = scmp.le.s32.totalorder 1, %s10
    %p221 = scmp.lt.s32.totalorder %s10, 5
    %p222 = pnand %p220, %p221
    %p223 = pneg %p222
    // Predicated region
    $region33: #{inception_b_forward.6} parent=5 // pred_check
      _
    $region34: #{inception_b_forward.6} parent=5 // pred_check_branch
      %225 = sbr.rel (%p222) target = $region36
    $region35: #{inception_b_forward.6} parent=5 // pred_region
      %s226 = ssub.s32 %s10, 1
      %s227 = smul.u32 16, %s20
      %p228 = scmp.lt.s32.totalorder %s227, 63
      %s229 = scalar_select %p228, %s227, 63
      %p230 = scmp.lt.s32.totalorder %s22, 0
      %s231 = scalar_select %p230, %s22, 0
      %s232 = sadd.s32 %s231, %s229
      %s233 = smul.addr %s232, 4
      %s234 = scalar_lea.vmem %s0, %s233
      %p235 = pneg %p57
      %p236 = pneg %p54
      %s237 = smul.u32 16, %s22
      %p238 = scmp.lt.s32.totalorder %s237, 15
      %s239 = scalar_select %p238, %s237, 15
      %p240 = scmp.lt.s32.totalorder %s21, 0
      %s241 = scalar_select %p240, %s21, 0
      %s242 = sadd.s32 %s241, %s239
      %s243 = smul.addr %s242, 4
      %s244 = scalar_lea.vmem %s1, %s243
      %p245 = pneg %p85
      %p246 = pneg %p82
      %p247 = scmp.lt.s32.totalorder %s21, 0
      %s248 = scalar_select %p247, %s21, 0
      %s249 = scalar_lea.vmem %s2, %s248
      %p250 = pneg %p111
      %p251 = pneg %p108
      %p252 = scmp.lt.s32.totalorder %s21, 0
      %s253 = scalar_select %p252, %s21, 0
      %s254 = scalar_lea.vmem %s3, %s253
      %p255 = pneg %p137
      %p256 = pneg %p134
      %p257 = pneg %p165
      %p258 = pneg %p162
      %s259 = smul.u32 16, %s20
      %p260 = scmp.lt.s32.totalorder %s259, 63
      %s261 = scalar_select %p260, %s259, 63
      %p262 = scmp.lt.s32.totalorder %s21, 0
      %s263 = scalar_select %p262, %s21, 0
      %s264 = sadd.s32 %s263, %s261
      %s265 = smul.addr %s264, 8
      %s266 = scalar_lea.vmem %s4, %s265
      %s267 = smul.u32 16, %s20
      %p268 = scmp.lt.s32.totalorder %s267, 63
      %s269 = scalar_select %p268, %s267, 63
      %p270 = scmp.lt.s32.totalorder %s22, 0
      %s271 = scalar_select %p270, %s22, 0
      %s272 = sadd.s32 %s271, %s269
      %s273 = smul.addr %s272, 4
      %s274 = scalar_lea.vmem %s0, %s273
      %s275 = smul.u32 16, %s20
      %s276 = smul.u32 16, %s22
      %p277 = scmp.lt.s32.totalorder %s276, 15
      %s278 = scalar_select %p277, %s276, 15
      %p279 = scmp.lt.s32.totalorder %s21, 0
      %s280 = scalar_select %p279, %s21, 0
      %s281 = sadd.s32 %s280, %s278
      %s282 = smul.addr %s281, 4
      %s283 = scalar_lea.vmem %s1, %s282
      %s284 = smul.u32 16, %s22
      %p285 = scmp.lt.s32.totalorder %s21, 0
      %s286 = scalar_select %p285, %s21, 0
      %s287 = scalar_lea.vmem %s2, %s286
      %p288 = scmp.lt.s32.totalorder %s21, 0
      %s289 = scalar_select %p288, %s21, 0
      %s290 = scalar_lea.vmem %s3, %s289
      %s291 = smul.u32 16, %s20
      %p292 = scmp.lt.s32.totalorder %s291, 63
      %s293 = scalar_select %p292, %s291, 63
      %p294 = scmp.lt.s32.totalorder %s21, 0
      %s295 = scalar_select %p294, %s21, 0
      %s296 = sadd.s32 %s295, %s293
      %s297 = smul.addr %s296, 8
      %s298 = scalar_lea.vmem %s4, %s297
      %s299 = smul.u32 16, %s20
      %p300 = scmp.eq.s32.totalorder %s22, 0
      // Predicated region
      $region37: #{inception_b_forward.6} parent=35 // pred_check
        %p301 = pneg %p300
      $region38: #{inception_b_forward.6} parent=35 // pred_check_branch
        %303 = sbr.rel (%p301) target = $region40
      $region39: #{inception_b_forward.6} parent=35 // pred_region
        %304 = vst [vmem:[#allocation2] sm:$0xff] 0.0
        %305 = vst [vmem:[#allocation2 + $0x8] sm:$0xff] 0.0
        %306 = vst [vmem:[#allocation2 + $0x10] sm:$0xff] 0.0
        %307 = vst [vmem:[#allocation2 + $0x18] sm:$0xff] 0.0
        %308 = vst [vmem:[#allocation2 + $0x20] sm:$0xff] 0.0
        %309 = vst [vmem:[#allocation2 + $0x28] sm:$0xff] 0.0
        %310 = vst [vmem:[#allocation2 + $0x30] sm:$0xff] 0.0
        %311 = vst [vmem:[#allocation2 + $0x38] sm:$0xff] 0.0
        %312 = vst [vmem:[#allocation2 + $0x40] sm:$0xff] 0.0
        %313 = vst [vmem:[#allocation2 + $0x48] sm:$0xff] 0.0
        %314 = vst [vmem:[#allocation2 + $0x50] sm:$0xff] 0.0
        %315 = vst [vmem:[#allocation2 + $0x58] sm:$0xff] 0.0
        %316 = vst [vmem:[#allocation2 + $0x60] sm:$0xff] 0.0
        %317 = vst [vmem:[#allocation2 + $0x68] sm:$0xff] 0.0
        %318 = vst [vmem:[#allocation2 + $0x70] sm:$0xff] 0.0
        %319 = vst [vmem:[#allocation2 + $0x78] sm:$0xff] 0.0
      $region40: #{inception_b_forward.6} parent=35 // pred_fallthru
        _
      %v320 = vld [vmem:[#allocation2] sm:$0xff]
      %v321 = vld [vmem:[#allocation2 + $0x8] sm:$0xff]
      %v322 = vld [vmem:[#allocation2 + $0x10] sm:$0xff]
      %v323 = vld [vmem:[#allocation2 + $0x18] sm:$0xff]
      %v324 = vld [vmem:[#allocation2 + $0x20] sm:$0xff]
      %v325 = vld [vmem:[#allocation2 + $0x28] sm:$0xff]
      %v326 = vld [vmem:[#allocation2 + $0x30] sm:$0xff]
      %v327 = vld [vmem:[#allocation2 + $0x38] sm:$0xff]
      %v328 = vld [vmem:[#allocation2 + $0x40] sm:$0xff]
      %v329 = vld [vmem:[#allocation2 + $0x48] sm:$0xff]
      %v330 = vld [vmem:[#allocation2 + $0x50] sm:$0xff]
      %v331 = vld [vmem:[#allocation2 + $0x58] sm:$0xff]
      %v332 = vld [vmem:[#allocation2 + $0x60] sm:$0xff]
      %v333 = vld [vmem:[#allocation2 + $0x68] sm:$0xff]
      %v334 = vld [vmem:[#allocation2 + $0x70] sm:$0xff]
      %v335 = vld [vmem:[#allocation2 + $0x78] sm:$0xff]
      %v336 = vld [vmem:[%s274] sm:$0xf]
      %v337 = vld [vmem:[%s274 + $0x4] sm:$0xf]
      %v338 = vld [vmem:[%s274 + $0x8] sm:$0xf]
      %v339 = vld [vmem:[%s274 + $0xc] sm:$0xf]
      %v340 = vld [vmem:[%s274 + $0x10] sm:$0xf]
      %v341 = vld [vmem:[%s274 + $0x14] sm:$0xf]
      %v342 = vld [vmem:[%s274 + $0x18] sm:$0xf]
      %v343 = vld [vmem:[%s274 + $0x1c] sm:$0xf]
      %v344 = vld [vmem:[%s274 + $0x20] sm:$0xf]
      %v345 = vld [vmem:[%s274 + $0x24] sm:$0xf]
      %v346 = vld [vmem:[%s274 + $0x28] sm:$0xf]
      %v347 = vld [vmem:[%s274 + $0x2c] sm:$0xf]
      %v348 = vld [vmem:[%s274 + $0x30] sm:$0xf]
      %v349 = vld [vmem:[%s274 + $0x34] sm:$0xf]
      %v350 = vld [vmem:[%s274 + $0x38] sm:$0xf]
      %v351 = vld [vmem:[%s274 + $0x3c] sm:$0xf]
      %v352 = vld [vmem:[%s283] sm:$0xf]
      %v353 = vld [vmem:[%s283 + $0x4] sm:$0xf]
      %v354 = vld [vmem:[%s283 + $0x8] sm:$0xf]
      %v355 = vld [vmem:[%s283 + $0xc] sm:$0xf]
      %v356 = vld [vmem:[%s283 + $0x10] sm:$0xf]
      %v357 = vld [vmem:[%s283 + $0x14] sm:$0xf]
      %v358 = vld [vmem:[%s283 + $0x18] sm:$0xf]
      %v359 = vld [vmem:[%s283 + $0x1c] sm:$0xf]
      %v360 = vld [vmem:[%s283 + $0x20] sm:$0xf]
      %v361 = vld [vmem:[%s283 + $0x24] sm:$0xf]
      %v362 = vld [vmem:[%s283 + $0x28] sm:$0xf]
      %v363 = vld [vmem:[%s283 + $0x2c] sm:$0xf]
      %v364 = vld [vmem:[%s283 + $0x30] sm:$0xf]
      %v365 = vld [vmem:[%s283 + $0x34] sm:$0xf]
      %v366 = vld [vmem:[%s283 + $0x38] sm:$0xf]
      %v367 = vld [vmem:[%s283 + $0x3c] sm:$0xf]
      %v384 = vunpack.c.l.b16 %v336
      %v385 = vunpack.c.l.b16 %v337
      %v386 = vunpack.c.l.b16 %v338
      %v387 = vunpack.c.l.b16 %v339
      %v388 = vunpack.c.l.b16 %v340
      %v389 = vunpack.c.l.b16 %v341
      %v390 = vunpack.c.l.b16 %v342
      %v391 = vunpack.c.l.b16 %v343
      %v392 = vunpack.c.l.b16 %v344
      %v393 = vunpack.c.l.b16 %v345
      %v394 = vunpack.c.l.b16 %v346
      %v395 = vunpack.c.l.b16 %v347
      %v396 = vunpack.c.l.b16 %v348
      %v397 = vunpack.c.l.b16 %v349
      %v398 = vunpack.c.l.b16 %v350
      %v399 = vunpack.c.l.b16 %v351
      %v400 = vpack.c.b16 %v385, %v384
      %v401 = vpack.c.b16 %v387, %v386
      %v402 = vpack.c.b16 %v389, %v388
      %v403 = vpack.c.b16 %v391, %v390
      %v404 = vpack.c.b16 %v393, %v392
      %v405 = vpack.c.b16 %v395, %v394
      %v406 = vpack.c.b16 %v397, %v396
      %v407 = vpack.c.b16 %v399, %v398
      %v432 = vunpack.c.l.b16 %v352
      %v433 = vunpack.c.l.b16 %v353
      %v434 = vunpack.c.l.b16 %v354
      %v435 = vunpack.c.l.b16 %v355
      %v436 = vunpack.c.l.b16 %v356
      %v437 = vunpack.c.l.b16 %v357
      %v438 = vunpack.c.l.b16 %v358
      %v439 = vunpack.c.l.b16 %v359
      %v440 = vunpack.c.l.b16 %v360
      %v441 = vunpack.c.l.b16 %v361
      %v442 = vunpack.c.l.b16 %v362
      %v443 = vunpack.c.l.b16 %v363
      %v444 = vunpack.c.l.b16 %v364
      %v445 = vunpack.c.l.b16 %v365
      %v446 = vunpack.c.l.b16 %v366
      %v447 = vunpack.c.l.b16 %v367
      %v448 = vpack.c.b16 %v433, %v432
      %v449 = vpack.c.b16 %v435, %v434
      %v450 = vpack.c.b16 %v437, %v436
      %v451 = vpack.c.b16 %v439, %v438
      %v452 = vpack.c.b16 %v441, %v440
      %v453 = vpack.c.b16 %v443, %v442
      %v454 = vpack.c.b16 %v445, %v444
      %v455 = vpack.c.b16 %v447, %v446
      %464 = vmatpush.bf16.msra.mxu0 %v455
      %465 = vmatpush.bf16.msra.mxu0 %v454
      %466 = vmatpush.bf16.msra.mxu0 %v453
      %467 = vmatpush.bf16.msra.mxu0 %v452
      %468 = vmatpush.bf16.msra.mxu0 %v451
      %469 = vmatpush.bf16.msra.mxu0 %v450
      %470 = vmatpush.bf16.msra.mxu0 %v449
      %471 = vmatpush.bf16.msra.mxu0 %v448
      %472 = vmatmul.bf16.gmra.mxu0 %v400
      %v473 = vpop.f32.mrf.mxu0
      %v474 = vadd.f32 0.0, %v473
      %v475 = vpop.f32.mrf.mxu0
      %v476 = vadd.f32 0.0, %v475
      %477 = vmatmul.bf16.gmra.mxu0 %v401
      %v478 = vpop.f32.mrf.mxu0
      %v479 = vadd.f32 0.0, %v478
      %v480 = vpop.f32.mrf.mxu0
      %v481 = vadd.f32 0.0, %v480
      %482 = vmatmul.bf16.gmra.mxu0 %v402
      %v483 = vpop.f32.mrf.mxu0
      %v484 = vadd.f32 0.0, %v483
      %v485 = vpop.f32.mrf.mxu0
      %v486 = vadd.f32 0.0, %v485
      %487 = vmatmul.bf16.gmra.mxu0 %v403
      %v488 = vpop.f32.mrf.mxu0
      %v489 = vadd.f32 0.0, %v488
      %v490 = vpop.f32.mrf.mxu0
      %v491 = vadd.f32 0.0, %v490
      %492 = vmatmul.bf16.gmra.mxu0 %v404
      %v493 = vpop.f32.mrf.mxu0
      %v494 = vadd.f32 0.0, %v493
      %v495 = vpop.f32.mrf.mxu0
      %v496 = vadd.f32 0.0, %v495
      %497 = vmatmul.bf16.gmra.mxu0 %v405
      %v498 = vpop.f32.mrf.mxu0
      %v499 = vadd.f32 0.0, %v498
      %v500 = vpop.f32.mrf.mxu0
      %v501 = vadd.f32 0.0, %v500
      %502 = vmatmul.bf16.gmra.mxu0 %v406
      %v503 = vpop.f32.mrf.mxu0
      %v504 = vadd.f32 0.0, %v503
      %v505 = vpop.f32.mrf.mxu0
      %v506 = vadd.f32 0.0, %v505
      %507 = vmatmul.bf16.gmra.mxu0 %v407
      %v508 = vpop.f32.mrf.mxu0
      %v509 = vadd.f32 0.0, %v508
      %v510 = vpop.f32.mrf.mxu0
      %v511 = vadd.f32 0.0, %v510
      %512 = vdwg.mxu0
      %v513 = vadd.f32 %v320, %v474
      %v514 = vadd.f32 %v321, %v476
      %v515 = vadd.f32 %v322, %v479
      %v516 = vadd.f32 %v323, %v481
      %v517 = vadd.f32 %v324, %v484
      %v518 = vadd.f32 %v325, %v486
      %v519 = vadd.f32 %v326, %v489
      %v520 = vadd.f32 %v327, %v491
      %v521 = vadd.f32 %v328, %v494
      %v522 = vadd.f32 %v329, %v496
      %v523 = vadd.f32 %v330, %v499
      %v524 = vadd.f32 %v331, %v501
      %v525 = vadd.f32 %v332, %v504
      %v526 = vadd.f32 %v333, %v506
      %v527 = vadd.f32 %v334, %v509
      %v528 = vadd.f32 %v335, %v511
      %529 = vst [vmem:[#allocation2] sm:$0xff] %v513
      %530 = vst [vmem:[#allocation2 + $0x8] sm:$0xff] %v514
      %531 = vst [vmem:[#allocation2 + $0x10] sm:$0xff] %v515
      %532 = vst [vmem:[#allocation2 + $0x18] sm:$0xff] %v516
      %533 = vst [vmem:[#allocation2 + $0x20] sm:$0xff] %v517
      %534 = vst [vmem:[#allocation2 + $0x28] sm:$0xff] %v518
      %535 = vst [vmem:[#allocation2 + $0x30] sm:$0xff] %v519
      %536 = vst [vmem:[#allocation2 + $0x38] sm:$0xff] %v520
      %537 = vst [vmem:[#allocation2 + $0x40] sm:$0xff] %v521
      %538 = vst [vmem:[#allocation2 + $0x48] sm:$0xff] %v522
      %539 = vst [vmem:[#allocation2 + $0x50] sm:$0xff] %v523
      %540 = vst [vmem:[#allocation2 + $0x58] sm:$0xff] %v524
      %541 = vst [vmem:[#allocation2 + $0x60] sm:$0xff] %v525
      %542 = vst [vmem:[#allocation2 + $0x68] sm:$0xff] %v526
      %543 = vst [vmem:[#allocation2 + $0x70] sm:$0xff] %v527
      %544 = vst [vmem:[#allocation2 + $0x78] sm:$0xff] %v528
      // Predicated region
      $region41: #{inception_b_forward.6} parent=35 // pred_check
        %p545 = pneg %p300
      $region42: #{inception_b_forward.6} parent=35 // pred_check_branch
        %547 = sbr.rel (%p545) target = $region44
      $region43: #{inception_b_forward.6} parent=35 // pred_region
        %v548 = vld [vmem:[#allocation2] sm:$0xff]
        %v549 = vld [vmem:[#allocation2 + $0x8] sm:$0xff]
        %v550 = vld [vmem:[#allocation2 + $0x10] sm:$0xff]
        %v551 = vld [vmem:[#allocation2 + $0x18] sm:$0xff]
        %v552 = vld [vmem:[#allocation2 + $0x20] sm:$0xff]
        %v553 = vld [vmem:[#allocation2 + $0x28] sm:$0xff]
        %v554 = vld [vmem:[#allocation2 + $0x30] sm:$0xff]
        %v555 = vld [vmem:[#allocation2 + $0x38] sm:$0xff]
        %v556 = vld [vmem:[#allocation2 + $0x40] sm:$0xff]
        %v557 = vld [vmem:[#allocation2 + $0x48] sm:$0xff]
        %v558 = vld [vmem:[#allocation2 + $0x50] sm:$0xff]
        %v559 = vld [vmem:[#allocation2 + $0x58] sm:$0xff]
        %v560 = vld [vmem:[#allocation2 + $0x60] sm:$0xff]
        %v561 = vld [vmem:[#allocation2 + $0x68] sm:$0xff]
        %v562 = vld [vmem:[#allocation2 + $0x70] sm:$0xff]
        %v563 = vld [vmem:[#allocation2 + $0x78] sm:$0xff]
        %v564 = vld [vmem:[%s287] sm:$0x1]
        %v566 = vperm.slane %v564, 0
        %v568 = vmul.f32 %v548, %v566
        %v569 = vmul.f32 %v549, %v566
        %v570 = vmul.f32 %v550, %v566
        %v571 = vmul.f32 %v551, %v566
        %v572 = vmul.f32 %v552, %v566
        %v573 = vmul.f32 %v553, %v566
        %v574 = vmul.f32 %v554, %v566
        %v575 = vmul.f32 %v555, %v566
        %v576 = vmul.f32 %v556, %v566
        %v577 = vmul.f32 %v557, %v566
        %v578 = vmul.f32 %v558, %v566
        %v579 = vmul.f32 %v559, %v566
        %v580 = vmul.f32 %v560, %v566
        %v581 = vmul.f32 %v561, %v566
        %v582 = vmul.f32 %v562, %v566
        %v583 = vmul.f32 %v563, %v566
        %v584 = vld [vmem:[%s290] sm:$0x1]
        %v586 = vperm.slane %v584, 0
        %v588 = vadd.f32 %v568, %v586
        %v589 = vadd.f32 %v569, %v586
        %v590 = vadd.f32 %v570, %v586
        %v591 = vadd.f32 %v571, %v586
        %v592 = vadd.f32 %v572, %v586
        %v593 = vadd.f32 %v573, %v586
        %v594 = vadd.f32 %v574, %v586
        %v595 = vadd.f32 %v575, %v586
        %v596 = vadd.f32 %v576, %v586
        %v597 = vadd.f32 %v577, %v586
        %v598 = vadd.f32 %v578, %v586
        %v599 = vadd.f32 %v579, %v586
        %v600 = vadd.f32 %v580, %v586
        %v601 = vadd.f32 %v581, %v586
        %v602 = vadd.f32 %v582, %v586
        %v603 = vadd.f32 %v583, %v586
        %v604 = vmax.f32 %v588, 0.0
        %v605 = vmax.f32 %v589, 0.0
        %v606 = vmax.f32 %v590, 0.0
        %v607 = vmax.f32 %v591, 0.0
        %v608 = vmax.f32 %v592, 0.0
        %v609 = vmax.f32 %v593, 0.0
        %v610 = vmax.f32 %v594, 0.0
        %v611 = vmax.f32 %v595, 0.0
        %v612 = vmax.f32 %v596, 0.0
        %v613 = vmax.f32 %v597, 0.0
        %v614 = vmax.f32 %v598, 0.0
        %v615 = vmax.f32 %v599, 0.0
        %v616 = vmax.f32 %v600, 0.0
        %v617 = vmax.f32 %v601, 0.0
        %v618 = vmax.f32 %v602, 0.0
        %v619 = vmax.f32 %v603, 0.0
        %620 = vst [vmem:[%s298] sm:$0xff] %v604
        %621 = vst [vmem:[%s298 + $0x8] sm:$0xff] %v605
        %622 = vst [vmem:[%s298 + $0x10] sm:$0xff] %v606
        %623 = vst [vmem:[%s298 + $0x18] sm:$0xff] %v607
        %624 = vst [vmem:[%s298 + $0x20] sm:$0xff] %v608
        %625 = vst [vmem:[%s298 + $0x28] sm:$0xff] %v609
        %626 = vst [vmem:[%s298 + $0x30] sm:$0xff] %v610
        %627 = vst [vmem:[%s298 + $0x38] sm:$0xff] %v611
        %628 = vst [vmem:[%s298 + $0x40] sm:$0xff] %v612
        %629 = vst [vmem:[%s298 + $0x48] sm:$0xff] %v613
        %630 = vst [vmem:[%s298 + $0x50] sm:$0xff] %v614
        %631 = vst [vmem:[%s298 + $0x58] sm:$0xff] %v615
        %632 = vst [vmem:[%s298 + $0x60] sm:$0xff] %v616
        %633 = vst [vmem:[%s298 + $0x68] sm:$0xff] %v617
        %634 = vst [vmem:[%s298 + $0x70] sm:$0xff] %v618
        %635 = vst [vmem:[%s298 + $0x78] sm:$0xff] %v619
      $region44: #{inception_b_forward.6} parent=35 // pred_fallthru
        _
      %s636 = smul.u32 16, %s20
      %p637 = scmp.lt.s32.totalorder %s636, 63
      %s638 = scalar_select %p637, %s636, 63
      %p639 = scmp.lt.s32.totalorder %s21, 0
      %s640 = scalar_select %p639, %s21, 0
      %s641 = sadd.s32 %s640, %s638
      %s642 = smul.addr %s641, 8
      %s643 = scalar_lea.vmem %s4, %s642
      // Predicated region
      $region45: #{inception_b_forward.6} parent=35 // pred_check
        %p644 = pneg %p162
      $region46: #{inception_b_forward.6} parent=35 // pred_check_branch
        %646 = sbr.rel (%p644) target = $region48
      $region47: #{inception_b_forward.6} parent=35 // pred_region
        %s647 = smul.u32 16, %s20
      $region48: #{inception_b_forward.6} parent=35 // pred_fallthru
        _
    $region36: #{inception_b_forward.6} parent=5 // pred_fallthru
      _
    %p648 = scmp.le.s32.totalorder 2, %s10
    // Predicated region
    $region49: #{inception_b_forward.6} parent=5 // pred_check
      %p649 = pneg %p648
    $region50: #{inception_b_forward.6} parent=5 // pred_check_branch
      %651 = sbr.rel (%p649) target = $region52
    $region51: #{inception_b_forward.6} parent=5 // pred_region
      %s652 = ssub.s32 %s10, 2
      // Predicated region
      $region53: #{inception_b_forward.6} parent=51 // pred_check
        %p653 = pneg %p168
      $region54: #{inception_b_forward.6} parent=51 // pred_check_branch
        %655 = sbr.rel (%p653) target = $region56
      $region55: #{inception_b_forward.6} parent=51 // pred_region
        %s656 = smul.u32 16, %s23
        %p657 = scmp.lt.s32.totalorder %s656, 63
        %s658 = scalar_select %p657, %s656, 63
        %p659 = scmp.lt.s32.totalorder %s24, 0
        %s660 = scalar_select %p659, %s24, 0
        %s661 = sadd.s32 %s660, %s658
        %s662 = smul.addr %s661, 8
        %s663 = scalar_lea.vmem %s4, %s662
      $region56: #{inception_b_forward.6} parent=51 // pred_fallthru
        _
    $region52: #{inception_b_forward.6} parent=5 // pred_fallthru
      _
  $region6: #{inception_b_forward.6} parent=0 // loop_footer
    %s14 = sadd.s32 1, %s10
  $region7: #{inception_b_forward.6} parent=0 // loop_footer_branch
    %9 = sbr.rel target = $region3
  $region8: #{inception_b_forward.6} parent=0 // loop_exit
    _

// kernel: inception_b_forward.7
$region0: #{inception_b_forward.7}
  #allocation0 [shape = 'u32[]', space=smem, size = 0x4, offset = 0x4, fixed_abs, tag = 'smem constant byte address 0x4 - core index']
  #allocation1 [shape = 'u32[72,128]{1,0:T(1,128)}', space=vmem, size = 0x9000, scoped, tag = 'internal scratch']
  #allocation2 [shape = 'f32[128,128]{1,0:T(8,128)}', space=vmem, size = 0x10000, scoped, tag = 'scratch operand']
  %s0 = inlined_call_operand.vmem [shape: bf16[512,1024], index: 0, kind: input, shape index: {}]
  %s1 = inlined_call_operand.vmem [shape: bf16[1024,128], index: 1, kind: input, shape index: {}]
  %s2 = inlined_call_operand.vmem [shape: f32[1,128], index: 2, kind: input, shape index: {}]
  %s3 = inlined_call_operand.vmem [shape: f32[1,128], index: 3, kind: input, shape index: {}]
  %s4 = inlined_call_operand.vmem [shape: f32[512,128], index: 4, kind: output, shape index: {}]
  %s5 = sld [smem:[#allocation0]]
  $region80: #{inception_b_forward.7} parent=0
    _
  %s7 = ssub.s32 1, %s5
  %s8 = scalar_select 0, %s7, %s5
  $region1: #{inception_b_forward.7} parent=0
    #allocation3 [shape = 'u8[262144]{0}', space=vmem, size = 0x40000, scoped, tag = 'input window, operand 0']
    loop: start=0, step=1, limit=10
    $region2: #{inception_b_forward.7} parent=1 // loop_pre_header
      _
    $region3: #{inception_b_forward.7} parent=1 // loop_header
      %s10 = sphi 0, %s14
      %p11 = scmp.ge.s32.totalorder %s10, 10
      %s17 = sphi 0, %s36
      %s18 = sphi 0, %s32
      %s19 = sphi 0, %s28
      %s20 = sphi 0, %s17
      %s21 = sphi 0, %s18
      %s22 = sphi 0, %s19
      %s23 = sphi 0, %s20
      %s24 = sphi 0, %s21
      %s25 = sphi 0, %s22
      %s41 = sphi 0, %s43
      %s44 = sphi 0, %s41
      %s45 = sphi 0, %s44
      %s61 = sphi 0, %s45
      %s69 = sphi 0, %s71
      %s72 = sphi 0, %s69
      %s73 = sphi 0, %s72
      %s89 = sphi 0, %s73
      %s95 = sphi 0, %s97
      %s98 = sphi 0, %s95
      %s99 = sphi 0, %s98
      %s115 = sphi 0, %s99
      %s121 = sphi 0, %s123
      %s124 = sphi 0, %s121
      %s125 = sphi 0, %s124
      %s141 = sphi 0, %s125
      %s149 = sphi 0, %s151
      %s152 = sphi 0, %s149
      %s153 = sphi 0, %s152
      %s169 = sphi 0, %s153
    $region4: #{inception_b_forward.7} parent=1 // loop_header_branch
      %13 = sbr.rel (%p11) target = $region8
    $region5: #{inception_b_forward.7} parent=1 // loop_body
      %s15 = ssub.s32 %s10, 1
      %s16 = ssub.s32 %s10, 2
      %s26 = sadd.s32 1, %s19
      %p27 = scmp.ge.s32.totalorder %s26, 2
      %s28 = scalar_select %p27, 0, %s26
      %s29 = sadd.s32 1, %s18
      %s30 = scalar_select %p27, %s29, %s18
      %p31 = scmp.ge.s32.totalorder %s30, 1
      %s32 = scalar_select %p31, 0, %s30
      %s33 = sadd.s32 1, %s17
      %s34 = scalar_select %p31, %s33, %s17
      %p35 = scmp.ge.s32.totalorder %s34, 4
      %s36 = scalar_select %p35, 0, %s34
      %s37 = ssub.s32 %s17, %s36
      %s38 = ssub.s32 %s19, %s28
      %s39 = sor.u32 %s37, %s38
      %p40 = scmp.eq.s32.totalorder %s39, 0
      %s42 = sadd.s32 %s41, 1
      %s43 = scalar_select %p40, %s41, %s42
      %p46 = pneg %p40
      %p47 = scmp.eq.s32.totalorder %s10, 7
      %p48 = por %p46, %p47
      %p49 = scmp.ne.s32.totalorder %s41, %s44
      %p50 = scmp.eq.s32.totalorder %s10, 0
      %p51 = por %p49, %p50
      %p52 = scmp.ne.s32.totalorder %s41, %s44
      %p53 = scmp.eq.s32.totalorder %s15, 7
      %p54 = por %p52, %p53
      %p55 = scmp.ne.s32.totalorder %s44, %s45
      %p56 = scmp.eq.s32.totalorder %s15, 0
      %p57 = por %p55, %p56
      %p58 = scmp.ne.s32.totalorder %s44, %s45
      %p59 = scmp.eq.s32.totalorder %s16, 7
      %p60 = por %p58, %p59
      %p62 = scmp.ne.s32.totalorder %s45, %s61
      %p63 = scmp.eq.s32.totalorder %s16, 0
      %p64 = por %p62, %p63
      %s65 = ssub.s32 %s19, %s28
      %s66 = ssub.s32 %s18, %s32
      %s67 = sor.u32 %s65, %s66
      %p68 = scmp.eq.s32.totalorder %s67, 0
      %s70 = sadd.s32 %s69, 1
      %s71 = scalar_select %p68, %s69, %s70
      %p74 = pneg %p68
      %p75 = scmp.eq.s32.totalorder %s10, 7
      %p76 = por %p74, %p75
      %p77 = scmp.ne.s32.totalorder %s69, %s72
      %p78 = scmp.eq.s32.totalorder %s10, 0
      %p79 = por %p77, %p78
      %p80 = scmp.ne.s32.totalorder %s69, %s72
      %p81 = scmp.eq.s32.totalorder %s15, 7
      %p82 = por %p80, %p81
      %p83 = scmp.ne.s32.totalorder %s72, %s73
      %p84 = scmp.eq.s32.totalorder %s15, 0
      %p85 = por %p83, %p84
      %p86 = scmp.ne.s32.totalorder %s72, %s73
      %p87 = scmp.eq.s32.totalorder %s16, 7
      %p88 = por %p86, %p87
      %p90 = scmp.ne.s32.totalorder %s73, %s89
      %p91 = scmp.eq.s32.totalorder %s16, 0
      %p92 = por %p90, %p91
      %s93 = ssub.s32 %s18, %s32
      %p94 = scmp.eq.s32.totalorder %s93, 0
      %s96 = sadd.s32 %s95, 1
      %s97 = scalar_select %p94, %s95, %s96
      %p100 = pneg %p94
      %p101 = scmp.eq.s32.totalorder %s10, 7
      %p102 = por %p100, %p101
      %p103 = scmp.ne.s32.totalorder %s95, %s98
      %p104 = scmp.eq.s32.totalorder %s10, 0
      %p105 = por %p103, %p104
      %p106 = scmp.ne.s32.totalorder %s95, %s98
      %p107 = scmp.eq.s32.totalorder %s15, 7
      %p108 = por %p106, %p107
      %p109 = scmp.ne.s32.totalorder %s98, %s99
      %p110 = scmp.eq.s32.totalorder %s15, 0
      %p111 = por %p109, %p110
      %p112 = scmp.ne.s32.totalorder %s98, %s99
      %p113 = scmp.eq.s32.totalorder %s16, 7
      %p114 = por %p112, %p113
      %p116 = scmp.ne.s32.totalorder %s99, %s115
      %p117 = scmp.eq.s32.totalorder %s16, 0
      %p118 = por %p116, %p117
      %s119 = ssub.s32 %s18, %s32
      %p120 = scmp.eq.s32.totalorder %s119, 0
      %s122 = sadd.s32 %s121, 1
      %s123 = scalar_select %p120, %s121, %s122
      %p126 = pneg %p120
      %p127 = scmp.eq.s32.totalorder %s10, 7
      %p128 = por %p126, %p127
      %p129 = scmp.ne.s32.totalorder %s121, %s124
      %p130 = scmp.eq.s32.totalorder %s10, 0
      %p131 = por %p129, %p130
      %p132 = scmp.ne.s32.totalorder %s121, %s124
      %p133 = scmp.eq.s32.totalorder %s15, 7
      %p134 = por %p132, %p133
      %p135 = scmp.ne.s32.totalorder %s124, %s125
      %p136 = scmp.eq.s32.totalorder %s15, 0
      %p137 = por %p135, %p136
      %p138 = scmp.ne.s32.totalorder %s124, %s125
      %p139 = scmp.eq.s32.totalorder %s16, 7
      %p140 = por %p138, %p139
      %p142 = scmp.ne.s32.totalorder %s125, %s141
      %p143 = scmp.eq.s32.totalorder %s16, 0
      %p144 = por %p142, %p143
      %s145 = ssub.s32 %s17, %s36
      %s146 = ssub.s32 %s18, %s32
      %s147 = sor.u32 %s145, %s146
      %p148 = scmp.eq.s32.totalorder %s147, 0
      %s150 = sadd.s32 %s149, 1
      %s151 = scalar_select %p148, %s149, %s150
      %p154 = pneg %p148
      %p155 = scmp.eq.s32.totalorder %s10, 7
      %p156 = por %p154, %p155
      %p157 = scmp.ne.s32.totalorder %s149, %s152
      %p158 = scmp.eq.s32.totalorder %s10, 0
      %p159 = por %p157, %p158
      %p160 = scmp.ne.s32.totalorder %s149, %s152
      %p161 = scmp.eq.s32.totalorder %s15, 7
      %p162 = por %p160, %p161
      %p163 = scmp.ne.s32.totalorder %s152, %s153
      %p164 = scmp.eq.s32.totalorder %s15, 0
      %p165 = por %p163, %p164
      %p166 = scmp.ne.s32.totalorder %s152, %s153
      %p167 = scmp.eq.s32.totalorder %s16, 7
      %p168 = por %p166, %p167
      %p170 = scmp.ne.s32.totalorder %s153, %s169
      %p171 = scmp.eq.s32.totalorder %s16, 0
      %p172 = por %p170, %p171
      %p173 = scmp.le.s32.totalorder 1, %s10
      %p174 = scmp.lt.s32.totalorder %s10, 9
      %p175 = pnand %p173, %p174
      %p176 = pneg %p175
      // Predicated region
      $region9: #{inception_b_forward.7} parent=5 // pred_check
        _
      $region10: #{inception_b_forward.7} parent=5 // pred_check_branch
        %178 = sbr.rel (%p175) target = $region12
      $region11: #{inception_b_forward.7} parent=5 // pred_region
        %s179 = ssub.s32 %s10, 1
        // Predicated region
        $region13: #{inception_b_forward.7} parent=11 // pred_check
          %p180 = pneg %p111
        $region14: #{inception_b_forward.7} parent=11 // pred_check_branch
          %182 = sbr.rel (%p180) target = $region16
        $region15: #{inception_b_forward.7} parent=11 // pred_region
          %p183 = scmp.lt.s32.totalorder %s21, 0
          %s184 = scalar_select %p183, %s21, 0
          %s185 = scalar_lea.vmem %s2, %s184
        $region16: #{inception_b_forward.7} parent=11 // pred_fallthru
          _
        // Predicated region
        $region17: #{inception_b_forward.7} parent=11 // pred_check
          %p186 = pneg %p137
        $region18: #{inception_b_forward.7} parent=11 // pred_check_branch
          %188 = sbr.rel (%p186) target = $region20
        $region19: #{inception_b_forward.7} parent=11 // pred_region
          %p189 = scmp.lt.s32.totalorder %s21, 0
          %s190 = scalar_select %p189, %s21, 0
          %s191 = scalar_lea.vmem %s3, %s190
        $region20: #{inception_b_forward.7} parent=11 // pred_fallthru
          _
      $region12: #{inception_b_forward.7} parent=5 // pred_fallthru
        _
      %p192 = scmp.lt.s32.totalorder %s10, 8
      // Predicated region
      $region21: #{inception_b_forward.7} parent=5 // pred_check
        %p193 = pneg %p192
      $region22: #{inception_b_forward.7} parent=5 // pred_check_branch
        %195 = sbr.rel (%p193) target = $region24
      $region23: #{inception_b_forward.7} parent=5 // pred_region
        // Predicated region
        $region25: #{inception_b_forward.7} parent=23 // pred_check
          %p196 = pneg %p51
        $region26: #{inception_b_forward.7} parent=23 // pred_check_branch
          %198 = sbr.rel (%p196) target = $region28
        $region27: #{inception_b_forward.7} parent=23 // pred_region
          %s199 = sand.u32 %s41, 1
          %s200 = sand.u32 %s41, 1
          %s201 = smul.addr %s200, 256
          %s202 = scalar_lea.vmem [#allocation3], %s201
          %s203 = smul.u32 16, %s17
          %s204 = smul.u32 4, %s19
          %s205 = smul.addr %s203, 8
          %s206 = sadd.s32 %s204, %s205
          %s207 = smul.addr %s206, 4
          %s208 = scalar_lea.vmem %s0, %s207
          // Predicated region
          $region29: #{inception_b_forward.7} parent=27 // pred_check
            _
          $region30: #{inception_b_forward.7} parent=27 // pred_check_branch
            %210 = sbr.rel (0) target = $region32
          $region31: #{inception_b_forward.7} parent=27 // pred_region
            // Predicated region
            $region33: #{inception_b_forward.7} parent=31 // pred_check
              _
            $region34: #{inception_b_forward.7} parent=31 // pred_check_branch
              %212 = sbr.rel (0) target = $region36
            $region35: #{inception_b_forward.7} parent=31 // pred_region
              loop: start=0, step=1, limit=1
              $region37: #{inception_b_forward.7} parent=35 // loop_pre_header
                _
              $region38: #{inception_b_forward.7} parent=35 // loop_header
                %s214 = sphi 0, %s218
                %p215 = scmp.ge.s32.totalorder %s214, 1
                %s219 = sphi %s208, %s208
                %s220 = sphi %s202, %s202
              $region39: #{inception_b_forward.7} parent=35 // loop_header_branch
                %217 = sbr.rel (%p215) target = $region43
              $region40: #{inception_b_forward.7} parent=35 // loop_body
                %v221 = vld [vmem:[%s219] sm:$0xff]
                %222 = vst [vmem:[%s220] sm:$0xff] %v221
                %v223 = vld [vmem:[%s219 + $0x8] sm:$0xff]
                %224 = vst [vmem:[%s220 + $0x8] sm:$0xff] %v223
                %v225 = vld [vmem:[%s219 + $0x20] sm:$0xff]
                %226 = vst [vmem:[%s220 + $0x10] sm:$0xff] %v225
                %v227 = vld [vmem:[%s219 + $0x28] sm:$0xff]
                %228 = vst [vmem:[%s220 + $0x18] sm:$0xff] %v227
                %v229 = vld [vmem:[%s219 + $0x40] sm:$0xff]
                %230 = vst [vmem:[%s220 + $0x20] sm:$0xff] %v229
                %v231 = vld [vmem:[%s219 + $0x48] sm:$0xff]
                %232 = vst [vmem:[%s220 + $0x28] sm:$0xff] %v231
                %v233 = vld [vmem:[%s219 + $0x60] sm:$0xff]
                %234 = vst [vmem:[%s220 + $0x30] sm:$0xff] %v233
                %v235 = vld [vmem:[%s219 + $0x68] sm:$0xff]
                %236 = vst [vmem:[%s220 + $0x38] sm:$0xff] %v235
                %v237 = vld [vmem:[%s219 + $0x80] sm:$0xff]
                %238 = vst [vmem:[%s220 + $0x40] sm:$0xff] %v237
                %v239 = vld [vmem:[%s219 + $0x88] sm:$0xff]
                %240 = vst [vmem:[%s220 + $0x48] sm:$0xff] %v239
                %v241 = vld [vmem:[%s219 + $0xa0] sm:$0xff]
                %242 = vst [vmem:[%s220 + $0x50] sm:$0xff] %v241
                %v243 = vld [vmem:[%s219 + $0xa8] sm:$0xff]
                %244 = vst [vmem:[%s220 + $0x58] sm:$0xff] %v243
                %v245 = vld [vmem:[%s219 + $0xc0] sm:$0xff]
                %246 = vst [vmem:[%s220 + $0x60] sm:$0xff] %v245
                %v247 = vld [vmem:[%s219 + $0xc8] sm:$0xff]
                %248 = vst [vmem:[%s220 + $0x68] sm:$0xff] %v247
                %v249 = vld [vmem:[%s219 + $0xe0] sm:$0xff]
                %250 = vst [vmem:[%s220 + $0x70] sm:$0xff] %v249
                %v251 = vld [vmem:[%s219 + $0xe8] sm:$0xff]
                %252 = vst [vmem:[%s220 + $0x78] sm:$0xff] %v251
                %v253 = vld [vmem:[%s219 + $0x100] sm:$0xff]
                %254 = vst [vmem:[%s220 + $0x80] sm:$0xff] %v253
                %v255 = vld [vmem:[%s219 + $0x108] sm:$0xff]
                %256 = vst [vmem:[%s220 + $0x88] sm:$0xff] %v255
                %v257 = vld [vmem:[%s219 + $0x120] sm:$0xff]
                %258 = vst [vmem:[%s220 + $0x90] sm:$0xff] %v257
                %v259 = vld [vmem:[%s219 + $0x128] sm:$0xff]
                %260 = vst [vmem:[%s220 + $0x98] sm:$0xff] %v259
                %v261 = vld [vmem:[%s219 + $0x140] sm:$0xff]
                %262 = vst [vmem:[%s220 + $0xa0] sm:$0xff] %v261
                %v263 = vld [vmem:[%s219 + $0x148] sm:$0xff]
                %264 = vst [vmem:[%s220 + $0xa8] sm:$0xff] %v263
                %v265 = vld [vmem:[%s219 + $0x160] sm:$0xff]
                %266 = vst [vmem:[%s220 + $0xb0] sm:$0xff] %v265
                %v267 = vld [vmem:[%s219 + $0x168] sm:$0xff]
                %268 = vst [vmem:[%s220 + $0xb8] sm:$0xff] %v267
                %v269 = vld [vmem:[%s219 + $0x180] sm:$0xff]
                %270 = vst [vmem:[%s220 + $0xc0] sm:$0xff] %v269
                %v271 = vld [vmem:[%s219 + $0x188] sm:$0xff]
                %272 = vst [vmem:[%s220 + $0xc8] sm:$0xff] %v271
                %v273 = vld [vmem:[%s219 + $0x1a0] sm:$0xff]
                %274 = vst [vmem:[%s220 + $0xd0] sm:$0xff] %v273
                %v275 = vld [vmem:[%s219 + $0x1a8] sm:$0xff]
                %276 = vst [vmem:[%s220 + $0xd8] sm:$0xff] %v275
                %v277 = vld [vmem:[%s219 + $0x1c0] sm:$0xff]
                %278 = vst [vmem:[%s220 + $0xe0] sm:$0xff] %v277
                %v279 = vld [vmem:[%s219 + $0x1c8] sm:$0xff]
                %280 = vst [vmem:[%s220 + $0xe8] sm:$0xff] %v279
                %v281 = vld [vmem:[%s219 + $0x1e0] sm:$0xff]
                %282 = vst [vmem:[%s220 + $0xf0] sm:$0xff] %v281
                %v283 = vld [vmem:[%s219 + $0x1e8] sm:$0xff]
                %284 = vst [vmem:[%s220 + $0xf8] sm:$0xff] %v283
              $region41: #{inception_b_forward.7} parent=35 // loop_footer
                %s218 = sadd.s32 1, %s214
              $region42: #{inception_b_forward.7} parent=35 // loop_footer_branch
                %213 = sbr.rel target = $region38
              $region43: #{inception_b_forward.7} parent=35 // loop_exit
                _
            $region36: #{inception_b_forward.7} parent=31 // pred_fallthru
              _
            // Predicated region
            $region44: #{inception_b_forward.7} parent=31 // pred_check
              _
            $region45: #{inception_b_forward.7} parent=31 // pred_check_branch
              %286 = sbr.rel target = $region47
            $region46: #{inception_b_forward.7} parent=31 // pred_region
              _
            $region47: #{inception_b_forward.7} parent=31 // pred_fallthru
              _
          $region32: #{inception_b_forward.7} parent=27 // pred_fallthru
            _
          %287 = vnop
        $region28: #{inception_b_forward.7} parent=23 // pred_fallthru
          _
        // Predicated region
        $region48: #{inception_b_forward.7} parent=23 // pred_check
          %p288 = pneg %p79
        $region49: #{inception_b_forward.7} parent=23 // pred_check_branch
          %290 = sbr.rel (%p288) target = $region51
        $region50: #{inception_b_forward.7} parent=23 // pred_region
          %s291 = smul.u32 64, %s19
          %p292 = scmp.lt.s32.totalorder %s291, 127
          %s293 = scalar_select %p292, %s291, 127
          %p294 = scmp.lt.s32.totalorder %s18, 0
          %s295 = scalar_select %p294, %s18, 0
          %s296 = sadd.s32 %s295, %s293
          %s297 = smul.addr %s296, 4
          %s298 = scalar_lea.vmem %s1, %s297
          %s299 = smul.u32 64, %s19
        $region51: #{inception_b_forward.7} parent=23 // pred_fallthru
          _
      $region24: #{inception_b_forward.7} parent=5 // pred_fallthru
        _
      %p300 = scmp.le.s32.totalorder 1, %s10
      %p301 = scmp.lt.s32.totalorder %s10, 9
      %p302 = pnand %p300, %p301
      %p303 = pneg %p302
      // Predicated region
      $region52: #{inception_b_forward.7} parent=5 // pred_check
        _
      $region53: #{inception_b_forward.7} parent=5 // pred_check_branch
        %305 = sbr.rel (%p302) target = $region55
      $region54: #{inception_b_forward.7} parent=5 // pred_region
        %s306 = ssub.s32 %s10, 1
        %s307 = sand.u32 %s44, 1
        %s308 = sand.u32 %s44, 1
        %s309 = smul.addr %s308, 256
        %s310 = scalar_lea.vmem [#allocation3], %s309
        // Predicated region
        $region56: #{inception_b_forward.7} parent=54 // pred_check
          %p311 = pneg %p57
        $region57: #{inception_b_forward.7} parent=54 // pred_check_branch
          %313 = sbr.rel (%p311) target = $region59
        $region58: #{inception_b_forward.7} parent=54 // pred_region
          _
        $region59: #{inception_b_forward.7} parent=54 // pred_fallthru
          _
        %s314 = sand.u32 %s44, 1
        %s315 = sand.u32 %s44, 1
        %s316 = smul.addr %s315, 256
        %s317 = scalar_lea.vmem [#allocation3], %s316
        %p318 = pneg %p57
        %p319 = pneg %p54
        %s320 = smul.u32 64, %s22
        %p321 = scmp.lt.s32.totalorder %s320, 127
        %s322 = scalar_select %p321, %s320, 127
        %p323 = scmp.lt.s32.totalorder %s21, 0
        %s324 = scalar_select %p323, %s21, 0
        %s325 = sadd.s32 %s324, %s322
        %s326 = smul.addr %s325, 4
        %s327 = scalar_lea.vmem %s1, %s326
        %p328 = pneg %p85
        %p329 = pneg %p82
        %p330 = scmp.lt.s32.totalorder %s21, 0
        %s331 = scalar_select %p330, %s21, 0
        %s332 = scalar_lea.vmem %s2, %s331
        %p333 = pneg %p111
        %p334 = pneg %p108
        %p335 = scmp.lt.s32.totalorder %s21, 0
        %s336 = scalar_select %p335, %s21, 0
        %s337 = scalar_lea.vmem %s3, %s336
        %p338 = pneg %p137
        %p339 = pneg %p134
        %p340 = pneg %p165
        %p341 = pneg %p162
        %s342 = smul.u32 16, %s20
        %p343 = scmp.lt.s32.totalorder %s342, 63
        %s344 = scalar_select %p343, %s342, 63
        %p345 = scmp.lt.s32.totalorder %s21, 0
        %s346 = scalar_select %p345, %s21, 0
        %s347 = sadd.s32 %s346, %s344
        %s348 = smul.addr %s347, 8
        %s349 = scalar_lea.vmem %s4, %s348
        %s350 = smul.u32 16, %s20
        %s351 = smul.u32 4, %s22
        %s352 = smul.u32 64, %s22
        %p353 = scmp.lt.s32.totalorder %s352, 127
        %s354 = scalar_select %p353, %s352, 127
        %p355 = scmp.lt.s32.totalorder %s21, 0
        %s356 = scalar_select %p355, %s21, 0
        %s357 = sadd.s32 %s356, %s354
        %s358 = smul.addr %s357, 4
        %s359 = scalar_lea.vmem %s1, %s358
        %s360 = smul.u32 64, %s22
        %p361 = scmp.lt.s32.totalorder %s21, 0
        %s362 = scalar_select %p361, %s21, 0
        %s363 = scalar_lea.vmem %s2, %s362
        %p364 = scmp.lt.s32.totalorder %s21, 0
        %s365 = scalar_select %p364, %s21, 0
        %s366 = scalar_lea.vmem %s3, %s365
        %s367 = smul.u32 16, %s20
        %p368 = scmp.lt.s32.totalorder %s367, 63
        %s369 = scalar_select %p368, %s367, 63
        %p370 = scmp.lt.s32.totalorder %s21, 0
        %s371 = scalar_select %p370, %s21, 0
        %s372 = sadd.s32 %s371, %s369
        %s373 = smul.addr %s372, 8
        %s374 = scalar_lea.vmem %s4, %s373
        %s375 = smul.u32 16, %s20
        %p376 = scmp.eq.s32.totalorder %s22, 0
        // Predicated region
        $region60: #{inception_b_forward.7} parent=54 // pred_check
          %p377 = pneg %p376
        $region61: #{inception_b_forward.7} parent=54 // pred_check_branch
          %379 = sbr.rel (%p377) target = $region63
        $region62: #{inception_b_forward.7} parent=54 // pred_region
          %380 = vst [vmem:[#allocation2] sm:$0xff] 0.0
          %381 = vst [vmem:[#allocation2 + $0x8] sm:$0xff] 0.0
          %382 = vst [vmem:[#allocation2 + $0x10] sm:$0xff] 0.0
          %383 = vst [vmem:[#allocation2 + $0x18] sm:$0xff] 0.0
          %384 = vst [vmem:[#allocation2 + $0x20] sm:$0xff] 0.0
          %385 = vst [vmem:[#allocation2 + $0x28] sm:$0xff] 0.0
          %386 = vst [vmem:[#allocation2 + $0x30] sm:$0xff] 0.0
          %387 = vst [vmem:[#allocation2 + $0x38] sm:$0xff] 0.0
          %388 = vst [vmem:[#allocation2 + $0x40] sm:$0xff] 0.0
          %389 = vst [vmem:[#allocation2 + $0x48] sm:$0xff] 0.0
          %390 = vst [vmem:[#allocation2 + $0x50] sm:$0xff] 0.0
          %391 = vst [vmem:[#allocation2 + $0x58] sm:$0xff] 0.0
          %392 = vst [vmem:[#allocation2 + $0x60] sm:$0xff] 0.0
          %393 = vst [vmem:[#allocation2 + $0x68] sm:$0xff] 0.0
          %394 = vst [vmem:[#allocation2 + $0x70] sm:$0xff] 0.0
          %395 = vst [vmem:[#allocation2 + $0x78] sm:$0xff] 0.0
        $region63: #{inception_b_forward.7} parent=54 // pred_fallthru
          _
        %v396 = vld [vmem:[#allocation2] sm:$0xff]
        %v397 = vld [vmem:[#allocation2 + $0x8] sm:$0xff]
        %v398 = vld [vmem:[#allocation2 + $0x10] sm:$0xff]
        %v399 = vld [vmem:[#allocation2 + $0x18] sm:$0xff]
        %v400 = vld [vmem:[#allocation2 + $0x20] sm:$0xff]
        %v401 = vld [vmem:[#allocation2 + $0x28] sm:$0xff]
        %v402 = vld [vmem:[#allocation2 + $0x30] sm:$0xff]
        %v403 = vld [vmem:[#allocation2 + $0x38] sm:$0xff]
        %v404 = vld [vmem:[#allocation2 + $0x40] sm:$0xff]
        %v405 = vld [vmem:[#allocation2 + $0x48] sm:$0xff]
        %v406 = vld [vmem:[#allocation2 + $0x50] sm:$0xff]
        %v407 = vld [vmem:[#allocation2 + $0x58] sm:$0xff]
        %v408 = vld [vmem:[#allocation2 + $0x60] sm:$0xff]
        %v409 = vld [vmem:[#allocation2 + $0x68] sm:$0xff]
        %v410 = vld [vmem:[#allocation2 + $0x70] sm:$0xff]
        %v411 = vld [vmem:[#allocation2 + $0x78] sm:$0xff]
        %v412 = vld [vmem:[%s310] sm:$0xff]
        %v413 = vld [vmem:[%s310 + $0x8] sm:$0xff]
        %v414 = vld [vmem:[%s310 + $0x10] sm:$0xff]
        %v415 = vld [vmem:[%s310 + $0x18] sm:$0xff]
        %v416 = vld [vmem:[%s310 + $0x20] sm:$0xff]
        %v417 = vld [vmem:[%s310 + $0x28] sm:$0xff]
        %v418 = vld [vmem:[%s310 + $0x30] sm:$0xff]
        %v419 = vld [vmem:[%s310 + $0x38] sm:$0xff]
        %v420 = vld [vmem:[%s310 + $0x40] sm:$0xff]
        %v421 = vld [vmem:[%s310 + $0x48] sm:$0xff]
        %v422 = vld [vmem:[%s310 + $0x50] sm:$0xff]
        %v423 = vld [vmem:[%s310 + $0x58] sm:$0xff]
        %v424 = vld [vmem:[%s310 + $0x60] sm:$0xff]
        %v425 = vld [vmem:[%s310 + $0x68] sm:$0xff]
        %v426 = vld [vmem:[%s310 + $0x70] sm:$0xff]
        %v427 = vld [vmem:[%s310 + $0x78] sm:$0xff]
        %v428 = vld [vmem:[%s310 + $0x80] sm:$0xff]
        %v429 = vld [vmem:[%s310 + $0x88] sm:$0xff]
        %v430 = vld [vmem:[%s310 + $0x90] sm:$0xff]
        %v431 = vld [vmem:[%s310 + $0x98] sm:$0xff]
        %v432 = vld [vmem:[%s310 + $0xa0] sm:$0xff]
        %v433 = vld [vmem:[%s310 + $0xa8] sm:$0xff]
        %v434 = vld [vmem:[%s310 + $0xb0] sm:$0xff]
        %v435 = vld [vmem:[%s310 + $0xb8] sm:$0xff]
        %v436 = vld [vmem:[%s310 + $0xc0] sm:$0xff]
        %v437 = vld [vmem:[%s310 + $0xc8] sm:$0xff]
        %v438 = vld [vmem:[%s310 + $0xd0] sm:$0xff]
        %v439 = vld [vmem:[%s310 + $0xd8] sm:$0xff]
        %v440 = vld [vmem:[%s310 + $0xe0] sm:$0xff]
        %v441 = vld [vmem:[%s310 + $0xe8] sm:$0xff]
        %v442 = vld [vmem:[%s310 + $0xf0] sm:$0xff]
        %v443 = vld [vmem:[%s310 + $0xf8] sm:$0xff]
        %v444 = vld [vmem:[%s359] sm:$0xf]
        %v445 = vld [vmem:[%s359 + $0x4] sm:$0xf]
        %v446 = vld [vmem:[%s359 + $0x8] sm:$0xf]
        %v447 = vld [vmem:[%s359 + $0xc] sm:$0xf]
        %v448 = vld [vmem:[%s359 + $0x10] sm:$0xf]
        %v449 = vld [vmem:[%s359 + $0x14] sm:$0xf]
        %v450 = vld [vmem:[%s359 + $0x18] sm:$0xf]
        %v451 = vld [vmem:[%s359 + $0x1c] sm:$0xf]
        %v452 = vld [vmem:[%s359 + $0x20] sm:$0xf]
        %v453 = vld [vmem:[%s359 + $0x24] sm:$0xf]
        %v454 = vld [vmem:[%s359 + $0x28] sm:$0xf]
        %v455 = vld [vmem:[%s359 + $0x2c] sm:$0xf]
        %v456 = vld [vmem:[%s359 + $0x30] sm:$0xf]
        %v457 = vld [vmem:[%s359 + $0x34] sm:$0xf]
        %v458 = vld [vmem:[%s359 + $0x38] sm:$0xf]
        %v459 = vld [vmem:[%s359 + $0x3c] sm:$0xf]
        %v460 = vld [vmem:[%s359 + $0x40] sm:$0xf]
        %v461 = vld [vmem:[%s359 + $0x44] sm:$0xf]
        %v462 = vld [vmem:[%s359 + $0x48] sm:$0xf]
        %v463 = vld [vmem:[%s359 + $0x4c] sm:$0xf]
        %v464 = vld [vmem:[%s359 + $0x50] sm:$0xf]
        %v465 = vld [vmem:[%s359 + $0x54] sm:$0xf]
        %v466 = vld [vmem:[%s359 + $0x58] sm:$0xf]
        %v467 = vld [vmem:[%s359 + $0x5c] sm:$0xf]
        %v468 = vld [vmem:[%s359 + $0x60] sm:$0xf]
        %v469 = vld [vmem:[%s359 + $0x64] sm:$0xf]
        %v470 = vld [vmem:[%s359 + $0x68] sm:$0xf]
        %v471 = vld [vmem:[%s359 + $0x6c] sm:$0xf]
        %v472 = vld [vmem:[%s359 + $0x70] sm:$0xf]
        %v473 = vld [vmem:[%s359 + $0x74] sm:$0xf]
        %v474 = vld [vmem:[%s359 + $0x78] sm:$0xf]
        %v475 = vld [vmem:[%s359 + $0x7c] sm:$0xf]
        %v476 = vld [vmem:[%s359 + $0x80] sm:$0xf]
        %v477 = vld [vmem:[%s359 + $0x84] sm:$0xf]
        %v478 = vld [vmem:[%s359 + $0x88] sm:$0xf]
        %v479 = vld [vmem:[%s359 + $0x8c] sm:$0xf]
        %v480 = vld [vmem:[%s359 + $0x90] sm:$0xf]
        %v481 = vld [vmem:[%s359 + $0x94] sm:$0xf]
        %v482 = vld [vmem:[%s359 + $0x98] sm:$0xf]
        %v483 = vld [vmem:[%s359 + $0x9c] sm:$0xf]
        %v484 = vld [vmem:[%s359 + $0xa0] sm:$0xf]
        %v485 = vld [vmem:[%s359 + $0xa4] sm:$0xf]
        %v486 = vld [vmem:[%s359 + $0xa8] sm:$0xf]
        %v487 = vld [vmem:[%s359 + $0xac] sm:$0xf]
        %v488 = vld [vmem:[%s359 + $0xb0] sm:$0xf]
        %v489 = vld [vmem:[%s359 + $0xb4] sm:$0xf]
        %v490 = vld [vmem:[%s359 + $0xb8] sm:$0xf]
        %v491 = vld [vmem:[%s359 + $0xbc] sm:$0xf]
        %v492 = vld [vmem:[%s359 + $0xc0] sm:$0xf]
        %v493 = vld [vmem:[%s359 + $0xc4] sm:$0xf]
        %v494 = vld [vmem:[%s359 + $0xc8] sm:$0xf]
        %v495 = vld [vmem:[%s359 + $0xcc] sm:$0xf]
        %v496 = vld [vmem:[%s359 + $0xd0] sm:$0xf]
        %v497 = vld [vmem:[%s359 + $0xd4] sm:$0xf]
        %v498 = vld [vmem:[%s359 + $0xd8] sm:$0xf]
        %v499 = vld [vmem:[%s359 + $0xdc] sm:$0xf]
        %v500 = vld [vmem:[%s359 + $0xe0] sm:$0xf]
        %v501 = vld [vmem:[%s359 + $0xe4] sm:$0xf]
        %v502 = vld [vmem:[%s359 + $0xe8] sm:$0xf]
        %v503 = vld [vmem:[%s359 + $0xec] sm:$0xf]
        %v504 = vld [vmem:[%s359 + $0xf0] sm:$0xf]
        %v505 = vld [vmem:[%s359 + $0xf4] sm:$0xf]
        %v506 = vld [vmem:[%s359 + $0xf8] sm:$0xf]
        %v507 = vld [vmem:[%s359 + $0xfc] sm:$0xf]
        %v540 = vunpack.c.l.b16 %v412
        %v541 = vunpack.c.h.b16 %v412
        %v542 = vunpack.c.l.b16 %v413
        %v543 = vunpack.c.h.b16 %v413
        %v544 = vunpack.c.l.b16 %v414
        %v545 = vunpack.c.h.b16 %v414
        %v546 = vunpack.c.l.b16 %v415
        %v547 = vunpack.c.h.b16 %v415
        %v548 = vunpack.c.l.b16 %v416
        %v549 = vunpack.c.h.b16 %v416
        %v550 = vunpack.c.l.b16 %v417
        %v551 = vunpack.c.h.b16 %v417
        %v552 = vunpack.c.l.b16 %v418
        %v553 = vunpack.c.h.b16 %v418
        %v554 = vunpack.c.l.b16 %v419
        %v555 = vunpack.c.h.b16 %v419
        %v556 = vunpack.c.l.b16 %v420
        %v557 = vunpack.c.h.b16 %v420
        %v558 = vunpack.c.l.b16 %v421
        %v559 = vunpack.c.h.b16 %v421
        %v560 = vunpack.c.l.b16 %v422
        %v561 = vunpack.c.h.b16 %v422
        %v562 = vunpack.c.l.b16 %v423
        %v563 = vunpack.c.h.b16 %v423
        %v564 = vunpack.c.l.b16 %v424
        %v565 = vunpack.c.h.b16 %v424
        %v566 = vunpack.c.l.b16 %v425
        %v567 = vunpack.c.h.b16 %v425
        %v568 = vunpack.c.l.b16 %v426
        %v569 = vunpack.c.h.b16 %v426
        %v570 = vunpack.c.l.b16 %v427
        %v571 = vunpack.c.h.b16 %v427
        %v572 = vunpack.c.l.b16 %v428
        %v573 = vunpack.c.h.b16 %v428
        %v574 = vunpack.c.l.b16 %v429
        %v575 = vunpack.c.h.b16 %v429
        %v576 = vunpack.c.l.b16 %v430
        %v577 = vunpack.c.h.b16 %v430
        %v578 = vunpack.c.l.b16 %v431
        %v579 = vunpack.c.h.b16 %v431
        %v580 = vunpack.c.l.b16 %v432
        %v581 = vunpack.c.h.b16 %v432
        %v582 = vunpack.c.l.b16 %v433
        %v583 = vunpack.c.h.b16 %v433
        %v584 = vunpack.c.l.b16 %v434
        %v585 = vunpack.c.h.b16 %v434
        %v586 = vunpack.c.l.b16 %v435
        %v587 = vunpack.c.h.b16 %v435
        %v588 = vunpack.c.l.b16 %v436
        %v589 = vunpack.c.h.b16 %v436
        %v590 = vunpack.c.l.b16 %v437
        %v591 = vunpack.c.h.b16 %v437
        %v592 = vunpack.c.l.b16 %v438
        %v593 = vunpack.c.h.b16 %v438
        %v594 = vunpack.c.l.b16 %v439
        %v595 = vunpack.c.h.b16 %v439
        %v596 = vunpack.c.l.b16 %v440
        %v597 = vunpack.c.h.b16 %v440
        %v598 = vunpack.c.l.b16 %v441
        %v599 = vunpack.c.h.b16 %v441
        %v600 = vunpack.c.l.b16 %v442
        %v601 = vunpack.c.h.b16 %v442
        %v602 = vunpack.c.l.b16 %v443
        %v603 = vunpack.c.h.b16 %v443
        %v604 = vpack.c.b16 %v544, %v540
        %v605 = vpack.c.b16 %v545, %v541
        %v606 = vpack.c.b16 %v546, %v542
        %v607 = vpack.c.b16 %v547, %v543
        %v608 = vpack.c.b16 %v552, %v548
        %v609 = vpack.c.b16 %v553, %v549
        %v610 = vpack.c.b16 %v554, %v550
        %v611 = vpack.c.b16 %v555, %v551
        %v612 = vpack.c.b16 %v560, %v556
        %v613 = vpack.c.b16 %v561, %v557
        %v614 = vpack.c.b16 %v562, %v558
        %v615 = vpack.c.b16 %v563, %v559
        %v616 = vpack.c.b16 %v568, %v564
        %v617 = vpack.c.b16 %v569, %v565
        %v618 = vpack.c.b16 %v570, %v566
        %v619 = vpack.c.b16 %v571, %v567
        %v620 = vpack.c.b16 %v576, %v572
        %v621 = vpack.c.b16 %v577, %v573
        %v622 = vpack.c.b16 %v578, %v574
        %v623 = vpack.c.b16 %v579, %v575
        %v624 = vpack.c.b16 %v584, %v580
        %v625 = vpack.c.b16 %v585, %v581
        %v626 = vpack.c.b16 %v586, %v582
        %v627 = vpack.c.b16 %v587, %v583
        %v628 = vpack.c.b16 %v592, %v588
        %v629 = vpack.c.b16 %v593, %v589
        %v630 = vpack.c.b16 %v594, %v590
        %v631 = vpack.c.b16 %v595, %v591
        %v632 = vpack.c.b16 %v600, %v596
        %v633 = vpack.c.b16 %v601, %v597
        %v634 = vpack.c.b16 %v602, %v598
        %v635 = vpack.c.b16 %v603, %v599
        %v732 = vunpack.c.l.b16 %v444
        %v733 = vunpack.c.l.b16 %v445
        %v734 = vunpack.c.l.b16 %v446
        %v735 = vunpack.c.l.b16 %v447
        %v736 = vunpack.c.l.b16 %v448
        %v737 = vunpack.c.l.b16 %v449
        %v738 = vunpack.c.l.b16 %v450
        %v739 = vunpack.c.l.b16 %v451
        %v740 = vunpack.c.l.b16 %v452
        %v741 = vunpack.c.l.b16 %v453
        %v742 = vunpack.c.l.b16 %v454
        %v743 = vunpack.c.l.b16 %v455
        %v744 = vunpack.c.l.b16 %v456
        %v745 = vunpack.c.l.b16 %v457
        %v746 = vunpack.c.l.b16 %v458
        %v747 = vunpack.c.l.b16 %v459
        %v748 = vunpack.c.l.b16 %v460
        %v749 = vunpack.c.l.b16 %v461
        %v750 = vunpack.c.l.b16 %v462
        %v751 = vunpack.c.l.b16 %v463
        %v752 = vunpack.c.l.b16 %v464
        %v753 = vunpack.c.l.b16 %v465
        %v754 = vunpack.c.l.b16 %v466
        %v755 = vunpack.c.l.b16 %v467
        %v756 = vunpack.c.l.b16 %v468
        %v757 = vunpack.c.l.b16 %v469
        %v758 = vunpack.c.l.b16 %v470
        %v759 = vunpack.c.l.b16 %v471
        %v760 = vunpack.c.l.b16 %v472
        %v761 = vunpack.c.l.b16 %v473
        %v762 = vunpack.c.l.b16 %v474
        %v763 = vunpack.c.l.b16 %v475
        %v764 = vunpack.c.l.b16 %v476
        %v765 = vunpack.c.l.b16 %v477
        %v766 = vunpack.c.l.b16 %v478
        %v767 = vunpack.c.l.b16 %v479
        %v768 = vunpack.c.l.b16 %v480
        %v769 = vunpack.c.l.b16 %v481
        %v770 = vunpack.c.l.b16 %v482
        %v771 = vunpack.c.l.b16 %v483
        %v772 = vunpack.c.l.b16 %v484
        %v773 = vunpack.c.l.b16 %v485
        %v774 = vunpack.c.l.b16 %v486
        %v775 = vunpack.c.l.b16 %v487
        %v776 = vunpack.c.l.b16 %v488
        %v777 = vunpack.c.l.b16 %v489
        %v778 = vunpack.c.l.b16 %v490
        %v779 = vunpack.c.l.b16 %v491
        %v780 = vunpack.c.l.b16 %v492
        %v781 = vunpack.c.l.b16 %v493
        %v782 = vunpack.c.l.b16 %v494
        %v783 = vunpack.c.l.b16 %v495
        %v784 = vunpack.c.l.b16 %v496
        %v785 = vunpack.c.l.b16 %v497
        %v786 = vunpack.c.l.b16 %v498
        %v787 = vunpack.c.l.b16 %v499
        %v788 = vunpack.c.l.b16 %v500
        %v789 = vunpack.c.l.b16 %v501
        %v790 = vunpack.c.l.b16 %v502
        %v791 = vunpack.c.l.b16 %v503
        %v792 = vunpack.c.l.b16 %v504
        %v793 = vunpack.c.l.b16 %v505
        %v794 = vunpack.c.l.b16 %v506
        %v795 = vunpack.c.l.b16 %v507
        %v796 = vpack.c.b16 %v733, %v732
        %v797 = vpack.c.b16 %v735, %v734
        %v798 = vpack.c.b16 %v737, %v736
        %v799 = vpack.c.b16 %v739, %v738
        %v800 = vpack.c.b16 %v741, %v740
        %v801 = vpack.c.b16 %v743, %v742
        %v802 = vpack.c.b16 %v745, %v744
        %v803 = vpack.c.b16 %v747, %v746
        %v804 = vpack.c.b16 %v749, %v748
        %v805 = vpack.c.b16 %v751, %v750
        %v806 = vpack.c.b16 %v753, %v752
        %v807 = vpack.c.b16 %v755, %v754
        %v808 = vpack.c.b16 %v757, %v756
        %v809 = vpack.c.b16 %v759, %v758
        %v810 = vpack.c.b16 %v761, %v760
        %v811 = vpack.c.b16 %v763, %v762
        %v812 = vpack.c.b16 %v765, %v764
        %v813 = vpack.c.b16 %v767, %v766
        %v814 = vpack.c.b16 %v769, %v768
        %v815 = vpack.c.b16 %v771, %v770
        %v816 = vpack.c.b16 %v773, %v772
        %v817 = vpack.c.b16 %v775, %v774
        %v818 = vpack.c.b16 %v777, %v776
        %v819 = vpack.c.b16 %v779, %v778
        %v820 = vpack.c.b16 %v781, %v780
        %v821 = vpack.c.b16 %v783, %v782
        %v822 = vpack.c.b16 %v785, %v784
        %v823 = vpack.c.b16 %v787, %v786
        %v824 = vpack.c.b16 %v789, %v788
        %v825 = vpack.c.b16 %v791, %v790
        %v826 = vpack.c.b16 %v793, %v792
        %v827 = vpack.c.b16 %v795, %v794
        %860 = vmatpush.bf16.msra.mxu0 %v803
        %861 = vmatpush.bf16.msra.mxu0 %v802
        %862 = vmatpush.bf16.msra.mxu0 %v801
        %863 = vmatpush.bf16.msra.mxu0 %v800
        %864 = vmatpush.bf16.msra.mxu0 %v799
        %865 = vmatpush.bf16.msra.mxu0 %v798
        %866 = vmatpush.bf16.msra.mxu0 %v797
        %867 = vmatpush.bf16.msra.mxu0 %v796
        %868 = vmatmul.bf16.gmra.mxu0 %v604
        %v869 = vpop.f32.mrf.mxu0
        %v870 = vadd.f32 0.0, %v869
        %v871 = vpop.f32.mrf.mxu0
        %v872 = vadd.f32 0.0, %v871
        %873 = vmatmul.bf16.gmra.mxu0 %v608
        %v874 = vpop.f32.mrf.mxu0
        %v875 = vadd.f32 0.0, %v874
        %v876 = vpop.f32.mrf.mxu0
        %v877 = vadd.f32 0.0, %v876
        %878 = vmatmul.bf16.gmra.mxu0 %v612
        %v879 = vpop.f32.mrf.mxu0
        %v880 = vadd.f32 0.0, %v879
        %v881 = vpop.f32.mrf.mxu0
        %v882 = vadd.f32 0.0, %v881
        %883 = vmatmul.bf16.gmra.mxu0 %v616
        %v884 = vpop.f32.mrf.mxu0
        %v885 = vadd.f32 0.0, %v884
        %v886 = vpop.f32.mrf.mxu0
        %v887 = vadd.f32 0.0, %v886
        %888 = vmatmul.bf16.gmra.mxu0 %v620
        %v889 = vpop.f32.mrf.mxu0
        %v890 = vadd.f32 0.0, %v889
        %v891 = vpop.f32.mrf.mxu0
        %v892 = vadd.f32 0.0, %v891
        %893 = vmatmul.bf16.gmra.mxu0 %v624
        %v894 = vpop.f32.mrf.mxu0
        %v895 = vadd.f32 0.0, %v894
        %v896 = vpop.f32.mrf.mxu0
        %v897 = vadd.f32 0.0, %v896
        %898 = vmatmul.bf16.gmra.mxu0 %v628
        %v899 = vpop.f32.mrf.mxu0
        %v900 = vadd.f32 0.0, %v899
        %v901 = vpop.f32.mrf.mxu0
        %v902 = vadd.f32 0.0, %v901
        %903 = vmatmul.bf16.gmra.mxu0 %v632
        %v904 = vpop.f32.mrf.mxu0
        %v905 = vadd.f32 0.0, %v904
        %v906 = vpop.f32.mrf.mxu0
        %v907 = vadd.f32 0.0, %v906
        %908 = vdwg.mxu0
        %909 = vmatpush.bf16.msra.mxu0 %v811
        %910 = vmatpush.bf16.msra.mxu0 %v810
        %911 = vmatpush.bf16.msra.mxu0 %v809
        %912 = vmatpush.bf16.msra.mxu0 %v808
        %913 = vmatpush.bf16.msra.mxu0 %v807
        %914 = vmatpush.bf16.msra.mxu0 %v806
        %915 = vmatpush.bf16.msra.mxu0 %v805
        %916 = vmatpush.bf16.msra.mxu0 %v804
        %917 = vmatmul.bf16.gmra.mxu0 %v605
        %v918 = vpop.f32.mrf.mxu0
        %v919 = vadd.f32 %v870, %v918
        %v920 = vpop.f32.mrf.mxu0
        %v921 = vadd.f32 %v872, %v920
        %922 = vmatmul.bf16.gmra.mxu0 %v609
        %v923 = vpop.f32.mrf.mxu0
        %v924 = vadd.f32 %v875, %v923
        %v925 = vpop.f32.mrf.mxu0
        %v926 = vadd.f32 %v877, %v925
        %927 = vmatmul.bf16.gmra.mxu0 %v613
        %v928 = vpop.f32.mrf.mxu0
        %v929 = vadd.f32 %v880, %v928
        %v930 = vpop.f32.mrf.mxu0
        %v931 = vadd.f32 %v882, %v930
        %932 = vmatmul.bf16.gmra.mxu0 %v617
        %v933 = vpop.f32.mrf.mxu0
        %v934 = vadd.f32 %v885, %v933
        %v935 = vpop.f32.mrf.mxu0
        %v936 = vadd.f32 %v887, %v935
        %937 = vmatmul.bf16.gmra.mxu0 %v621
        %v938 = vpop.f32.mrf.mxu0
        %v939 = vadd.f32 %v890, %v938
        %v940 = vpop.f32.mrf.mxu0
        %v941 = vadd.f32 %v892, %v940
        %942 = vmatmul.bf16.gmra.mxu0 %v625
        %v943 = vpop.f32.mrf.mxu0
        %v944 = vadd.f32 %v895, %v943
        %v945 = vpop.f32.mrf.mxu0
        %v946 = vadd.f32 %v897, %v945
        %947 = vmatmul.bf16.gmra.mxu0 %v629
        %v948 = vpop.f32.mrf.mxu0
        %v949 = vadd.f32 %v900, %v948
        %v950 = vpop.f32.mrf.mxu0
        %v951 = vadd.f32 %v902, %v950
        %952 = vmatmul.bf16.gmra.mxu0 %v633
        %v953 = vpop.f32.mrf.mxu0
        %v954 = vadd.f32 %v905, %v953
        %v955 = vpop.f32.mrf.mxu0
        %v956 = vadd.f32 %v907, %v955
        %957 = vdwg.mxu0
        %958 = vmatpush.bf16.msra.mxu0 %v819
        %959 = vmatpush.bf16.msra.mxu0 %v818
        %960 = vmatpush.bf16.msra.mxu0 %v817
        %961 = vmatpush.bf16.msra.mxu0 %v816
        %962 = vmatpush.bf16.msra.mxu0 %v815
        %963 = vmatpush.bf16.msra.mxu0 %v814
        %964 = vmatpush.bf16.msra.mxu0 %v813
        %965 = vmatpush.bf16.msra.mxu0 %v812
        %966 = vmatmul.bf16.gmra.mxu0 %v606
        %v967 = vpop.f32.mrf.mxu0
        %v968 = vadd.f32 %v919, %v967
        %v969 = vpop.f32.mrf.mxu0
        %v970 = vadd.f32 %v921, %v969
        %971 = vmatmul.bf16.gmra.mxu0 %v610
        %v972 = vpop.f32.mrf.mxu0
        %v973 = vadd.f32 %v924, %v972
        %v974 = vpop.f32.mrf.mxu0
        %v975 = vadd.f32 %v926, %v974
        %976 = vmatmul.bf16.gmra.mxu0 %v614
        %v977 = vpop.f32.mrf.mxu0
        %v978 = vadd.f32 %v929, %v977
        %v979 = vpop.f32.mrf.mxu0
        %v980 = vadd.f32 %v931, %v979
        %981 = vmatmul.bf16.gmra.mxu0 %v618
        %v982 = vpop.f32.mrf.mxu0
        %v983 = vadd.f32 %v934, %v982
        %v984 = vpop.f32.mrf.mxu0
        %v985 = vadd.f32 %v936, %v984
        %986 = vmatmul.bf16.gmra.mxu0 %v622
        %v987 = vpop.f32.mrf.mxu0
        %v988 = vadd.f32 %v939, %v987
        %v989 = vpop.f32.mrf.mxu0
        %v990 = vadd.f32 %v941, %v989
        %991 = vmatmul.bf16.gmra.mxu0 %v626
        %v992 = vpop.f32.mrf.mxu0
        %v993 = vadd.f32 %v944, %v992
        %v994 = vpop.f32.mrf.mxu0
        %v995 = vadd.f32 %v946, %v994
        %996 = vmatmul.bf16.gmra.mxu0 %v630
        %v997 = vpop.f32.mrf.mxu0
        %v998 = vadd.f32 %v949, %v997
        %v999 = vpop.f32.mrf.mxu0
        %v1000 = vadd.f32 %v951, %v999
        %1001 = vmatmul.bf16.gmra.mxu0 %v634
        %v1002 = vpop.f32.mrf.mxu0
        %v1003 = vadd.f32 %v954, %v1002
        %v1004 = vpop.f32.mrf.mxu0
        %v1005 = vadd.f32 %v956, %v1004
        %1006 = vdwg.mxu0
        %1007 = vmatpush.bf16.msra.mxu0 %v827
        %1008 = vmatpush.bf16.msra.mxu0 %v826
        %1009 = vmatpush.bf16.msra.mxu0 %v825
        %1010 = vmatpush.bf16.msra.mxu0 %v824
        %1011 = vmatpush.bf16.msra.mxu0 %v823
        %1012 = vmatpush.bf16.msra.mxu0 %v822
        %1013 = vmatpush.bf16.msra.mxu0 %v821
        %1014 = vmatpush.bf16.msra.mxu0 %v820
        %1015 = vmatmul.bf16.gmra.mxu0 %v607
        %v1016 = vpop.f32.mrf.mxu0
        %v1017 = vadd.f32 %v968, %v1016
        %v1018 = vpop.f32.mrf.mxu0
        %v1019 = vadd.f32 %v970, %v1018
        %1020 = vmatmul.bf16.gmra.mxu0 %v611
        %v1021 = vpop.f32.mrf.mxu0
        %v1022 = vadd.f32 %v973, %v1021
        %v1023 = vpop.f32.mrf.mxu0
        %v1024 = vadd.f32 %v975, %v1023
        %1025 = vmatmul.bf16.gmra.mxu0 %v615
        %v1026 = vpop.f32.mrf.mxu0
        %v1027 = vadd.f32 %v978, %v1026
        %v1028 = vpop.f32.mrf.mxu0
        %v1029 = vadd.f32 %v980, %v1028
        %1030 = vmatmul.bf16.gmra.mxu0 %v619
        %v1031 = vpop.f32.mrf.mxu0
        %v1032 = vadd.f32 %v983, %v1031
        %v1033 = vpop.f32.mrf.mxu0
        %v1034 = vadd.f32 %v985, %v1033
        %1035 = vmatmul.bf16.gmra.mxu0 %v623
        %v1036 = vpop.f32.mrf.mxu0
        %v1037 = vadd.f32 %v988, %v1036
        %v1038 = vpop.f32.mrf.mxu0
        %v1039 = vadd.f32 %v990, %v1038
        %1040 = vmatmul.bf16.gmra.mxu0 %v627
        %v1041 = vpop.f32.mrf.mxu0
        %v1042 = vadd.f32 %v993, %v1041
        %v1043 = vpop.f32.mrf.mxu0
        %v1044 = vadd.f32 %v995, %v1043
        %1045 = vmatmul.bf16.gmra.mxu0 %v631
        %v1046 = vpop.f32.mrf.mxu0
        %v1047 = vadd.f32 %v998, %v1046
        %v1048 = vpop.f32.mrf.mxu0
        %v1049 = vadd.f32 %v1000, %v1048
        %1050 = vmatmul.bf16.gmra.mxu0 %v635
        %v1051 = vpop.f32.mrf.mxu0
        %v1052 = vadd.f32 %v1003, %v1051
        %v1053 = vpop.f32.mrf.mxu0
        %v1054 = vadd.f32 %v1005, %v1053
        %1055 = vdwg.mxu0
        %v1056 = vadd.f32 %v396, %v1017
        %v1057 = vadd.f32 %v397, %v1019
        %v1058 = vadd.f32 %v398, %v1022
        %v1059 = vadd.f32 %v399, %v1024
        %v1060 = vadd.f32 %v400, %v1027
        %v1061 = vadd.f32 %v401, %v1029
        %v1062 = vadd.f32 %v402, %v1032
        %v1063 = vadd.f32 %v403, %v1034
        %v1064 = vadd.f32 %v404, %v1037
        %v1065 = vadd.f32 %v405, %v1039
        %v1066 = vadd.f32 %v406, %v1042
        %v1067 = vadd.f32 %v407, %v1044
        %v1068 = vadd.f32 %v408, %v1047
        %v1069 = vadd.f32 %v409, %v1049
        %v1070 = vadd.f32 %v410, %v1052
        %v1071 = vadd.f32 %v411, %v1054
        %1072 = vst [vmem:[#allocation2] sm:$0xff] %v1056
        %1073 = vst [vmem:[#allocation2 + $0x8] sm:$0xff] %v1057
        %1074 = vst [vmem:[#allocation2 + $0x10] sm:$0xff] %v1058
        %1075 = vst [vmem:[#allocation2 + $0x18] sm:$0xff] %v1059
        %1076 = vst [vmem:[#allocation2 + $0x20] sm:$0xff] %v1060
        %1077 = vst [vmem:[#allocation2 + $0x28] sm:$0xff] %v1061
        %1078 = vst [vmem:[#allocation2 + $0x30] sm:$0xff] %v1062
        %1079 = vst [vmem:[#allocation2 + $0x38] sm:$0xff] %v1063
        %1080 = vst [vmem:[#allocation2 + $0x40] sm:$0xff] %v1064
        %1081 = vst [vmem:[#allocation2 + $0x48] sm:$0xff] %v1065
        %1082 = vst [vmem:[#allocation2 + $0x50] sm:$0xff] %v1066
        %1083 = vst [vmem:[#allocation2 + $0x58] sm:$0xff] %v1067
        %1084 = vst [vmem:[#allocation2 + $0x60] sm:$0xff] %v1068
        %1085 = vst [vmem:[#allocation2 + $0x68] sm:$0xff] %v1069
        %1086 = vst [vmem:[#allocation2 + $0x70] sm:$0xff] %v1070
        %1087 = vst [vmem:[#allocation2 + $0x78] sm:$0xff] %v1071
        %p1088 = scmp.eq.s32.totalorder %s22, 1
        // Predicated region
        $region64: #{inception_b_forward.7} parent=54 // pred_check
          %p1089 = pneg %p1088
        $region65: #{inception_b_forward.7} parent=54 // pred_check_branch
          %1091 = sbr.rel (%p1089) target = $region67
        $region66: #{inception_b_forward.7} parent=54 // pred_region
          %v1092 = vld [vmem:[#allocation2] sm:$0xff]
          %v1093 = vld [vmem:[#allocation2 + $0x8] sm:$0xff]
          %v1094 = vld [vmem:[#allocation2 + $0x10] sm:$0xff]
          %v1095 = vld [vmem:[#allocation2 + $0x18] sm:$0xff]
          %v1096 = vld [vmem:[#allocation2 + $0x20] sm:$0xff]
          %v1097 = vld [vmem:[#allocation2 + $0x28] sm:$0xff]
          %v1098 = vld [vmem:[#allocation2 + $0x30] sm:$0xff]
          %v1099 = vld [vmem:[#allocation2 + $0x38] sm:$0xff]
          %v1100 = vld [vmem:[#allocation2 + $0x40] sm:$0xff]
          %v1101 = vld [vmem:[#allocation2 + $0x48] sm:$0xff]
          %v1102 = vld [vmem:[#allocation2 + $0x50] sm:$0xff]
          %v1103 = vld [vmem:[#allocation2 + $0x58] sm:$0xff]
          %v1104 = vld [vmem:[#allocation2 + $0x60] sm:$0xff]
          %v1105 = vld [vmem:[#allocation2 + $0x68] sm:$0xff]
          %v1106 = vld [vmem:[#allocation2 + $0x70] sm:$0xff]
          %v1107 = vld [vmem:[#allocation2 + $0x78] sm:$0xff]
          %v1108 = vld [vmem:[%s363] sm:$0x1]
          %v1110 = vperm.slane %v1108, 0
          %v1112 = vmul.f32 %v1092, %v1110
          %v1113 = vmul.f32 %v1093, %v1110
          %v1114 = vmul.f32 %v1094, %v1110
          %v1115 = vmul.f32 %v1095, %v1110
          %v1116 = vmul.f32 %v1096, %v1110
          %v1117 = vmul.f32 %v1097, %v1110
          %v1118 = vmul.f32 %v1098, %v1110
          %v1119 = vmul.f32 %v1099, %v1110
          %v1120 = vmul.f32 %v1100, %v1110
          %v1121 = vmul.f32 %v1101, %v1110
          %v1122 = vmul.f32 %v1102, %v1110
          %v1123 = vmul.f32 %v1103, %v1110
          %v1124 = vmul.f32 %v1104, %v1110
          %v1125 = vmul.f32 %v1105, %v1110
          %v1126 = vmul.f32 %v1106, %v1110
          %v1127 = vmul.f32 %v1107, %v1110
          %v1128 = vld [vmem:[%s366] sm:$0x1]
          %v1130 = vperm.slane %v1128, 0
          %v1132 = vadd.f32 %v1112, %v1130
          %v1133 = vadd.f32 %v1113, %v1130
          %v1134 = vadd.f32 %v1114, %v1130
          %v1135 = vadd.f32 %v1115, %v1130
          %v1136 = vadd.f32 %v1116, %v1130
          %v1137 = vadd.f32 %v1117, %v1130
          %v1138 = vadd.f32 %v1118, %v1130
          %v1139 = vadd.f32 %v1119, %v1130
          %v1140 = vadd.f32 %v1120, %v1130
          %v1141 = vadd.f32 %v1121, %v1130
          %v1142 = vadd.f32 %v1122, %v1130
          %v1143 = vadd.f32 %v1123, %v1130
          %v1144 = vadd.f32 %v1124, %v1130
          %v1145 = vadd.f32 %v1125, %v1130
          %v1146 = vadd.f32 %v1126, %v1130
          %v1147 = vadd.f32 %v1127, %v1130
          %v1148 = vmax.f32 %v1132, 0.0
          %v1149 = vmax.f32 %v1133, 0.0
          %v1150 = vmax.f32 %v1134, 0.0
          %v1151 = vmax.f32 %v1135, 0.0
          %v1152 = vmax.f32 %v1136, 0.0
          %v1153 = vmax.f32 %v1137, 0.0
          %v1154 = vmax.f32 %v1138, 0.0
          %v1155 = vmax.f32 %v1139, 0.0
          %v1156 = vmax.f32 %v1140, 0.0
          %v1157 = vmax.f32 %v1141, 0.0
          %v1158 = vmax.f32 %v1142, 0.0
          %v1159 = vmax.f32 %v1143, 0.0
          %v1160 = vmax.f32 %v1144, 0.0
          %v1161 = vmax.f32 %v1145, 0.0
          %v1162 = vmax.f32 %v1146, 0.0
          %v1163 = vmax.f32 %v1147, 0.0
          %1164 = vst [vmem:[%s374] sm:$0xff] %v1148
          %1165 = vst [vmem:[%s374 + $0x8] sm:$0xff] %v1149
          %1166 = vst [vmem:[%s374 + $0x10] sm:$0xff] %v1150
          %1167 = vst [vmem:[%s374 + $0x18] sm:$0xff] %v1151
          %1168 = vst [vmem:[%s374 + $0x20] sm:$0xff] %v1152
          %1169 = vst [vmem:[%s374 + $0x28] sm:$0xff] %v1153
          %1170 = vst [vmem:[%s374 + $0x30] sm:$0xff] %v1154
          %1171 = vst [vmem:[%s374 + $0x38] sm:$0xff] %v1155
          %1172 = vst [vmem:[%s374 + $0x40] sm:$0xff] %v1156
          %1173 = vst [vmem:[%s374 + $0x48] sm:$0xff] %v1157
          %1174 = vst [vmem:[%s374 + $0x50] sm:$0xff] %v1158
          %1175 = vst [vmem:[%s374 + $0x58] sm:$0xff] %v1159
          %1176 = vst [vmem:[%s374 + $0x60] sm:$0xff] %v1160
          %1177 = vst [vmem:[%s374 + $0x68] sm:$0xff] %v1161
          %1178 = vst [vmem:[%s374 + $0x70] sm:$0xff] %v1162
          %1179 = vst [vmem:[%s374 + $0x78] sm:$0xff] %v1163
        $region67: #{inception_b_forward.7} parent=54 // pred_fallthru
          _
        %s1180 = smul.u32 16, %s20
        %p1181 = scmp.lt.s32.totalorder %s1180, 63
        %s1182 = scalar_select %p1181, %s1180, 63
        %p1183 = scmp.lt.s32.totalorder %s21, 0
        %s1184 = scalar_select %p1183, %s21, 0
        %s1185 = sadd.s32 %s1184, %s1182
        %s1186 = smul.addr %s1185, 8
        %s1187 = scalar_lea.vmem %s4, %s1186
        // Predicated region
        $region68: #{inception_b_forward.7} parent=54 // pred_check
          %p1188 = pneg %p162
        $region69: #{inception_b_forward.7} parent=54 // pred_check_branch
          %1190 = sbr.rel (%p1188) target = $region71
        $region70: #{inception_b_forward.7} parent=54 // pred_region
          %s1191 = smul.u32 16, %s20
        $region71: #{inception_b_forward.7} parent=54 // pred_fallthru
          _
      $region55: #{inception_b_forward.7} parent=5 // pred_fallthru
        _
      %p1192 = scmp.le.s32.totalorder 2, %s10
      // Predicated region
      $region72: #{inception_b_forward.7} parent=5 // pred_check
        %p1193 = pneg %p1192
      $region73: #{inception_b_forward.7} parent=5 // pred_check_branch
        %1195 = sbr.rel (%p1193) target = $region75
      $region74: #{inception_b_forward.7} parent=5 // pred_region
        %s1196 = ssub.s32 %s10, 2
        // Predicated region
        $region76: #{inception_b_forward.7} parent=74 // pred_check
          %p1197 = pneg %p168
        $region77: #{inception_b_forward.7} parent=74 // pred_check_branch
          %1199 = sbr.rel (%p1197) target = $region79
        $region78: #{inception_b_forward.7} parent=74 // pred_region
          %s1200 = smul.u32 16, %s23
          %p1201 = scmp.lt.s32.totalorder %s1200, 63
          %s1202 = scalar_select %p1201, %s1200, 63
          %p1203 = scmp.lt.s32.totalorder %s24, 0
          %s1204 = scalar_select %p1203, %s24, 0
          %s1205 = sadd.s32 %s1204, %s1202
          %s1206 = smul.addr %s1205, 8
          %s1207 = scalar_lea.vmem %s4, %s1206
        $region79: #{inception_b_forward.7} parent=74 // pred_fallthru
          _
      $region75: #{inception_b_forward.7} parent=5 // pred_fallthru
        _
    $region6: #{inception_b_forward.7} parent=1 // loop_footer
      %s14 = sadd.s32 1, %s10
    $region7: #{inception_b_forward.7} parent=1 // loop_footer_branch
      %9 = sbr.rel target = $region3
    $region8: #{inception_b_forward.7} parent=1 // loop_exit
      _

// kernel: inception_b_forward.8
$region0: #{inception_b_forward.8}
  #allocation0 [shape = 'u32[]', space=smem, size = 0x4, offset = 0x4, fixed_abs, tag = 'smem constant byte address 0x4 - core index']
  #allocation1 [shape = 'u32[72,128]{1,0:T(1,128)}', space=vmem, size = 0x9000, scoped, tag = 'internal scratch']
  #allocation2 [shape = 'f32[128,128]{1,0:T(8,128)}', space=vmem, size = 0x10000, scoped, tag = 'scratch operand']
  %s0 = inlined_call_operand.vmem [shape: bf16[128,1024], index: 0, kind: input, shape index: {}]
  %s1 = inlined_call_operand.vmem [shape: bf16[1024,128], index: 1, kind: input, shape index: {}]
  %s2 = inlined_call_operand.vmem [shape: f32[1,128], index: 2, kind: input, shape index: {}]
  %s3 = inlined_call_operand.vmem [shape: f32[1,128], index: 3, kind: input, shape index: {}]
  %s4 = inlined_call_operand.vmem [shape: f32[128,128], index: 4, kind: output, shape index: {}]
  %s5 = sld [smem:[#allocation0]]
  $region80: #{inception_b_forward.8} parent=0
    _
  %s7 = ssub.s32 1, %s5
  %s8 = scalar_select 0, %s7, %s5
  $region1: #{inception_b_forward.8} parent=0
    #allocation3 [shape = 'u8[262144]{0}', space=vmem, size = 0x40000, scoped, tag = 'input window, operand 0']
    loop: start=0, step=1, limit=4
    $region2: #{inception_b_forward.8} parent=1 // loop_pre_header
      _
    $region3: #{inception_b_forward.8} parent=1 // loop_header
      %s10 = sphi 0, %s14
      %p11 = scmp.ge.s32.totalorder %s10, 4
      %s17 = sphi 0, %s36
      %s18 = sphi 0, %s32
      %s19 = sphi 0, %s28
      %s20 = sphi 0, %s17
      %s21 = sphi 0, %s18
      %s22 = sphi 0, %s19
      %s23 = sphi 0, %s20
      %s24 = sphi 0, %s21
      %s25 = sphi 0, %s22
      %s41 = sphi 0, %s43
      %s44 = sphi 0, %s41
      %s45 = sphi 0, %s44
      %s61 = sphi 0, %s45
      %s69 = sphi 0, %s71
      %s72 = sphi 0, %s69
      %s73 = sphi 0, %s72
      %s89 = sphi 0, %s73
      %s95 = sphi 0, %s97
      %s98 = sphi 0, %s95
      %s99 = sphi 0, %s98
      %s115 = sphi 0, %s99
      %s121 = sphi 0, %s123
      %s124 = sphi 0, %s121
      %s125 = sphi 0, %s124
      %s141 = sphi 0, %s125
      %s149 = sphi 0, %s151
      %s152 = sphi 0, %s149
      %s153 = sphi 0, %s152
      %s169 = sphi 0, %s153
    $region4: #{inception_b_forward.8} parent=1 // loop_header_branch
      %13 = sbr.rel (%p11) target = $region8
    $region5: #{inception_b_forward.8} parent=1 // loop_body
      %s15 = ssub.s32 %s10, 1
      %s16 = ssub.s32 %s10, 2
      %s26 = sadd.s32 1, %s19
      %p27 = scmp.ge.s32.totalorder %s26, 2
      %s28 = scalar_select %p27, 0, %s26
      %s29 = sadd.s32 1, %s18
      %s30 = scalar_select %p27, %s29, %s18
      %p31 = scmp.ge.s32.totalorder %s30, 1
      %s32 = scalar_select %p31, 0, %s30
      %s33 = sadd.s32 1, %s17
      %s34 = scalar_select %p31, %s33, %s17
      %p35 = scmp.ge.s32.totalorder %s34, 1
      %s36 = scalar_select %p35, 0, %s34
      %s37 = ssub.s32 %s17, %s36
      %s38 = ssub.s32 %s19, %s28
      %s39 = sor.u32 %s37, %s38
      %p40 = scmp.eq.s32.totalorder %s39, 0
      %s42 = sadd.s32 %s41, 1
      %s43 = scalar_select %p40, %s41, %s42
      %p46 = pneg %p40
      %p47 = scmp.eq.s32.totalorder %s10, 1
      %p48 = por %p46, %p47
      %p49 = scmp.ne.s32.totalorder %s41, %s44
      %p50 = scmp.eq.s32.totalorder %s10, 0
      %p51 = por %p49, %p50
      %p52 = scmp.ne.s32.totalorder %s41, %s44
      %p53 = scmp.eq.s32.totalorder %s15, 1
      %p54 = por %p52, %p53
      %p55 = scmp.ne.s32.totalorder %s44, %s45
      %p56 = scmp.eq.s32.totalorder %s15, 0
      %p57 = por %p55, %p56
      %p58 = scmp.ne.s32.totalorder %s44, %s45
      %p59 = scmp.eq.s32.totalorder %s16, 1
      %p60 = por %p58, %p59
      %p62 = scmp.ne.s32.totalorder %s45, %s61
      %p63 = scmp.eq.s32.totalorder %s16, 0
      %p64 = por %p62, %p63
      %s65 = ssub.s32 %s19, %s28
      %s66 = ssub.s32 %s18, %s32
      %s67 = sor.u32 %s65, %s66
      %p68 = scmp.eq.s32.totalorder %s67, 0
      %s70 = sadd.s32 %s69, 1
      %s71 = scalar_select %p68, %s69, %s70
      %p74 = pneg %p68
      %p75 = scmp.eq.s32.totalorder %s10, 1
      %p76 = por %p74, %p75
      %p77 = scmp.ne.s32.totalorder %s69, %s72
      %p78 = scmp.eq.s32.totalorder %s10, 0
      %p79 = por %p77, %p78
      %p80 = scmp.ne.s32.totalorder %s69, %s72
      %p81 = scmp.eq.s32.totalorder %s15, 1
      %p82 = por %p80, %p81
      %p83 = scmp.ne.s32.totalorder %s72, %s73
      %p84 = scmp.eq.s32.totalorder %s15, 0
      %p85 = por %p83, %p84
      %p86 = scmp.ne.s32.totalorder %s72, %s73
      %p87 = scmp.eq.s32.totalorder %s16, 1
      %p88 = por %p86, %p87
      %p90 = scmp.ne.s32.totalorder %s73, %s89
      %p91 = scmp.eq.s32.totalorder %s16, 0
      %p92 = por %p90, %p91
      %s93 = ssub.s32 %s18, %s32
      %p94 = scmp.eq.s32.totalorder %s93, 0
      %s96 = sadd.s32 %s95, 1
      %s97 = scalar_select %p94, %s95, %s96
      %p100 = pneg %p94
      %p101 = scmp.eq.s32.totalorder %s10, 1
      %p102 = por %p100, %p101
      %p103 = scmp.ne.s32.totalorder %s95, %s98
      %p104 = scmp.eq.s32.totalorder %s10, 0
      %p105 = por %p103, %p104
      %p106 = scmp.ne.s32.totalorder %s95, %s98
      %p107 = scmp.eq.s32.totalorder %s15, 1
      %p108 = por %p106, %p107
      %p109 = scmp.ne.s32.totalorder %s98, %s99
      %p110 = scmp.eq.s32.totalorder %s15, 0
      %p111 = por %p109, %p110
      %p112 = scmp.ne.s32.totalorder %s98, %s99
      %p113 = scmp.eq.s32.totalorder %s16, 1
      %p114 = por %p112, %p113
      %p116 = scmp.ne.s32.totalorder %s99, %s115
      %p117 = scmp.eq.s32.totalorder %s16, 0
      %p118 = por %p116, %p117
      %s119 = ssub.s32 %s18, %s32
      %p120 = scmp.eq.s32.totalorder %s119, 0
      %s122 = sadd.s32 %s121, 1
      %s123 = scalar_select %p120, %s121, %s122
      %p126 = pneg %p120
      %p127 = scmp.eq.s32.totalorder %s10, 1
      %p128 = por %p126, %p127
      %p129 = scmp.ne.s32.totalorder %s121, %s124
      %p130 = scmp.eq.s32.totalorder %s10, 0
      %p131 = por %p129, %p130
      %p132 = scmp.ne.s32.totalorder %s121, %s124
      %p133 = scmp.eq.s32.totalorder %s15, 1
      %p134 = por %p132, %p133
      %p135 = scmp.ne.s32.totalorder %s124, %s125
      %p136 = scmp.eq.s32.totalorder %s15, 0
      %p137 = por %p135, %p136
      %p138 = scmp.ne.s32.totalorder %s124, %s125
      %p139 = scmp.eq.s32.totalorder %s16, 1
      %p140 = por %p138, %p139
      %p142 = scmp.ne.s32.totalorder %s125, %s141
      %p143 = scmp.eq.s32.totalorder %s16, 0
      %p144 = por %p142, %p143
      %s145 = ssub.s32 %s17, %s36
      %s146 = ssub.s32 %s18, %s32
      %s147 = sor.u32 %s145, %s146
      %p148 = scmp.eq.s32.totalorder %s147, 0
      %s150 = sadd.s32 %s149, 1
      %s151 = scalar_select %p148, %s149, %s150
      %p154 = pneg %p148
      %p155 = scmp.eq.s32.totalorder %s10, 1
      %p156 = por %p154, %p155
      %p157 = scmp.ne.s32.totalorder %s149, %s152
      %p158 = scmp.eq.s32.totalorder %s10, 0
      %p159 = por %p157, %p158
      %p160 = scmp.ne.s32.totalorder %s149, %s152
      %p161 = scmp.eq.s32.totalorder %s15, 1
      %p162 = por %p160, %p161
      %p163 = scmp.ne.s32.totalorder %s152, %s153
      %p164 = scmp.eq.s32.totalorder %s15, 0
      %p165 = por %p163, %p164
      %p166 = scmp.ne.s32.totalorder %s152, %s153
      %p167 = scmp.eq.s32.totalorder %s16, 1
      %p168 = por %p166, %p167
      %p170 = scmp.ne.s32.totalorder %s153, %s169
      %p171 = scmp.eq.s32.totalorder %s16, 0
      %p172 = por %p170, %p171
      %p173 = scmp.le.s32.totalorder 1, %s10
      %p174 = scmp.lt.s32.totalorder %s10, 3
      %p175 = pnand %p173, %p174
      %p176 = pneg %p175
      // Predicated region
      $region9: #{inception_b_forward.8} parent=5 // pred_check
        _
      $region10: #{inception_b_forward.8} parent=5 // pred_check_branch
        %178 = sbr.rel (%p175) target = $region12
      $region11: #{inception_b_forward.8} parent=5 // pred_region
        %s179 = ssub.s32 %s10, 1
        // Predicated region
        $region13: #{inception_b_forward.8} parent=11 // pred_check
          %p180 = pneg %p111
        $region14: #{inception_b_forward.8} parent=11 // pred_check_branch
          %182 = sbr.rel (%p180) target = $region16
        $region15: #{inception_b_forward.8} parent=11 // pred_region
          %p183 = scmp.lt.s32.totalorder %s21, 0
          %s184 = scalar_select %p183, %s21, 0
          %s185 = scalar_lea.vmem %s2, %s184
        $region16: #{inception_b_forward.8} parent=11 // pred_fallthru
          _
        // Predicated region
        $region17: #{inception_b_forward.8} parent=11 // pred_check
          %p186 = pneg %p137
        $region18: #{inception_b_forward.8} parent=11 // pred_check_branch
          %188 = sbr.rel (%p186) target = $region20
        $region19: #{inception_b_forward.8} parent=11 // pred_region
          %p189 = scmp.lt.s32.totalorder %s21, 0
          %s190 = scalar_select %p189, %s21, 0
          %s191 = scalar_lea.vmem %s3, %s190
        $region20: #{inception_b_forward.8} parent=11 // pred_fallthru
          _
      $region12: #{inception_b_forward.8} parent=5 // pred_fallthru
        _
      %p192 = scmp.lt.s32.totalorder %s10, 2
      // Predicated region
      $region21: #{inception_b_forward.8} parent=5 // pred_check
        %p193 = pneg %p192
      $region22: #{inception_b_forward.8} parent=5 // pred_check_branch
        %195 = sbr.rel (%p193) target = $region24
      $region23: #{inception_b_forward.8} parent=5 // pred_region
        // Predicated region
        $region25: #{inception_b_forward.8} parent=23 // pred_check
          %p196 = pneg %p51
        $region26: #{inception_b_forward.8} parent=23 // pred_check_branch
          %198 = sbr.rel (%p196) target = $region28
        $region27: #{inception_b_forward.8} parent=23 // pred_region
          %s199 = sand.u32 %s41, 1
          %s200 = sand.u32 %s41, 1
          %s201 = smul.addr %s200, 256
          %s202 = scalar_lea.vmem [#allocation3], %s201
          %s203 = smul.u32 16, %s17
          %s204 = smul.u32 4, %s19
          %s205 = smul.addr %s203, 8
          %s206 = sadd.s32 %s204, %s205
          %s207 = smul.addr %s206, 4
          %s208 = scalar_lea.vmem %s0, %s207
          // Predicated region
          $region29: #{inception_b_forward.8} parent=27 // pred_check
            _
          $region30: #{inception_b_forward.8} parent=27 // pred_check_branch
            %210 = sbr.rel (0) target = $region32
          $region31: #{inception_b_forward.8} parent=27 // pred_region
            // Predicated region
            $region33: #{inception_b_forward.8} parent=31 // pred_check
              _
            $region34: #{inception_b_forward.8} parent=31 // pred_check_branch
              %212 = sbr.rel (0) target = $region36
            $region35: #{inception_b_forward.8} parent=31 // pred_region
              loop: start=0, step=1, limit=1
              $region37: #{inception_b_forward.8} parent=35 // loop_pre_header
                _
              $region38: #{inception_b_forward.8} parent=35 // loop_header
                %s214 = sphi 0, %s218
                %p215 = scmp.ge.s32.totalorder %s214, 1
                %s219 = sphi %s208, %s208
                %s220 = sphi %s202, %s202
              $region39: #{inception_b_forward.8} parent=35 // loop_header_branch
                %217 = sbr.rel (%p215) target = $region43
              $region40: #{inception_b_forward.8} parent=35 // loop_body
                %v221 = vld [vmem:[%s219] sm:$0xff]
                %222 = vst [vmem:[%s220] sm:$0xff] %v221
                %v223 = vld [vmem:[%s219 + $0x8] sm:$0xff]
                %224 = vst [vmem:[%s220 + $0x8] sm:$0xff] %v223
                %v225 = vld [vmem:[%s219 + $0x20] sm:$0xff]
                %226 = vst [vmem:[%s220 + $0x10] sm:$0xff] %v225
                %v227 = vld [vmem:[%s219 + $0x28] sm:$0xff]
                %228 = vst [vmem:[%s220 + $0x18] sm:$0xff] %v227
                %v229 = vld [vmem:[%s219 + $0x40] sm:$0xff]
                %230 = vst [vmem:[%s220 + $0x20] sm:$0xff] %v229
                %v231 = vld [vmem:[%s219 + $0x48] sm:$0xff]
                %232 = vst [vmem:[%s220 + $0x28] sm:$0xff] %v231
                %v233 = vld [vmem:[%s219 + $0x60] sm:$0xff]
                %234 = vst [vmem:[%s220 + $0x30] sm:$0xff] %v233
                %v235 = vld [vmem:[%s219 + $0x68] sm:$0xff]
                %236 = vst [vmem:[%s220 + $0x38] sm:$0xff] %v235
                %v237 = vld [vmem:[%s219 + $0x80] sm:$0xff]
                %238 = vst [vmem:[%s220 + $0x40] sm:$0xff] %v237
                %v239 = vld [vmem:[%s219 + $0x88] sm:$0xff]
                %240 = vst [vmem:[%s220 + $0x48] sm:$0xff] %v239
                %v241 = vld [vmem:[%s219 + $0xa0] sm:$0xff]
                %242 = vst [vmem:[%s220 + $0x50] sm:$0xff] %v241
                %v243 = vld [vmem:[%s219 + $0xa8] sm:$0xff]
                %244 = vst [vmem:[%s220 + $0x58] sm:$0xff] %v243
                %v245 = vld [vmem:[%s219 + $0xc0] sm:$0xff]
                %246 = vst [vmem:[%s220 + $0x60] sm:$0xff] %v245
                %v247 = vld [vmem:[%s219 + $0xc8] sm:$0xff]
                %248 = vst [vmem:[%s220 + $0x68] sm:$0xff] %v247
                %v249 = vld [vmem:[%s219 + $0xe0] sm:$0xff]
                %250 = vst [vmem:[%s220 + $0x70] sm:$0xff] %v249
                %v251 = vld [vmem:[%s219 + $0xe8] sm:$0xff]
                %252 = vst [vmem:[%s220 + $0x78] sm:$0xff] %v251
                %v253 = vld [vmem:[%s219 + $0x100] sm:$0xff]
                %254 = vst [vmem:[%s220 + $0x80] sm:$0xff] %v253
                %v255 = vld [vmem:[%s219 + $0x108] sm:$0xff]
                %256 = vst [vmem:[%s220 + $0x88] sm:$0xff] %v255
                %v257 = vld [vmem:[%s219 + $0x120] sm:$0xff]
                %258 = vst [vmem:[%s220 + $0x90] sm:$0xff] %v257
                %v259 = vld [vmem:[%s219 + $0x128] sm:$0xff]
                %260 = vst [vmem:[%s220 + $0x98] sm:$0xff] %v259
                %v261 = vld [vmem:[%s219 + $0x140] sm:$0xff]
                %262 = vst [vmem:[%s220 + $0xa0] sm:$0xff] %v261
                %v263 = vld [vmem:[%s219 + $0x148] sm:$0xff]
                %264 = vst [vmem:[%s220 + $0xa8] sm:$0xff] %v263
                %v265 = vld [vmem:[%s219 + $0x160] sm:$0xff]
                %266 = vst [vmem:[%s220 + $0xb0] sm:$0xff] %v265
                %v267 = vld [vmem:[%s219 + $0x168] sm:$0xff]
                %268 = vst [vmem:[%s220 + $0xb8] sm:$0xff] %v267
                %v269 = vld [vmem:[%s219 + $0x180] sm:$0xff]
                %270 = vst [vmem:[%s220 + $0xc0] sm:$0xff] %v269
                %v271 = vld [vmem:[%s219 + $0x188] sm:$0xff]
                %272 = vst [vmem:[%s220 + $0xc8] sm:$0xff] %v271
                %v273 = vld [vmem:[%s219 + $0x1a0] sm:$0xff]
                %274 = vst [vmem:[%s220 + $0xd0] sm:$0xff] %v273
                %v275 = vld [vmem:[%s219 + $0x1a8] sm:$0xff]
                %276 = vst [vmem:[%s220 + $0xd8] sm:$0xff] %v275
                %v277 = vld [vmem:[%s219 + $0x1c0] sm:$0xff]
                %278 = vst [vmem:[%s220 + $0xe0] sm:$0xff] %v277
                %v279 = vld [vmem:[%s219 + $0x1c8] sm:$0xff]
                %280 = vst [vmem:[%s220 + $0xe8] sm:$0xff] %v279
                %v281 = vld [vmem:[%s219 + $0x1e0] sm:$0xff]
                %282 = vst [vmem:[%s220 + $0xf0] sm:$0xff] %v281
                %v283 = vld [vmem:[%s219 + $0x1e8] sm:$0xff]
                %284 = vst [vmem:[%s220 + $0xf8] sm:$0xff] %v283
              $region41: #{inception_b_forward.8} parent=35 // loop_footer
                %s218 = sadd.s32 1, %s214
              $region42: #{inception_b_forward.8} parent=35 // loop_footer_branch
                %213 = sbr.rel target = $region38
              $region43: #{inception_b_forward.8} parent=35 // loop_exit
                _
            $region36: #{inception_b_forward.8} parent=31 // pred_fallthru
              _
            // Predicated region
            $region44: #{inception_b_forward.8} parent=31 // pred_check
              _
            $region45: #{inception_b_forward.8} parent=31 // pred_check_branch
              %286 = sbr.rel target = $region47
            $region46: #{inception_b_forward.8} parent=31 // pred_region
              _
            $region47: #{inception_b_forward.8} parent=31 // pred_fallthru
              _
          $region32: #{inception_b_forward.8} parent=27 // pred_fallthru
            _
          %287 = vnop
        $region28: #{inception_b_forward.8} parent=23 // pred_fallthru
          _
        // Predicated region
        $region48: #{inception_b_forward.8} parent=23 // pred_check
          %p288 = pneg %p79
        $region49: #{inception_b_forward.8} parent=23 // pred_check_branch
          %290 = sbr.rel (%p288) target = $region51
        $region50: #{inception_b_forward.8} parent=23 // pred_region
          %s291 = smul.u32 64, %s19
          %p292 = scmp.lt.s32.totalorder %s291, 127
          %s293 = scalar_select %p292, %s291, 127
          %p294 = scmp.lt.s32.totalorder %s18, 0
          %s295 = scalar_select %p294, %s18, 0
          %s296 = sadd.s32 %s295, %s293
          %s297 = smul.addr %s296, 4
          %s298 = scalar_lea.vmem %s1, %s297
          %s299 = smul.u32 64, %s19
        $region51: #{inception_b_forward.8} parent=23 // pred_fallthru
          _
      $region24: #{inception_b_forward.8} parent=5 // pred_fallthru
        _
      %p300 = scmp.le.s32.totalorder 1, %s10
      %p301 = scmp.lt.s32.totalorder %s10, 3
      %p302 = pnand %p300, %p301
      %p303 = pneg %p302
      // Predicated region
      $region52: #{inception_b_forward.8} parent=5 // pred_check
        _
      $region53: #{inception_b_forward.8} parent=5 // pred_check_branch
        %305 = sbr.rel (%p302) target = $region55
      $region54: #{inception_b_forward.8} parent=5 // pred_region
        %s306 = ssub.s32 %s10, 1
        %s307 = sand.u32 %s44, 1
        %s308 = sand.u32 %s44, 1
        %s309 = smul.addr %s308, 256
        %s310 = scalar_lea.vmem [#allocation3], %s309
        // Predicated region
        $region56: #{inception_b_forward.8} parent=54 // pred_check
          %p311 = pneg %p57
        $region57: #{inception_b_forward.8} parent=54 // pred_check_branch
          %313 = sbr.rel (%p311) target = $region59
        $region58: #{inception_b_forward.8} parent=54 // pred_region
          _
        $region59: #{inception_b_forward.8} parent=54 // pred_fallthru
          _
        %s314 = sand.u32 %s44, 1
        %s315 = sand.u32 %s44, 1
        %s316 = smul.addr %s315, 256
        %s317 = scalar_lea.vmem [#allocation3], %s316
        %p318 = pneg %p57
        %p319 = pneg %p54
        %s320 = smul.u32 64, %s22
        %p321 = scmp.lt.s32.totalorder %s320, 127
        %s322 = scalar_select %p321, %s320, 127
        %p323 = scmp.lt.s32.totalorder %s21, 0
        %s324 = scalar_select %p323, %s21, 0
        %s325 = sadd.s32 %s324, %s322
        %s326 = smul.addr %s325, 4
        %s327 = scalar_lea.vmem %s1, %s326
        %p328 = pneg %p85
        %p329 = pneg %p82
        %p330 = scmp.lt.s32.totalorder %s21, 0
        %s331 = scalar_select %p330, %s21, 0
        %s332 = scalar_lea.vmem %s2, %s331
        %p333 = pneg %p111
        %p334 = pneg %p108
        %p335 = scmp.lt.s32.totalorder %s21, 0
        %s336 = scalar_select %p335, %s21, 0
        %s337 = scalar_lea.vmem %s3, %s336
        %p338 = pneg %p137
        %p339 = pneg %p134
        %p340 = pneg %p165
        %p341 = pneg %p162
        %s342 = smul.u32 16, %s20
        %p343 = scmp.lt.s32.totalorder %s342, 15
        %s344 = scalar_select %p343, %s342, 15
        %p345 = scmp.lt.s32.totalorder %s21, 0
        %s346 = scalar_select %p345, %s21, 0
        %s347 = sadd.s32 %s346, %s344
        %s348 = smul.addr %s347, 8
        %s349 = scalar_lea.vmem %s4, %s348
        %s350 = smul.u32 16, %s20
        %s351 = smul.u32 4, %s22
        %s352 = smul.u32 64, %s22
        %p353 = scmp.lt.s32.totalorder %s352, 127
        %s354 = scalar_select %p353, %s352, 127
        %p355 = scmp.lt.s32.totalorder %s21, 0
        %s356 = scalar_select %p355, %s21, 0
        %s357 = sadd.s32 %s356, %s354
        %s358 = smul.addr %s357, 4
        %s359 = scalar_lea.vmem %s1, %s358
        %s360 = smul.u32 64, %s22
        %p361 = scmp.lt.s32.totalorder %s21, 0
        %s362 = scalar_select %p361, %s21, 0
        %s363 = scalar_lea.vmem %s2, %s362
        %p364 = scmp.lt.s32.totalorder %s21, 0
        %s365 = scalar_select %p364, %s21, 0
        %s366 = scalar_lea.vmem %s3, %s365
        %s367 = smul.u32 16, %s20
        %p368 = scmp.lt.s32.totalorder %s367, 15
        %s369 = scalar_select %p368, %s367, 15
        %p370 = scmp.lt.s32.totalorder %s21, 0
        %s371 = scalar_select %p370, %s21, 0
        %s372 = sadd.s32 %s371, %s369
        %s373 = smul.addr %s372, 8
        %s374 = scalar_lea.vmem %s4, %s373
        %s375 = smul.u32 16, %s20
        %p376 = scmp.eq.s32.totalorder %s22, 0
        // Predicated region
        $region60: #{inception_b_forward.8} parent=54 // pred_check
          %p377 = pneg %p376
        $region61: #{inception_b_forward.8} parent=54 // pred_check_branch
          %379 = sbr.rel (%p377) target = $region63
        $region62: #{inception_b_forward.8} parent=54 // pred_region
          %380 = vst [vmem:[#allocation2] sm:$0xff] 0.0
          %381 = vst [vmem:[#allocation2 + $0x8] sm:$0xff] 0.0
          %382 = vst [vmem:[#allocation2 + $0x10] sm:$0xff] 0.0
          %383 = vst [vmem:[#allocation2 + $0x18] sm:$0xff] 0.0
          %384 = vst [vmem:[#allocation2 + $0x20] sm:$0xff] 0.0
          %385 = vst [vmem:[#allocation2 + $0x28] sm:$0xff] 0.0
          %386 = vst [vmem:[#allocation2 + $0x30] sm:$0xff] 0.0
          %387 = vst [vmem:[#allocation2 + $0x38] sm:$0xff] 0.0
          %388 = vst [vmem:[#allocation2 + $0x40] sm:$0xff] 0.0
          %389 = vst [vmem:[#allocation2 + $0x48] sm:$0xff] 0.0
          %390 = vst [vmem:[#allocation2 + $0x50] sm:$0xff] 0.0
          %391 = vst [vmem:[#allocation2 + $0x58] sm:$0xff] 0.0
          %392 = vst [vmem:[#allocation2 + $0x60] sm:$0xff] 0.0
          %393 = vst [vmem:[#allocation2 + $0x68] sm:$0xff] 0.0
          %394 = vst [vmem:[#allocation2 + $0x70] sm:$0xff] 0.0
          %395 = vst [vmem:[#allocation2 + $0x78] sm:$0xff] 0.0
        $region63: #{inception_b_forward.8} parent=54 // pred_fallthru
          _
        %v396 = vld [vmem:[#allocation2] sm:$0xff]
        %v397 = vld [vmem:[#allocation2 + $0x8] sm:$0xff]
        %v398 = vld [vmem:[#allocation2 + $0x10] sm:$0xff]
        %v399 = vld [vmem:[#allocation2 + $0x18] sm:$0xff]
        %v400 = vld [vmem:[#allocation2 + $0x20] sm:$0xff]
        %v401 = vld [vmem:[#allocation2 + $0x28] sm:$0xff]
        %v402 = vld [vmem:[#allocation2 + $0x30] sm:$0xff]
        %v403 = vld [vmem:[#allocation2 + $0x38] sm:$0xff]
        %v404 = vld [vmem:[#allocation2 + $0x40] sm:$0xff]
        %v405 = vld [vmem:[#allocation2 + $0x48] sm:$0xff]
        %v406 = vld [vmem:[#allocation2 + $0x50] sm:$0xff]
        %v407 = vld [vmem:[#allocation2 + $0x58] sm:$0xff]
        %v408 = vld [vmem:[#allocation2 + $0x60] sm:$0xff]
        %v409 = vld [vmem:[#allocation2 + $0x68] sm:$0xff]
        %v410 = vld [vmem:[#allocation2 + $0x70] sm:$0xff]
        %v411 = vld [vmem:[#allocation2 + $0x78] sm:$0xff]
        %v412 = vld [vmem:[%s310] sm:$0xff]
        %v413 = vld [vmem:[%s310 + $0x8] sm:$0xff]
        %v414 = vld [vmem:[%s310 + $0x10] sm:$0xff]
        %v415 = vld [vmem:[%s310 + $0x18] sm:$0xff]
        %v416 = vld [vmem:[%s310 + $0x20] sm:$0xff]
        %v417 = vld [vmem:[%s310 + $0x28] sm:$0xff]
        %v418 = vld [vmem:[%s310 + $0x30] sm:$0xff]
        %v419 = vld [vmem:[%s310 + $0x38] sm:$0xff]
        %v420 = vld [vmem:[%s310 + $0x40] sm:$0xff]
        %v421 = vld [vmem:[%s310 + $0x48] sm:$0xff]
        %v422 = vld [vmem:[%s310 + $0x50] sm:$0xff]
        %v423 = vld [vmem:[%s310 + $0x58] sm:$0xff]
        %v424 = vld [vmem:[%s310 + $0x60] sm:$0xff]
        %v425 = vld [vmem:[%s310 + $0x68] sm:$0xff]
        %v426 = vld [vmem:[%s310 + $0x70] sm:$0xff]
        %v427 = vld [vmem:[%s310 + $0x78] sm:$0xff]
        %v428 = vld [vmem:[%s310 + $0x80] sm:$0xff]
        %v429 = vld [vmem:[%s310 + $0x88] sm:$0xff]
        %v430 = vld [vmem:[%s310 + $0x90] sm:$0xff]
        %v431 = vld [vmem:[%s310 + $0x98] sm:$0xff]
        %v432 = vld [vmem:[%s310 + $0xa0] sm:$0xff]
        %v433 = vld [vmem:[%s310 + $0xa8] sm:$0xff]
        %v434 = vld [vmem:[%s310 + $0xb0] sm:$0xff]
        %v435 = vld [vmem:[%s310 + $0xb8] sm:$0xff]
        %v436 = vld [vmem:[%s310 + $0xc0] sm:$0xff]
        %v437 = vld [vmem:[%s310 + $0xc8] sm:$0xff]
        %v438 = vld [vmem:[%s310 + $0xd0] sm:$0xff]
        %v439 = vld [vmem:[%s310 + $0xd8] sm:$0xff]
        %v440 = vld [vmem:[%s310 + $0xe0] sm:$0xff]
        %v441 = vld [vmem:[%s310 + $0xe8] sm:$0xff]
        %v442 = vld [vmem:[%s310 + $0xf0] sm:$0xff]
        %v443 = vld [vmem:[%s310 + $0xf8] sm:$0xff]
        %v444 = vld [vmem:[%s359] sm:$0xf]
        %v445 = vld [vmem:[%s359 + $0x4] sm:$0xf]
        %v446 = vld [vmem:[%s359 + $0x8] sm:$0xf]
        %v447 = vld [vmem:[%s359 + $0xc] sm:$0xf]
        %v448 = vld [vmem:[%s359 + $0x10] sm:$0xf]
        %v449 = vld [vmem:[%s359 + $0x14] sm:$0xf]
        %v450 = vld [vmem:[%s359 + $0x18] sm:$0xf]
        %v451 = vld [vmem:[%s359 + $0x1c] sm:$0xf]
        %v452 = vld [vmem:[%s359 + $0x20] sm:$0xf]
        %v453 = vld [vmem:[%s359 + $0x24] sm:$0xf]
        %v454 = vld [vmem:[%s359 + $0x28] sm:$0xf]
        %v455 = vld [vmem:[%s359 + $0x2c] sm:$0xf]
        %v456 = vld [vmem:[%s359 + $0x30] sm:$0xf]
        %v457 = vld [vmem:[%s359 + $0x34] sm:$0xf]
        %v458 = vld [vmem:[%s359 + $0x38] sm:$0xf]
        %v459 = vld [vmem:[%s359 + $0x3c] sm:$0xf]
        %v460 = vld [vmem:[%s359 + $0x40] sm:$0xf]
        %v461 = vld [vmem:[%s359 + $0x44] sm:$0xf]
        %v462 = vld [vmem:[%s359 + $0x48] sm:$0xf]
        %v463 = vld [vmem:[%s359 + $0x4c] sm:$0xf]
        %v464 = vld [vmem:[%s359 + $0x50] sm:$0xf]
        %v465 = vld [vmem:[%s359 + $0x54] sm:$0xf]
        %v466 = vld [vmem:[%s359 + $0x58] sm:$0xf]
        %v467 = vld [vmem:[%s359 + $0x5c] sm:$0xf]
        %v468 = vld [vmem:[%s359 + $0x60] sm:$0xf]
        %v469 = vld [vmem:[%s359 + $0x64] sm:$0xf]
        %v470 = vld [vmem:[%s359 + $0x68] sm:$0xf]
        %v471 = vld [vmem:[%s359 + $0x6c] sm:$0xf]
        %v472 = vld [vmem:[%s359 + $0x70] sm:$0xf]
        %v473 = vld [vmem:[%s359 + $0x74] sm:$0xf]
        %v474 = vld [vmem:[%s359 + $0x78] sm:$0xf]
        %v475 = vld [vmem:[%s359 + $0x7c] sm:$0xf]
        %v476 = vld [vmem:[%s359 + $0x80] sm:$0xf]
        %v477 = vld [vmem:[%s359 + $0x84] sm:$0xf]
        %v478 = vld [vmem:[%s359 + $0x88] sm:$0xf]
        %v479 = vld [vmem:[%s359 + $0x8c] sm:$0xf]
        %v480 = vld [vmem:[%s359 + $0x90] sm:$0xf]
        %v481 = vld [vmem:[%s359 + $0x94] sm:$0xf]
        %v482 = vld [vmem:[%s359 + $0x98] sm:$0xf]
        %v483 = vld [vmem:[%s359 + $0x9c] sm:$0xf]
        %v484 = vld [vmem:[%s359 + $0xa0] sm:$0xf]
        %v485 = vld [vmem:[%s359 + $0xa4] sm:$0xf]
        %v486 = vld [vmem:[%s359 + $0xa8] sm:$0xf]
        %v487 = vld [vmem:[%s359 + $0xac] sm:$0xf]
        %v488 = vld [vmem:[%s359 + $0xb0] sm:$0xf]
        %v489 = vld [vmem:[%s359 + $0xb4] sm:$0xf]
        %v490 = vld [vmem:[%s359 + $0xb8] sm:$0xf]
        %v491 = vld [vmem:[%s359 + $0xbc] sm:$0xf]
        %v492 = vld [vmem:[%s359 + $0xc0] sm:$0xf]
        %v493 = vld [vmem:[%s359 + $0xc4] sm:$0xf]
        %v494 = vld [vmem:[%s359 + $0xc8] sm:$0xf]
        %v495 = vld [vmem:[%s359 + $0xcc] sm:$0xf]
        %v496 = vld [vmem:[%s359 + $0xd0] sm:$0xf]
        %v497 = vld [vmem:[%s359 + $0xd4] sm:$0xf]
        %v498 = vld [vmem:[%s359 + $0xd8] sm:$0xf]
        %v499 = vld [vmem:[%s359 + $0xdc] sm:$0xf]
        %v500 = vld [vmem:[%s359 + $0xe0] sm:$0xf]
        %v501 = vld [vmem:[%s359 + $0xe4] sm:$0xf]
        %v502 = vld [vmem:[%s359 + $0xe8] sm:$0xf]
        %v503 = vld [vmem:[%s359 + $0xec] sm:$0xf]
        %v504 = vld [vmem:[%s359 + $0xf0] sm:$0xf]
        %v505 = vld [vmem:[%s359 + $0xf4] sm:$0xf]
        %v506 = vld [vmem:[%s359 + $0xf8] sm:$0xf]
        %v507 = vld [vmem:[%s359 + $0xfc] sm:$0xf]
        %v540 = vunpack.c.l.b16 %v412
        %v541 = vunpack.c.h.b16 %v412
        %v542 = vunpack.c.l.b16 %v413
        %v543 = vunpack.c.h.b16 %v413
        %v544 = vunpack.c.l.b16 %v414
        %v545 = vunpack.c.h.b16 %v414
        %v546 = vunpack.c.l.b16 %v415
        %v547 = vunpack.c.h.b16 %v415
        %v548 = vunpack.c.l.b16 %v416
        %v549 = vunpack.c.h.b16 %v416
        %v550 = vunpack.c.l.b16 %v417
        %v551 = vunpack.c.h.b16 %v417
        %v552 = vunpack.c.l.b16 %v418
        %v553 = vunpack.c.h.b16 %v418
        %v554 = vunpack.c.l.b16 %v419
        %v555 = vunpack.c.h.b16 %v419
        %v556 = vunpack.c.l.b16 %v420
        %v557 = vunpack.c.h.b16 %v420
        %v558 = vunpack.c.l.b16 %v421
        %v559 = vunpack.c.h.b16 %v421
        %v560 = vunpack.c.l.b16 %v422
        %v561 = vunpack.c.h.b16 %v422
        %v562 = vunpack.c.l.b16 %v423
        %v563 = vunpack.c.h.b16 %v423
        %v564 = vunpack.c.l.b16 %v424
        %v565 = vunpack.c.h.b16 %v424
        %v566 = vunpack.c.l.b16 %v425
        %v567 = vunpack.c.h.b16 %v425
        %v568 = vunpack.c.l.b16 %v426
        %v569 = vunpack.c.h.b16 %v426
        %v570 = vunpack.c.l.b16 %v427
        %v571 = vunpack.c.h.b16 %v427
        %v572 = vunpack.c.l.b16 %v428
        %v573 = vunpack.c.h.b16 %v428
        %v574 = vunpack.c.l.b16 %v429
        %v575 = vunpack.c.h.b16 %v429
        %v576 = vunpack.c.l.b16 %v430
        %v577 = vunpack.c.h.b16 %v430
        %v578 = vunpack.c.l.b16 %v431
        %v579 = vunpack.c.h.b16 %v431
        %v580 = vunpack.c.l.b16 %v432
        %v581 = vunpack.c.h.b16 %v432
        %v582 = vunpack.c.l.b16 %v433
        %v583 = vunpack.c.h.b16 %v433
        %v584 = vunpack.c.l.b16 %v434
        %v585 = vunpack.c.h.b16 %v434
        %v586 = vunpack.c.l.b16 %v435
        %v587 = vunpack.c.h.b16 %v435
        %v588 = vunpack.c.l.b16 %v436
        %v589 = vunpack.c.h.b16 %v436
        %v590 = vunpack.c.l.b16 %v437
        %v591 = vunpack.c.h.b16 %v437
        %v592 = vunpack.c.l.b16 %v438
        %v593 = vunpack.c.h.b16 %v438
        %v594 = vunpack.c.l.b16 %v439
        %v595 = vunpack.c.h.b16 %v439
        %v596 = vunpack.c.l.b16 %v440
        %v597 = vunpack.c.h.b16 %v440
        %v598 = vunpack.c.l.b16 %v441
        %v599 = vunpack.c.h.b16 %v441
        %v600 = vunpack.c.l.b16 %v442
        %v601 = vunpack.c.h.b16 %v442
        %v602 = vunpack.c.l.b16 %v443
        %v603 = vunpack.c.h.b16 %v443
        %v604 = vpack.c.b16 %v544, %v540
        %v605 = vpack.c.b16 %v545, %v541
        %v606 = vpack.c.b16 %v546, %v542
        %v607 = vpack.c.b16 %v547, %v543
        %v608 = vpack.c.b16 %v552, %v548
        %v609 = vpack.c.b16 %v553, %v549
        %v610 = vpack.c.b16 %v554, %v550
        %v611 = vpack.c.b16 %v555, %v551
        %v612 = vpack.c.b16 %v560, %v556
        %v613 = vpack.c.b16 %v561, %v557
        %v614 = vpack.c.b16 %v562, %v558
        %v615 = vpack.c.b16 %v563, %v559
        %v616 = vpack.c.b16 %v568, %v564
        %v617 = vpack.c.b16 %v569, %v565
        %v618 = vpack.c.b16 %v570, %v566
        %v619 = vpack.c.b16 %v571, %v567
        %v620 = vpack.c.b16 %v576, %v572
        %v621 = vpack.c.b16 %v577, %v573
        %v622 = vpack.c.b16 %v578, %v574
        %v623 = vpack.c.b16 %v579, %v575
        %v624 = vpack.c.b16 %v584, %v580
        %v625 = vpack.c.b16 %v585, %v581
        %v626 = vpack.c.b16 %v586, %v582
        %v627 = vpack.c.b16 %v587, %v583
        %v628 = vpack.c.b16 %v592, %v588
        %v629 = vpack.c.b16 %v593, %v589
        %v630 = vpack.c.b16 %v594, %v590
        %v631 = vpack.c.b16 %v595, %v591
        %v632 = vpack.c.b16 %v600, %v596
        %v633 = vpack.c.b16 %v601, %v597
        %v634 = vpack.c.b16 %v602, %v598
        %v635 = vpack.c.b16 %v603, %v599
        %v732 = vunpack.c.l.b16 %v444
        %v733 = vunpack.c.l.b16 %v445
        %v734 = vunpack.c.l.b16 %v446
        %v735 = vunpack.c.l.b16 %v447
        %v736 = vunpack.c.l.b16 %v448
        %v737 = vunpack.c.l.b16 %v449
        %v738 = vunpack.c.l.b16 %v450
        %v739 = vunpack.c.l.b16 %v451
        %v740 = vunpack.c.l.b16 %v452
        %v741 = vunpack.c.l.b16 %v453
        %v742 = vunpack.c.l.b16 %v454
        %v743 = vunpack.c.l.b16 %v455
        %v744 = vunpack.c.l.b16 %v456
        %v745 = vunpack.c.l.b16 %v457
        %v746 = vunpack.c.l.b16 %v458
        %v747 = vunpack.c.l.b16 %v459
        %v748 = vunpack.c.l.b16 %v460
        %v749 = vunpack.c.l.b16 %v461
        %v750 = vunpack.c.l.b16 %v462
        %v751 = vunpack.c.l.b16 %v463
        %v752 = vunpack.c.l.b16 %v464
        %v753 = vunpack.c.l.b16 %v465
        %v754 = vunpack.c.l.b16 %v466
        %v755 = vunpack.c.l.b16 %v467
        %v756 = vunpack.c.l.b16 %v468
        %v757 = vunpack.c.l.b16 %v469
        %v758 = vunpack.c.l.b16 %v470
        %v759 = vunpack.c.l.b16 %v471
        %v760 = vunpack.c.l.b16 %v472
        %v761 = vunpack.c.l.b16 %v473
        %v762 = vunpack.c.l.b16 %v474
        %v763 = vunpack.c.l.b16 %v475
        %v764 = vunpack.c.l.b16 %v476
        %v765 = vunpack.c.l.b16 %v477
        %v766 = vunpack.c.l.b16 %v478
        %v767 = vunpack.c.l.b16 %v479
        %v768 = vunpack.c.l.b16 %v480
        %v769 = vunpack.c.l.b16 %v481
        %v770 = vunpack.c.l.b16 %v482
        %v771 = vunpack.c.l.b16 %v483
        %v772 = vunpack.c.l.b16 %v484
        %v773 = vunpack.c.l.b16 %v485
        %v774 = vunpack.c.l.b16 %v486
        %v775 = vunpack.c.l.b16 %v487
        %v776 = vunpack.c.l.b16 %v488
        %v777 = vunpack.c.l.b16 %v489
        %v778 = vunpack.c.l.b16 %v490
        %v779 = vunpack.c.l.b16 %v491
        %v780 = vunpack.c.l.b16 %v492
        %v781 = vunpack.c.l.b16 %v493
        %v782 = vunpack.c.l.b16 %v494
        %v783 = vunpack.c.l.b16 %v495
        %v784 = vunpack.c.l.b16 %v496
        %v785 = vunpack.c.l.b16 %v497
        %v786 = vunpack.c.l.b16 %v498
        %v787 = vunpack.c.l.b16 %v499
        %v788 = vunpack.c.l.b16 %v500
        %v789 = vunpack.c.l.b16 %v501
        %v790 = vunpack.c.l.b16 %v502
        %v791 = vunpack.c.l.b16 %v503
        %v792 = vunpack.c.l.b16 %v504
        %v793 = vunpack.c.l.b16 %v505
        %v794 = vunpack.c.l.b16 %v506
        %v795 = vunpack.c.l.b16 %v507
        %v796 = vpack.c.b16 %v733, %v732
        %v797 = vpack.c.b16 %v735, %v734
        %v798 = vpack.c.b16 %v737, %v736
        %v799 = vpack.c.b16 %v739, %v738
        %v800 = vpack.c.b16 %v741, %v740
        %v801 = vpack.c.b16 %v743, %v742
        %v802 = vpack.c.b16 %v745, %v744
        %v803 = vpack.c.b16 %v747, %v746
        %v804 = vpack.c.b16 %v749, %v748
        %v805 = vpack.c.b16 %v751, %v750
        %v806 = vpack.c.b16 %v753, %v752
        %v807 = vpack.c.b16 %v755, %v754
        %v808 = vpack.c.b16 %v757, %v756
        %v809 = vpack.c.b16 %v759, %v758
        %v810 = vpack.c.b16 %v761, %v760
        %v811 = vpack.c.b16 %v763, %v762
        %v812 = vpack.c.b16 %v765, %v764
        %v813 = vpack.c.b16 %v767, %v766
        %v814 = vpack.c.b16 %v769, %v768
        %v815 = vpack.c.b16 %v771, %v770
        %v816 = vpack.c.b16 %v773, %v772
        %v817 = vpack.c.b16 %v775, %v774
        %v818 = vpack.c.b16 %v777, %v776
        %v819 = vpack.c.b16 %v779, %v778
        %v820 = vpack.c.b16 %v781, %v780
        %v821 = vpack.c.b16 %v783, %v782
        %v822 = vpack.c.b16 %v785, %v784
        %v823 = vpack.c.b16 %v787, %v786
        %v824 = vpack.c.b16 %v789, %v788
        %v825 = vpack.c.b16 %v791, %v790
        %v826 = vpack.c.b16 %v793, %v792
        %v827 = vpack.c.b16 %v795, %v794
        %860 = vmatpush.bf16.msra.mxu0 %v803
        %861 = vmatpush.bf16.msra.mxu0 %v802
        %862 = vmatpush.bf16.msra.mxu0 %v801
        %863 = vmatpush.bf16.msra.mxu0 %v800
        %864 = vmatpush.bf16.msra.mxu0 %v799
        %865 = vmatpush.bf16.msra.mxu0 %v798
        %866 = vmatpush.bf16.msra.mxu0 %v797
        %867 = vmatpush.bf16.msra.mxu0 %v796
        %868 = vmatmul.bf16.gmra.mxu0 %v604
        %v869 = vpop.f32.mrf.mxu0
        %v870 = vadd.f32 0.0, %v869
        %v871 = vpop.f32.mrf.mxu0
        %v872 = vadd.f32 0.0, %v871
        %873 = vmatmul.bf16.gmra.mxu0 %v608
        %v874 = vpop.f32.mrf.mxu0
        %v875 = vadd.f32 0.0, %v874
        %v876 = vpop.f32.mrf.mxu0
        %v877 = vadd.f32 0.0, %v876
        %878 = vmatmul.bf16.gmra.mxu0 %v612
        %v879 = vpop.f32.mrf.mxu0
        %v880 = vadd.f32 0.0, %v879
        %v881 = vpop.f32.mrf.mxu0
        %v882 = vadd.f32 0.0, %v881
        %883 = vmatmul.bf16.gmra.mxu0 %v616
        %v884 = vpop.f32.mrf.mxu0
        %v885 = vadd.f32 0.0, %v884
        %v886 = vpop.f32.mrf.mxu0
        %v887 = vadd.f32 0.0, %v886
        %888 = vmatmul.bf16.gmra.mxu0 %v620
        %v889 = vpop.f32.mrf.mxu0
        %v890 = vadd.f32 0.0, %v889
        %v891 = vpop.f32.mrf.mxu0
        %v892 = vadd.f32 0.0, %v891
        %893 = vmatmul.bf16.gmra.mxu0 %v624
        %v894 = vpop.f32.mrf.mxu0
        %v895 = vadd.f32 0.0, %v894
        %v896 = vpop.f32.mrf.mxu0
        %v897 = vadd.f32 0.0, %v896
        %898 = vmatmul.bf16.gmra.mxu0 %v628
        %v899 = vpop.f32.mrf.mxu0
        %v900 = vadd.f32 0.0, %v899
        %v901 = vpop.f32.mrf.mxu0
        %v902 = vadd.f32 0.0, %v901
        %903 = vmatmul.bf16.gmra.mxu0 %v632
        %v904 = vpop.f32.mrf.mxu0
        %v905 = vadd.f32 0.0, %v904
        %v906 = vpop.f32.mrf.mxu0
        %v907 = vadd.f32 0.0, %v906
        %908 = vdwg.mxu0
        %909 = vmatpush.bf16.msra.mxu0 %v811
        %910 = vmatpush.bf16.msra.mxu0 %v810
        %911 = vmatpush.bf16.msra.mxu0 %v809
        %912 = vmatpush.bf16.msra.mxu0 %v808
        %913 = vmatpush.bf16.msra.mxu0 %v807
        %914 = vmatpush.bf16.msra.mxu0 %v806
        %915 = vmatpush.bf16.msra.mxu0 %v805
        %916 = vmatpush.bf16.msra.mxu0 %v804
        %917 = vmatmul.bf16.gmra.mxu0 %v605
        %v918 = vpop.f32.mrf.mxu0
        %v919 = vadd.f32 %v870, %v918
        %v920 = vpop.f32.mrf.mxu0
        %v921 = vadd.f32 %v872, %v920
        %922 = vmatmul.bf16.gmra.mxu0 %v609
        %v923 = vpop.f32.mrf.mxu0
        %v924 = vadd.f32 %v875, %v923
        %v925 = vpop.f32.mrf.mxu0
        %v926 = vadd.f32 %v877, %v925
        %927 = vmatmul.bf16.gmra.mxu0 %v613
        %v928 = vpop.f32.mrf.mxu0
        %v929 = vadd.f32 %v880, %v928
        %v930 = vpop.f32.mrf.mxu0
        %v931 = vadd.f32 %v882, %v930
        %932 = vmatmul.bf16.gmra.mxu0 %v617
        %v933 = vpop.f32.mrf.mxu0
        %v934 = vadd.f32 %v885, %v933
        %v935 = vpop.f32.mrf.mxu0
        %v936 = vadd.f32 %v887, %v935
        %937 = vmatmul.bf16.gmra.mxu0 %v621
        %v938 = vpop.f32.mrf.mxu0
        %v939 = vadd.f32 %v890, %v938
        %v940 = vpop.f32.mrf.mxu0
        %v941 = vadd.f32 %v892, %v940
        %942 = vmatmul.bf16.gmra.mxu0 %v625
        %v943 = vpop.f32.mrf.mxu0
        %v944 = vadd.f32 %v895, %v943
        %v945 = vpop.f32.mrf.mxu0
        %v946 = vadd.f32 %v897, %v945
        %947 = vmatmul.bf16.gmra.mxu0 %v629
        %v948 = vpop.f32.mrf.mxu0
        %v949 = vadd.f32 %v900, %v948
        %v950 = vpop.f32.mrf.mxu0
        %v951 = vadd.f32 %v902, %v950
        %952 = vmatmul.bf16.gmra.mxu0 %v633
        %v953 = vpop.f32.mrf.mxu0
        %v954 = vadd.f32 %v905, %v953
        %v955 = vpop.f32.mrf.mxu0
        %v956 = vadd.f32 %v907, %v955
        %957 = vdwg.mxu0
        %958 = vmatpush.bf16.msra.mxu0 %v819
        %959 = vmatpush.bf16.msra.mxu0 %v818
        %960 = vmatpush.bf16.msra.mxu0 %v817
        %961 = vmatpush.bf16.msra.mxu0 %v816
        %962 = vmatpush.bf16.msra.mxu0 %v815
        %963 = vmatpush.bf16.msra.mxu0 %v814
        %964 = vmatpush.bf16.msra.mxu0 %v813
        %965 = vmatpush.bf16.msra.mxu0 %v812
        %966 = vmatmul.bf16.gmra.mxu0 %v606
        %v967 = vpop.f32.mrf.mxu0
        %v968 = vadd.f32 %v919, %v967
        %v969 = vpop.f32.mrf.mxu0
        %v970 = vadd.f32 %v921, %v969
        %971 = vmatmul.bf16.gmra.mxu0 %v610
        %v972 = vpop.f32.mrf.mxu0
        %v973 = vadd.f32 %v924, %v972
        %v974 = vpop.f32.mrf.mxu0
        %v975 = vadd.f32 %v926, %v974
        %976 = vmatmul.bf16.gmra.mxu0 %v614
        %v977 = vpop.f32.mrf.mxu0
        %v978 = vadd.f32 %v929, %v977
        %v979 = vpop.f32.mrf.mxu0
        %v980 = vadd.f32 %v931, %v979
        %981 = vmatmul.bf16.gmra.mxu0 %v618
        %v982 = vpop.f32.mrf.mxu0
        %v983 = vadd.f32 %v934, %v982
        %v984 = vpop.f32.mrf.mxu0
        %v985 = vadd.f32 %v936, %v984
        %986 = vmatmul.bf16.gmra.mxu0 %v622
        %v987 = vpop.f32.mrf.mxu0
        %v988 = vadd.f32 %v939, %v987
        %v989 = vpop.f32.mrf.mxu0
        %v990 = vadd.f32 %v941, %v989
        %991 = vmatmul.bf16.gmra.mxu0 %v626
        %v992 = vpop.f32.mrf.mxu0
        %v993 = vadd.f32 %v944, %v992
        %v994 = vpop.f32.mrf.mxu0
        %v995 = vadd.f32 %v946, %v994
        %996 = vmatmul.bf16.gmra.mxu0 %v630
        %v997 = vpop.f32.mrf.mxu0
        %v998 = vadd.f32 %v949, %v997
        %v999 = vpop.f32.mrf.mxu0
        %v1000 = vadd.f32 %v951, %v999
        %1001 = vmatmul.bf16.gmra.mxu0 %v634
        %v1002 = vpop.f32.mrf.mxu0
        %v1003 = vadd.f32 %v954, %v1002
        %v1004 = vpop.f32.mrf.mxu0
        %v1005 = vadd.f32 %v956, %v1004
        %1006 = vdwg.mxu0
        %1007 = vmatpush.bf16.msra.mxu0 %v827
        %1008 = vmatpush.bf16.msra.mxu0 %v826
        %1009 = vmatpush.bf16.msra.mxu0 %v825
        %1010 = vmatpush.bf16.msra.mxu0 %v824
        %1011 = vmatpush.bf16.msra.mxu0 %v823
        %1012 = vmatpush.bf16.msra.mxu0 %v822
        %1013 = vmatpush.bf16.msra.mxu0 %v821
        %1014 = vmatpush.bf16.msra.mxu0 %v820
        %1015 = vmatmul.bf16.gmra.mxu0 %v607
        %v1016 = vpop.f32.mrf.mxu0
        %v1017 = vadd.f32 %v968, %v1016
        %v1018 = vpop.f32.mrf.mxu0
        %v1019 = vadd.f32 %v970, %v1018
        %1020 = vmatmul.bf16.gmra.mxu0 %v611
        %v1021 = vpop.f32.mrf.mxu0
        %v1022 = vadd.f32 %v973, %v1021
        %v1023 = vpop.f32.mrf.mxu0
        %v1024 = vadd.f32 %v975, %v1023
        %1025 = vmatmul.bf16.gmra.mxu0 %v615
        %v1026 = vpop.f32.mrf.mxu0
        %v1027 = vadd.f32 %v978, %v1026
        %v1028 = vpop.f32.mrf.mxu0
        %v1029 = vadd.f32 %v980, %v1028
        %1030 = vmatmul.bf16.gmra.mxu0 %v619
        %v1031 = vpop.f32.mrf.mxu0
        %v1032 = vadd.f32 %v983, %v1031
        %v1033 = vpop.f32.mrf.mxu0
        %v1034 = vadd.f32 %v985, %v1033
        %1035 = vmatmul.bf16.gmra.mxu0 %v623
        %v1036 = vpop.f32.mrf.mxu0
        %v1037 = vadd.f32 %v988, %v1036
        %v1038 = vpop.f32.mrf.mxu0
        %v1039 = vadd.f32 %v990, %v1038
        %1040 = vmatmul.bf16.gmra.mxu0 %v627
        %v1041 = vpop.f32.mrf.mxu0
        %v1042 = vadd.f32 %v993, %v1041
        %v1043 = vpop.f32.mrf.mxu0
        %v1044 = vadd.f32 %v995, %v1043
        %1045 = vmatmul.bf16.gmra.mxu0 %v631
        %v1046 = vpop.f32.mrf.mxu0
        %v1047 = vadd.f32 %v998, %v1046
        %v1048 = vpop.f32.mrf.mxu0
        %v1049 = vadd.f32 %v1000, %v1048
        %1050 = vmatmul.bf16.gmra.mxu0 %v635
        %v1051 = vpop.f32.mrf.mxu0
        %v1052 = vadd.f32 %v1003, %v1051
        %v1053 = vpop.f32.mrf.mxu0
        %v1054 = vadd.f32 %v1005, %v1053
        %1055 = vdwg.mxu0
        %v1056 = vadd.f32 %v396, %v1017
        %v1057 = vadd.f32 %v397, %v1019
        %v1058 = vadd.f32 %v398, %v1022
        %v1059 = vadd.f32 %v399, %v1024
        %v1060 = vadd.f32 %v400, %v1027
        %v1061 = vadd.f32 %v401, %v1029
        %v1062 = vadd.f32 %v402, %v1032
        %v1063 = vadd.f32 %v403, %v1034
        %v1064 = vadd.f32 %v404, %v1037
        %v1065 = vadd.f32 %v405, %v1039
        %v1066 = vadd.f32 %v406, %v1042
        %v1067 = vadd.f32 %v407, %v1044
        %v1068 = vadd.f32 %v408, %v1047
        %v1069 = vadd.f32 %v409, %v1049
        %v1070 = vadd.f32 %v410, %v1052
        %v1071 = vadd.f32 %v411, %v1054
        %1072 = vst [vmem:[#allocation2] sm:$0xff] %v1056
        %1073 = vst [vmem:[#allocation2 + $0x8] sm:$0xff] %v1057
        %1074 = vst [vmem:[#allocation2 + $0x10] sm:$0xff] %v1058
        %1075 = vst [vmem:[#allocation2 + $0x18] sm:$0xff] %v1059
        %1076 = vst [vmem:[#allocation2 + $0x20] sm:$0xff] %v1060
        %1077 = vst [vmem:[#allocation2 + $0x28] sm:$0xff] %v1061
        %1078 = vst [vmem:[#allocation2 + $0x30] sm:$0xff] %v1062
        %1079 = vst [vmem:[#allocation2 + $0x38] sm:$0xff] %v1063
        %1080 = vst [vmem:[#allocation2 + $0x40] sm:$0xff] %v1064
        %1081 = vst [vmem:[#allocation2 + $0x48] sm:$0xff] %v1065
        %1082 = vst [vmem:[#allocation2 + $0x50] sm:$0xff] %v1066
        %1083 = vst [vmem:[#allocation2 + $0x58] sm:$0xff] %v1067
        %1084 = vst [vmem:[#allocation2 + $0x60] sm:$0xff] %v1068
        %1085 = vst [vmem:[#allocation2 + $0x68] sm:$0xff] %v1069
        %1086 = vst [vmem:[#allocation2 + $0x70] sm:$0xff] %v1070
        %1087 = vst [vmem:[#allocation2 + $0x78] sm:$0xff] %v1071
        %p1088 = scmp.eq.s32.totalorder %s22, 1
        // Predicated region
        $region64: #{inception_b_forward.8} parent=54 // pred_check
          %p1089 = pneg %p1088
        $region65: #{inception_b_forward.8} parent=54 // pred_check_branch
          %1091 = sbr.rel (%p1089) target = $region67
        $region66: #{inception_b_forward.8} parent=54 // pred_region
          %v1092 = vld [vmem:[#allocation2] sm:$0xff]
          %v1093 = vld [vmem:[#allocation2 + $0x8] sm:$0xff]
          %v1094 = vld [vmem:[#allocation2 + $0x10] sm:$0xff]
          %v1095 = vld [vmem:[#allocation2 + $0x18] sm:$0xff]
          %v1096 = vld [vmem:[#allocation2 + $0x20] sm:$0xff]
          %v1097 = vld [vmem:[#allocation2 + $0x28] sm:$0xff]
          %v1098 = vld [vmem:[#allocation2 + $0x30] sm:$0xff]
          %v1099 = vld [vmem:[#allocation2 + $0x38] sm:$0xff]
          %v1100 = vld [vmem:[#allocation2 + $0x40] sm:$0xff]
          %v1101 = vld [vmem:[#allocation2 + $0x48] sm:$0xff]
          %v1102 = vld [vmem:[#allocation2 + $0x50] sm:$0xff]
          %v1103 = vld [vmem:[#allocation2 + $0x58] sm:$0xff]
          %v1104 = vld [vmem:[#allocation2 + $0x60] sm:$0xff]
          %v1105 = vld [vmem:[#allocation2 + $0x68] sm:$0xff]
          %v1106 = vld [vmem:[#allocation2 + $0x70] sm:$0xff]
          %v1107 = vld [vmem:[#allocation2 + $0x78] sm:$0xff]
          %v1108 = vld [vmem:[%s363] sm:$0x1]
          %v1110 = vperm.slane %v1108, 0
          %v1112 = vmul.f32 %v1092, %v1110
          %v1113 = vmul.f32 %v1093, %v1110
          %v1114 = vmul.f32 %v1094, %v1110
          %v1115 = vmul.f32 %v1095, %v1110
          %v1116 = vmul.f32 %v1096, %v1110
          %v1117 = vmul.f32 %v1097, %v1110
          %v1118 = vmul.f32 %v1098, %v1110
          %v1119 = vmul.f32 %v1099, %v1110
          %v1120 = vmul.f32 %v1100, %v1110
          %v1121 = vmul.f32 %v1101, %v1110
          %v1122 = vmul.f32 %v1102, %v1110
          %v1123 = vmul.f32 %v1103, %v1110
          %v1124 = vmul.f32 %v1104, %v1110
          %v1125 = vmul.f32 %v1105, %v1110
          %v1126 = vmul.f32 %v1106, %v1110
          %v1127 = vmul.f32 %v1107, %v1110
          %v1128 = vld [vmem:[%s366] sm:$0x1]
          %v1130 = vperm.slane %v1128, 0
          %v1132 = vadd.f32 %v1112, %v1130
          %v1133 = vadd.f32 %v1113, %v1130
          %v1134 = vadd.f32 %v1114, %v1130
          %v1135 = vadd.f32 %v1115, %v1130
          %v1136 = vadd.f32 %v1116, %v1130
          %v1137 = vadd.f32 %v1117, %v1130
          %v1138 = vadd.f32 %v1118, %v1130
          %v1139 = vadd.f32 %v1119, %v1130
          %v1140 = vadd.f32 %v1120, %v1130
          %v1141 = vadd.f32 %v1121, %v1130
          %v1142 = vadd.f32 %v1122, %v1130
          %v1143 = vadd.f32 %v1123, %v1130
          %v1144 = vadd.f32 %v1124, %v1130
          %v1145 = vadd.f32 %v1125, %v1130
          %v1146 = vadd.f32 %v1126, %v1130
          %v1147 = vadd.f32 %v1127, %v1130
          %v1148 = vmax.f32 %v1132, 0.0
          %v1149 = vmax.f32 %v1133, 0.0
          %v1150 = vmax.f32 %v1134, 0.0
          %v1151 = vmax.f32 %v1135, 0.0
          %v1152 = vmax.f32 %v1136, 0.0
          %v1153 = vmax.f32 %v1137, 0.0
          %v1154 = vmax.f32 %v1138, 0.0
          %v1155 = vmax.f32 %v1139, 0.0
          %v1156 = vmax.f32 %v1140, 0.0
          %v1157 = vmax.f32 %v1141, 0.0
          %v1158 = vmax.f32 %v1142, 0.0
          %v1159 = vmax.f32 %v1143, 0.0
          %v1160 = vmax.f32 %v1144, 0.0
          %v1161 = vmax.f32 %v1145, 0.0
          %v1162 = vmax.f32 %v1146, 0.0
          %v1163 = vmax.f32 %v1147, 0.0
          %1164 = vst [vmem:[%s374] sm:$0xff] %v1148
          %1165 = vst [vmem:[%s374 + $0x8] sm:$0xff] %v1149
          %1166 = vst [vmem:[%s374 + $0x10] sm:$0xff] %v1150
          %1167 = vst [vmem:[%s374 + $0x18] sm:$0xff] %v1151
          %1168 = vst [vmem:[%s374 + $0x20] sm:$0xff] %v1152
          %1169 = vst [vmem:[%s374 + $0x28] sm:$0xff] %v1153
          %1170 = vst [vmem:[%s374 + $0x30] sm:$0xff] %v1154
          %1171 = vst [vmem:[%s374 + $0x38] sm:$0xff] %v1155
          %1172 = vst [vmem:[%s374 + $0x40] sm:$0xff] %v1156
          %1173 = vst [vmem:[%s374 + $0x48] sm:$0xff] %v1157
          %1174 = vst [vmem:[%s374 + $0x50] sm:$0xff] %v1158
          %1175 = vst [vmem:[%s374 + $0x58] sm:$0xff] %v1159
          %1176 = vst [vmem:[%s374 + $0x60] sm:$0xff] %v1160
          %1177 = vst [vmem:[%s374 + $0x68] sm:$0xff] %v1161
          %1178 = vst [vmem:[%s374 + $0x70] sm:$0xff] %v1162
          %1179 = vst [vmem:[%s374 + $0x78] sm:$0xff] %v1163
        $region67: #{inception_b_forward.8} parent=54 // pred_fallthru
          _
        %s1180 = smul.u32 16, %s20
        %p1181 = scmp.lt.s32.totalorder %s1180, 15
        %s1182 = scalar_select %p1181, %s1180, 15
        %p1183 = scmp.lt.s32.totalorder %s21, 0
        %s1184 = scalar_select %p1183, %s21, 0
        %s1185 = sadd.s32 %s1184, %s1182
        %s1186 = smul.addr %s1185, 8
        %s1187 = scalar_lea.vmem %s4, %s1186
        // Predicated region
        $region68: #{inception_b_forward.8} parent=54 // pred_check
          %p1188 = pneg %p162
        $region69: #{inception_b_forward.8} parent=54 // pred_check_branch
          %1190 = sbr.rel (%p1188) target = $region71
        $region70: #{inception_b_forward.8} parent=54 // pred_region
          %s1191 = smul.u32 16, %s20
        $region71: #{inception_b_forward.8} parent=54 // pred_fallthru
          _
        // Predicated region
        $region72: #{inception_b_forward.8} parent=54 // pred_check
          %p1192 = pneg %p162
        $region73: #{inception_b_forward.8} parent=54 // pred_check_branch
          %1194 = sbr.rel (%p1192) target = $region75
        $region74: #{inception_b_forward.8} parent=54 // pred_region
          %s1195 = smul.u32 16, %s20
          %p1196 = scmp.lt.s32.totalorder %s1195, 15
          %s1197 = scalar_select %p1196, %s1195, 15
          %p1198 = scmp.lt.s32.totalorder %s21, 0
          %s1199 = scalar_select %p1198, %s21, 0
          %s1200 = sadd.s32 %s1199, %s1197
          %s1201 = smul.addr %s1200, 8
          %s1202 = scalar_lea.vmem %s4, %s1201
        $region75: #{inception_b_forward.8} parent=54 // pred_fallthru
          _
      $region55: #{inception_b_forward.8} parent=5 // pred_fallthru
        _
      %p1203 = scmp.le.s32.totalorder 2, %s10
      // Predicated region
      $region76: #{inception_b_forward.8} parent=5 // pred_check
        %p1204 = pneg %p1203
      $region77: #{inception_b_forward.8} parent=5 // pred_check_branch
        %1206 = sbr.rel (%p1204) target = $region79
      $region78: #{inception_b_forward.8} parent=5 // pred_region
        %s1207 = ssub.s32 %s10, 2
      $region79: #{inception_b_forward.8} parent=5 // pred_fallthru
        _
    $region6: #{inception_b_forward.8} parent=1 // loop_footer
      %s14 = sadd.s32 1, %s10
    $region7: #{inception_b_forward.8} parent=1 // loop_footer_branch
      %9 = sbr.rel target = $region3
    $region8: #{inception_b_forward.8} parent=1 // loop_exit
      _

// kernel: inception_b_forward.5
$region0: #{inception_b_forward.5}
  #allocation0 [shape = 'u32[]', space=smem, size = 0x4, offset = 0x4, fixed_abs, tag = 'smem constant byte address 0x4 - core index']
  #allocation1 [shape = 'u32[72,128]{1,0:T(1,128)}', space=vmem, size = 0x9000, scoped, tag = 'internal scratch']
  #allocation2 [shape = 'f32[128,128]{1,0:T(8,128)}', space=vmem, size = 0x10000, scoped, tag = 'scratch operand']
  %s0 = inlined_call_operand.vmem [shape: bf16[128,128], index: 0, kind: input, shape index: {}]
  %s1 = inlined_call_operand.vmem [shape: bf16[128,384], index: 1, kind: input, shape index: {}]
  %s2 = inlined_call_operand.vmem [shape: f32[1,384], index: 2, kind: input, shape index: {}]
  %s3 = inlined_call_operand.vmem [shape: f32[1,384], index: 3, kind: input, shape index: {}]
  %s4 = inlined_call_operand.vmem [shape: f32[128,384], index: 4, kind: output, shape index: {}]
  %s5 = sld [smem:[#allocation0]]
  $region132: #{inception_b_forward.5} parent=0
    _
  %s7 = ssub.s32 1, %s5
  %s8 = scalar_select 0, %s7, %s5
  $region1: #{inception_b_forward.5} parent=0
    #allocation3 [shape = 'u8[65536]{0}', space=vmem, size = 0x10000, scoped, tag = 'input window, operand 1']
    #allocation4 [shape = 'u8[131072]{0}', space=vmem, size = 0x20000, scoped, tag = 'output window, operand 0']
    loop: start=0, step=1, limit=5
    $region2: #{inception_b_forward.5} parent=1 // loop_pre_header
      _
    $region3: #{inception_b_forward.5} parent=1 // loop_header
      %s10 = sphi 0, %s14
      %p11 = scmp.ge.s32.totalorder %s10, 5
      %s17 = sphi 0, %s36
      %s18 = sphi 0, %s32
      %s19 = sphi 0, %s28
      %s20 = sphi 0, %s17
      %s21 = sphi 0, %s18
      %s22 = sphi 0, %s19
      %s23 = sphi 0, %s20
      %s24 = sphi 0, %s21
      %s25 = sphi 0, %s22
      %s41 = sphi 0, %s43
      %s44 = sphi 0, %s41
      %s45 = sphi 0, %s44
      %s61 = sphi 0, %s45
      %s69 = sphi 0, %s71
      %s72 = sphi 0, %s69
      %s73 = sphi 0, %s72
      %s89 = sphi 0, %s73
      %s95 = sphi 0, %s97
      %s98 = sphi 0, %s95
      %s99 = sphi 0, %s98
      %s115 = sphi 0, %s99
      %s121 = sphi 0, %s123
      %s124 = sphi 0, %s121
      %s125 = sphi 0, %s124
      %s141 = sphi 0, %s125
      %s149 = sphi 0, %s151
      %s152 = sphi 0, %s149
      %s153 = sphi 0, %s152
      %s169 = sphi 0, %s153
    $region4: #{inception_b_forward.5} parent=1 // loop_header_branch
      %13 = sbr.rel (%p11) target = $region8
    $region5: #{inception_b_forward.5} parent=1 // loop_body
      %s15 = ssub.s32 %s10, 1
      %s16 = ssub.s32 %s10, 2
      %s26 = sadd.s32 1, %s19
      %p27 = scmp.ge.s32.totalorder %s26, 1
      %s28 = scalar_select %p27, 0, %s26
      %s29 = sadd.s32 1, %s18
      %s30 = scalar_select %p27, %s29, %s18
      %p31 = scmp.ge.s32.totalorder %s30, 3
      %s32 = scalar_select %p31, 0, %s30
      %s33 = sadd.s32 1, %s17
      %s34 = scalar_select %p31, %s33, %s17
      %p35 = scmp.ge.s32.totalorder %s34, 1
      %s36 = scalar_select %p35, 0, %s34
      %s37 = ssub.s32 %s17, %s36
      %s38 = ssub.s32 %s19, %s28
      %s39 = sor.u32 %s37, %s38
      %p40 = scmp.eq.s32.totalorder %s39, 0
      %s42 = sadd.s32 %s41, 1
      %s43 = scalar_select %p40, %s41, %s42
      %p46 = pneg %p40
      %p47 = scmp.eq.s32.totalorder %s10, 2
      %p48 = por %p46, %p47
      %p49 = scmp.ne.s32.totalorder %s41, %s44
      %p50 = scmp.eq.s32.totalorder %s10, 0
      %p51 = por %p49, %p50
      %p52 = scmp.ne.s32.totalorder %s41, %s44
      %p53 = scmp.eq.s32.totalorder %s15, 2
      %p54 = por %p52, %p53
      %p55 = scmp.ne.s32.totalorder %s44, %s45
      %p56 = scmp.eq.s32.totalorder %s15, 0
      %p57 = por %p55, %p56
      %p58 = scmp.ne.s32.totalorder %s44, %s45
      %p59 = scmp.eq.s32.totalorder %s16, 2
      %p60 = por %p58, %p59
      %p62 = scmp.ne.s32.totalorder %s45, %s61
      %p63 = scmp.eq.s32.totalorder %s16, 0
      %p64 = por %p62, %p63
      %s65 = ssub.s32 %s19, %s28
      %s66 = ssub.s32 %s18, %s32
      %s67 = sor.u32 %s65, %s66
      %p68 = scmp.eq.s32.totalorder %s67, 0
      %s70 = sadd.s32 %s69, 1
      %s71 = scalar_select %p68, %s69, %s70
      %p74 = pneg %p68
      %p75 = scmp.eq.s32.totalorder %s10, 2
      %p76 = por %p74, %p75
      %p77 = scmp.ne.s32.totalorder %s69, %s72
      %p78 = scmp.eq.s32.totalorder %s10, 0
      %p79 = por %p77, %p78
      %p80 = scmp.ne.s32.totalorder %s69, %s72
      %p81 = scmp.eq.s32.totalorder %s15, 2
      %p82 = por %p80, %p81
      %p83 = scmp.ne.s32.totalorder %s72, %s73
      %p84 = scmp.eq.s32.totalorder %s15, 0
      %p85 = por %p83, %p84
      %p86 = scmp.ne.s32.totalorder %s72, %s73
      %p87 = scmp.eq.s32.totalorder %s16, 2
      %p88 = por %p86, %p87
      %p90 = scmp.ne.s32.totalorder %s73, %s89
      %p91 = scmp.eq.s32.totalorder %s16, 0
      %p92 = por %p90, %p91
      %s93 = ssub.s32 %s18, %s32
      %p94 = scmp.eq.s32.totalorder %s93, 0
      %s96 = sadd.s32 %s95, 1
      %s97 = scalar_select %p94, %s95, %s96
      %p100 = pneg %p94
      %p101 = scmp.eq.s32.totalorder %s10, 2
      %p102 = por %p100, %p101
      %p103 = scmp.ne.s32.totalorder %s95, %s98
      %p104 = scmp.eq.s32.totalorder %s10, 0
      %p105 = por %p103, %p104
      %p106 = scmp.ne.s32.totalorder %s95, %s98
      %p107 = scmp.eq.s32.totalorder %s15, 2
      %p108 = por %p106, %p107
      %p109 = scmp.ne.s32.totalorder %s98, %s99
      %p110 = scmp.eq.s32.totalorder %s15, 0
      %p111 = por %p109, %p110
      %p112 = scmp.ne.s32.totalorder %s98, %s99
      %p113 = scmp.eq.s32.totalorder %s16, 2
      %p114 = por %p112, %p113
      %p116 = scmp.ne.s32.totalorder %s99, %s115
      %p117 = scmp.eq.s32.totalorder %s16, 0
      %p118 = por %p116, %p117
      %s119 = ssub.s32 %s18, %s32
      %p120 = scmp.eq.s32.totalorder %s119, 0
      %s122 = sadd.s32 %s121, 1
      %s123 = scalar_select %p120, %s121, %s122
      %p126 = pneg %p120
      %p127 = scmp.eq.s32.totalorder %s10, 2
      %p128 = por %p126, %p127
      %p129 = scmp.ne.s32.totalorder %s121, %s124
      %p130 = scmp.eq.s32.totalorder %s10, 0
      %p131 = por %p129, %p130
      %p132 = scmp.ne.s32.totalorder %s121, %s124
      %p133 = scmp.eq.s32.totalorder %s15, 2
      %p134 = por %p132, %p133
      %p135 = scmp.ne.s32.totalorder %s124, %s125
      %p136 = scmp.eq.s32.totalorder %s15, 0
      %p137 = por %p135, %p136
      %p138 = scmp.ne.s32.totalorder %s124, %s125
      %p139 = scmp.eq.s32.totalorder %s16, 2
      %p140 = por %p138, %p139
      %p142 = scmp.ne.s32.totalorder %s125, %s141
      %p143 = scmp.eq.s32.totalorder %s16, 0
      %p144 = por %p142, %p143
      %s145 = ssub.s32 %s17, %s36
      %s146 = ssub.s32 %s18, %s32
      %s147 = sor.u32 %s145, %s146
      %p148 = scmp.eq.s32.totalorder %s147, 0
      %s150 = sadd.s32 %s149, 1
      %s151 = scalar_select %p148, %s149, %s150
      %p154 = pneg %p148
      %p155 = scmp.eq.s32.totalorder %s10, 2
      %p156 = por %p154, %p155
      %p157 = scmp.ne.s32.totalorder %s149, %s152
      %p158 = scmp.eq.s32.totalorder %s10, 0
      %p159 = por %p157, %p158
      %p160 = scmp.ne.s32.totalorder %s149, %s152
      %p161 = scmp.eq.s32.totalorder %s15, 2
      %p162 = por %p160, %p161
      %p163 = scmp.ne.s32.totalorder %s152, %s153
      %p164 = scmp.eq.s32.totalorder %s15, 0
      %p165 = por %p163, %p164
      %p166 = scmp.ne.s32.totalorder %s152, %s153
      %p167 = scmp.eq.s32.totalorder %s16, 2
      %p168 = por %p166, %p167
      %p170 = scmp.ne.s32.totalorder %s153, %s169
      %p171 = scmp.eq.s32.totalorder %s16, 0
      %p172 = por %p170, %p171
      %p173 = scmp.le.s32.totalorder 1, %s10
      %p174 = scmp.lt.s32.totalorder %s10, 4
      %p175 = pnand %p173, %p174
      %p176 = pneg %p175
      // Predicated region
      $region9: #{inception_b_forward.5} parent=5 // pred_check
        _
      $region10: #{inception_b_forward.5} parent=5 // pred_check_branch
        %178 = sbr.rel (%p175) target = $region12
      $region11: #{inception_b_forward.5} parent=5 // pred_region
        %s179 = ssub.s32 %s10, 1
        // Predicated region
        $region13: #{inception_b_forward.5} parent=11 // pred_check
          %p180 = pneg %p57
        $region14: #{inception_b_forward.5} parent=11 // pred_check_branch
          %182 = sbr.rel (%p180) target = $region16
        $region15: #{inception_b_forward.5} parent=11 // pred_region
          %s183 = smul.u32 16, %s20
          %p184 = scmp.lt.s32.totalorder %s183, 15
          %s185 = scalar_select %p184, %s183, 15
          %p186 = scmp.lt.s32.totalorder %s22, 0
          %s187 = scalar_select %p186, %s22, 0
          %s188 = sadd.s32 %s187, %s185
          %s189 = smul.addr %s188, 4
          %s190 = scalar_lea.vmem %s0, %s189
          %s191 = smul.u32 16, %s20
        $region16: #{inception_b_forward.5} parent=11 // pred_fallthru
          _
      $region12: #{inception_b_forward.5} parent=5 // pred_fallthru
        _
      %p192 = scmp.lt.s32.totalorder %s10, 3
      // Predicated region
      $region17: #{inception_b_forward.5} parent=5 // pred_check
        %p193 = pneg %p192
      $region18: #{inception_b_forward.5} parent=5 // pred_check_branch
        %195 = sbr.rel (%p193) target = $region20
      $region19: #{inception_b_forward.5} parent=5 // pred_region
        // Predicated region
        $region21: #{inception_b_forward.5} parent=19 // pred_check
          %p196 = pneg %p79
        $region22: #{inception_b_forward.5} parent=19 // pred_check_branch
          %198 = sbr.rel (%p196) target = $region24
        $region23: #{inception_b_forward.5} parent=19 // pred_region
          %s199 = sand.u32 %s69, 1
          %s200 = sand.u32 %s69, 1
          %s201 = smul.addr %s200, 64
          %s202 = scalar_lea.vmem [#allocation3], %s201
          %s203 = smul.u32 16, %s19
          %s204 = smul.addr %s203, 3
          %s205 = sadd.s32 %s18, %s204
          %s206 = smul.addr %s205, 4
          %s207 = scalar_lea.vmem %s1, %s206
          // Predicated region
          $region25: #{inception_b_forward.5} parent=23 // pred_check
            _
          $region26: #{inception_b_forward.5} parent=23 // pred_check_branch
            %209 = sbr.rel (0) target = $region28
          $region27: #{inception_b_forward.5} parent=23 // pred_region
            // Predicated region
            $region29: #{inception_b_forward.5} parent=27 // pred_check
              _
            $region30: #{inception_b_forward.5} parent=27 // pred_check_branch
              %211 = sbr.rel target = $region32
            $region31: #{inception_b_forward.5} parent=27 // pred_region
              // Predicated region
              $region44: #{inception_b_forward.5} parent=31 // pred_check
                _
              $region45: #{inception_b_forward.5} parent=31 // pred_check_branch
                %257 = sbr.rel (0) target = $region47
              $region46: #{inception_b_forward.5} parent=31 // pred_region
                loop: start=0, step=1, limit=1
                $region48: #{inception_b_forward.5} parent=46 // loop_pre_header
                  _
                $region49: #{inception_b_forward.5} parent=46 // loop_header
                  %s259 = sphi 0, %s263
                  %p260 = scmp.ge.s32.totalorder %s259, 1
                  %s264 = sphi %s207, %s207
                  %s265 = sphi %s202, %s202
                $region50: #{inception_b_forward.5} parent=46 // loop_header_branch
                  %262 = sbr.rel (%p260) target = $region54
                $region51: #{inception_b_forward.5} parent=46 // loop_body
                  _
                $region52: #{inception_b_forward.5} parent=46 // loop_footer
                  %s263 = sadd.s32 1, %s259
                $region53: #{inception_b_forward.5} parent=46 // loop_footer_branch
                  %258 = sbr.rel target = $region49
                $region54: #{inception_b_forward.5} parent=46 // loop_exit
                  _
                %s267 = ssub.s32 16, 1
                loop: start=0, step=1, limit=1
                $region55: #{inception_b_forward.5} parent=46 // loop_pre_header
                  _
                $region56: #{inception_b_forward.5} parent=46 // loop_header
                  %s269 = sphi 0, %s273
                  %p270 = scmp.ge.s32.totalorder %s269, 1
                  %s274 = sphi %s207, %s207
                  %s275 = sphi %s202, %s202
                $region57: #{inception_b_forward.5} parent=46 // loop_header_branch
                  %272 = sbr.rel (%p270) target = $region61
                $region58: #{inception_b_forward.5} parent=46 // loop_body
                  %v276 = vld [vmem:[%s274] sm:%s267]
                  %277 = vst [vmem:[%s275] sm:%s267] %v276
                  %v278 = vld [vmem:[%s274 + $0xc] sm:%s267]
                  %279 = vst [vmem:[%s275 + $0x4] sm:%s267] %v278
                  %v280 = vld [vmem:[%s274 + $0x18] sm:%s267]
                  %281 = vst [vmem:[%s275 + $0x8] sm:%s267] %v280
                  %v282 = vld [vmem:[%s274 + $0x24] sm:%s267]
                  %283 = vst [vmem:[%s275 + $0xc] sm:%s267] %v282
                  %v284 = vld [vmem:[%s274 + $0x30] sm:%s267]
                  %285 = vst [vmem:[%s275 + $0x10] sm:%s267] %v284
                  %v286 = vld [vmem:[%s274 + $0x3c] sm:%s267]
                  %287 = vst [vmem:[%s275 + $0x14] sm:%s267] %v286
                  %v288 = vld [vmem:[%s274 + $0x48] sm:%s267]
                  %289 = vst [vmem:[%s275 + $0x18] sm:%s267] %v288
                  %v290 = vld [vmem:[%s274 + $0x54] sm:%s267]
                  %291 = vst [vmem:[%s275 + $0x1c] sm:%s267] %v290
                  %v292 = vld [vmem:[%s274 + $0x60] sm:%s267]
                  %293 = vst [vmem:[%s275 + $0x20] sm:%s267] %v292
                  %v294 = vld [vmem:[%s274 + $0x6c] sm:%s267]
                  %295 = vst [vmem:[%s275 + $0x24] sm:%s267] %v294
                  %v296 = vld [vmem:[%s274 + $0x78] sm:%s267]
                  %297 = vst [vmem:[%s275 + $0x28] sm:%s267] %v296
                  %v298 = vld [vmem:[%s274 + $0x84] sm:%s267]
                  %299 = vst [vmem:[%s275 + $0x2c] sm:%s267] %v298
                  %v300 = vld [vmem:[%s274 + $0x90] sm:%s267]
                  %301 = vst [vmem:[%s275 + $0x30] sm:%s267] %v300
                  %v302 = vld [vmem:[%s274 + $0x9c] sm:%s267]
                  %303 = vst [vmem:[%s275 + $0x34] sm:%s267] %v302
                  %v304 = vld [vmem:[%s274 + $0xa8] sm:%s267]
                  %305 = vst [vmem:[%s275 + $0x38] sm:%s267] %v304
                  %v306 = vld [vmem:[%s274 + $0xb4] sm:%s267]
                  %307 = vst [vmem:[%s275 + $0x3c] sm:%s267] %v306
                $region59: #{inception_b_forward.5} parent=46 // loop_footer
                  %s273 = sadd.s32 1, %s269
                $region60: #{inception_b_forward.5} parent=46 // loop_footer_branch
                  %268 = sbr.rel target = $region56
                $region61: #{inception_b_forward.5} parent=46 // loop_exit
                  _
              $region47: #{inception_b_forward.5} parent=31 // pred_fallthru
                _
            $region32: #{inception_b_forward.5} parent=27 // pred_fallthru
              _
            // Predicated region
            $region33: #{inception_b_forward.5} parent=27 // pred_check
              _
            $region34: #{inception_b_forward.5} parent=27 // pred_check_branch
              %213 = sbr.rel (0) target = $region36
            $region35: #{inception_b_forward.5} parent=27 // pred_region
              %s215 = ssub.s32 16, 1
              loop: start=0, step=1, limit=1
              $region37: #{inception_b_forward.5} parent=35 // loop_pre_header
                _
              $region38: #{inception_b_forward.5} parent=35 // loop_header
                %s217 = sphi 0, %s221
                %p218 = scmp.ge.s32.totalorder %s217, 1
                %s222 = sphi %s207, %s207
                %s223 = sphi %s202, %s202
              $region39: #{inception_b_forward.5} parent=35 // loop_header_branch
                %220 = sbr.rel (%p218) target = $region43
              $region40: #{inception_b_forward.5} parent=35 // loop_body
                %v224 = vld [vmem:[%s222] sm:%s215]
                %225 = vst [vmem:[%s223] sm:%s215] %v224
                %v226 = vld [vmem:[%s222 + $0xc] sm:%s215]
                %227 = vst [vmem:[%s223 + $0x4] sm:%s215] %v226
                %v228 = vld [vmem:[%s222 + $0x18] sm:%s215]
                %229 = vst [vmem:[%s223 + $0x8] sm:%s215] %v228
                %v230 = vld [vmem:[%s222 + $0x24] sm:%s215]
                %231 = vst [vmem:[%s223 + $0xc] sm:%s215] %v230
                %v232 = vld [vmem:[%s222 + $0x30] sm:%s215]
                %233 = vst [vmem:[%s223 + $0x10] sm:%s215] %v232
                %v234 = vld [vmem:[%s222 + $0x3c] sm:%s215]
                %235 = vst [vmem:[%s223 + $0x14] sm:%s215] %v234
                %v236 = vld [vmem:[%s222 + $0x48] sm:%s215]
                %237 = vst [vmem:[%s223 + $0x18] sm:%s215] %v236
                %v238 = vld [vmem:[%s222 + $0x54] sm:%s215]
                %239 = vst [vmem:[%s223 + $0x1c] sm:%s215] %v238
                %v240 = vld [vmem:[%s222 + $0x60] sm:%s215]
                %241 = vst [vmem:[%s223 + $0x20] sm:%s215] %v240
                %v242 = vld [vmem:[%s222 + $0x6c] sm:%s215]
                %243 = vst [vmem:[%s223 + $0x24] sm:%s215] %v242
                %v244 = vld [vmem:[%s222 + $0x78] sm:%s215]
                %245 = vst [vmem:[%s223 + $0x28] sm:%s215] %v244
                %v246 = vld [vmem:[%s222 + $0x84] sm:%s215]
                %247 = vst [vmem:[%s223 + $0x2c] sm:%s215] %v246
                %v248 = vld [vmem:[%s222 + $0x90] sm:%s215]
                %249 = vst [vmem:[%s223 + $0x30] sm:%s215] %v248
                %v250 = vld [vmem:[%s222 + $0x9c] sm:%s215]
                %251 = vst [vmem:[%s223 + $0x34] sm:%s215] %v250
                %v252 = vld [vmem:[%s222 + $0xa8] sm:%s215]
                %253 = vst [vmem:[%s223 + $0x38] sm:%s215] %v252
                %v254 = vld [vmem:[%s222 + $0xb4] sm:%s215]
                %255 = vst [vmem:[%s223 + $0x3c] sm:%s215] %v254
              $region41: #{inception_b_forward.5} parent=35 // loop_footer
                %s221 = sadd.s32 1, %s217
              $region42: #{inception_b_forward.5} parent=35 // loop_footer_branch
                %216 = sbr.rel target = $region38
              $region43: #{inception_b_forward.5} parent=35 // loop_exit
                _
            $region36: #{inception_b_forward.5} parent=27 // pred_fallthru
              _
          $region28: #{inception_b_forward.5} parent=23 // pred_fallthru
            _
          %308 = vnop
        $region24: #{inception_b_forward.5} parent=19 // pred_fallthru
          _
        // Predicated region
        $region62: #{inception_b_forward.5} parent=19 // pred_check
          %p309 = pneg %p105
        $region63: #{inception_b_forward.5} parent=19 // pred_check_branch
          %311 = sbr.rel (%p309) target = $region65
        $region64: #{inception_b_forward.5} parent=19 // pred_region
          %p312 = scmp.lt.s32.totalorder %s18, 2
          %s313 = scalar_select %p312, %s18, 2
          %s314 = scalar_lea.vmem %s2, %s313
        $region65: #{inception_b_forward.5} parent=19 // pred_fallthru
          _
        // Predicated region
        $region66: #{inception_b_forward.5} parent=19 // pred_check
          %p315 = pneg %p131
        $region67: #{inception_b_forward.5} parent=19 // pred_check_branch
          %317 = sbr.rel (%p315) target = $region69
        $region68: #{inception_b_forward.5} parent=19 // pred_region
          %p318 = scmp.lt.s32.totalorder %s18, 2
          %s319 = scalar_select %p318, %s18, 2
          %s320 = scalar_lea.vmem %s3, %s319
        $region69: #{inception_b_forward.5} parent=19 // pred_fallthru
          _
      $region20: #{inception_b_forward.5} parent=5 // pred_fallthru
        _
      %p321 = scmp.le.s32.totalorder 1, %s10
      %p322 = scmp.lt.s32.totalorder %s10, 4
      %p323 = pnand %p321, %p322
      %p324 = pneg %p323
      // Predicated region
      $region70: #{inception_b_forward.5} parent=5 // pred_check
        _
      $region71: #{inception_b_forward.5} parent=5 // pred_check_branch
        %326 = sbr.rel (%p323) target = $region73
      $region72: #{inception_b_forward.5} parent=5 // pred_region
        %s327 = ssub.s32 %s10, 1
        %s328 = sand.u32 %s72, 1
        %s329 = sand.u32 %s72, 1
        %s330 = smul.addr %s329, 64
        %s331 = scalar_lea.vmem [#allocation3], %s330
        // Predicated region
        $region74: #{inception_b_forward.5} parent=72 // pred_check
          %p332 = pneg %p85
        $region75: #{inception_b_forward.5} parent=72 // pred_check_branch
          %334 = sbr.rel (%p332) target = $region77
        $region76: #{inception_b_forward.5} parent=72 // pred_region
          _
        $region77: #{inception_b_forward.5} parent=72 // pred_fallthru
          _
        %s335 = smul.u32 16, %s20
        %p336 = scmp.lt.s32.totalorder %s335, 15
        %s337 = scalar_select %p336, %s335, 15
        %p338 = scmp.lt.s32.totalorder %s22, 0
        %s339 = scalar_select %p338, %s22, 0
        %s340 = sadd.s32 %s339, %s337
        %s341 = smul.addr %s340, 4
        %s342 = scalar_lea.vmem %s0, %s341
        %p343 = pneg %p57
        %p344 = pneg %p54
        %s345 = sand.u32 %s72, 1
        %s346 = sand.u32 %s72, 1
        %s347 = smul.addr %s346, 64
        %s348 = scalar_lea.vmem [#allocation3], %s347
        %p349 = pneg %p85
        %p350 = pneg %p82
        %p351 = scmp.lt.s32.totalorder %s21, 2
        %s352 = scalar_select %p351, %s21, 2
        %s353 = scalar_lea.vmem %s2, %s352
        %p354 = pneg %p111
        %p355 = pneg %p108
        %p356 = scmp.lt.s32.totalorder %s21, 2
        %s357 = scalar_select %p356, %s21, 2
        %s358 = scalar_lea.vmem %s3, %s357
        %p359 = pneg %p137
        %p360 = pneg %p134
        %p361 = pneg %p165
        %p362 = pneg %p162
        %s363 = sand.u32 %s152, 1
        %s364 = sand.u32 %s152, 1
        %s365 = smul.addr %s364, 128
        %s366 = scalar_lea.vmem [#allocation4], %s365
        %s367 = smul.u32 16, %s20
        %p368 = scmp.lt.s32.totalorder %s367, 15
        %s369 = scalar_select %p368, %s367, 15
        %p370 = scmp.lt.s32.totalorder %s22, 0
        %s371 = scalar_select %p370, %s22, 0
        %s372 = sadd.s32 %s371, %s369
        %s373 = smul.addr %s372, 4
        %s374 = scalar_lea.vmem %s0, %s373
        %s375 = smul.u32 16, %s20
        %s376 = smul.u32 16, %s22
        %p377 = scmp.lt.s32.totalorder %s21, 2
        %s378 = scalar_select %p377, %s21, 2
        %s379 = scalar_lea.vmem %s2, %s378
        %p380 = scmp.lt.s32.totalorder %s21, 2
        %s381 = scalar_select %p380, %s21, 2
        %s382 = scalar_lea.vmem %s3, %s381
        %s383 = smul.u32 16, %s20
        %p384 = scmp.eq.s32.totalorder %s22, 0
        // Predicated region
        $region78: #{inception_b_forward.5} parent=72 // pred_check
          %p385 = pneg %p384
        $region79: #{inception_b_forward.5} parent=72 // pred_check_branch
          %387 = sbr.rel (%p385) target = $region81
        $region80: #{inception_b_forward.5} parent=72 // pred_region
          %388 = vst [vmem:[#allocation2] sm:$0xff] 0.0
          %389 = vst [vmem:[#allocation2 + $0x8] sm:$0xff] 0.0
          %390 = vst [vmem:[#allocation2 + $0x10] sm:$0xff] 0.0
          %391 = vst [vmem:[#allocation2 + $0x18] sm:$0xff] 0.0
          %392 = vst [vmem:[#allocation2 + $0x20] sm:$0xff] 0.0
          %393 = vst [vmem:[#allocation2 + $0x28] sm:$0xff] 0.0
          %394 = vst [vmem:[#allocation2 + $0x30] sm:$0xff] 0.0
          %395 = vst [vmem:[#allocation2 + $0x38] sm:$0xff] 0.0
          %396 = vst [vmem:[#allocation2 + $0x40] sm:$0xff] 0.0
          %397 = vst [vmem:[#allocation2 + $0x48] sm:$0xff] 0.0
          %398 = vst [vmem:[#allocation2 + $0x50] sm:$0xff] 0.0
          %399 = vst [vmem:[#allocation2 + $0x58] sm:$0xff] 0.0
          %400 = vst [vmem:[#allocation2 + $0x60] sm:$0xff] 0.0
          %401 = vst [vmem:[#allocation2 + $0x68] sm:$0xff] 0.0
          %402 = vst [vmem:[#allocation2 + $0x70] sm:$0xff] 0.0
          %403 = vst [vmem:[#allocation2 + $0x78] sm:$0xff] 0.0
        $region81: #{inception_b_forward.5} parent=72 // pred_fallthru
          _
        %v404 = vld [vmem:[#allocation2] sm:$0xff]
        %v405 = vld [vmem:[#allocation2 + $0x8] sm:$0xff]
        %v406 = vld [vmem:[#allocation2 + $0x10] sm:$0xff]
        %v407 = vld [vmem:[#allocation2 + $0x18] sm:$0xff]
        %v408 = vld [vmem:[#allocation2 + $0x20] sm:$0xff]
        %v409 = vld [vmem:[#allocation2 + $0x28] sm:$0xff]
        %v410 = vld [vmem:[#allocation2 + $0x30] sm:$0xff]
        %v411 = vld [vmem:[#allocation2 + $0x38] sm:$0xff]
        %v412 = vld [vmem:[#allocation2 + $0x40] sm:$0xff]
        %v413 = vld [vmem:[#allocation2 + $0x48] sm:$0xff]
        %v414 = vld [vmem:[#allocation2 + $0x50] sm:$0xff]
        %v415 = vld [vmem:[#allocation2 + $0x58] sm:$0xff]
        %v416 = vld [vmem:[#allocation2 + $0x60] sm:$0xff]
        %v417 = vld [vmem:[#allocation2 + $0x68] sm:$0xff]
        %v418 = vld [vmem:[#allocation2 + $0x70] sm:$0xff]
        %v419 = vld [vmem:[#allocation2 + $0x78] sm:$0xff]
        %v420 = vld [vmem:[%s374] sm:$0xf]
        %v421 = vld [vmem:[%s374 + $0x4] sm:$0xf]
        %v422 = vld [vmem:[%s374 + $0x8] sm:$0xf]
        %v423 = vld [vmem:[%s374 + $0xc] sm:$0xf]
        %v424 = vld [vmem:[%s374 + $0x10] sm:$0xf]
        %v425 = vld [vmem:[%s374 + $0x14] sm:$0xf]
        %v426 = vld [vmem:[%s374 + $0x18] sm:$0xf]
        %v427 = vld [vmem:[%s374 + $0x1c] sm:$0xf]
        %v428 = vld [vmem:[%s374 + $0x20] sm:$0xf]
        %v429 = vld [vmem:[%s374 + $0x24] sm:$0xf]
        %v430 = vld [vmem:[%s374 + $0x28] sm:$0xf]
        %v431 = vld [vmem:[%s374 + $0x2c] sm:$0xf]
        %v432 = vld [vmem:[%s374 + $0x30] sm:$0xf]
        %v433 = vld [vmem:[%s374 + $0x34] sm:$0xf]
        %v434 = vld [vmem:[%s374 + $0x38] sm:$0xf]
        %v435 = vld [vmem:[%s374 + $0x3c] sm:$0xf]
        %v436 = vld [vmem:[%s331] sm:$0xf]
        %v437 = vld [vmem:[%s331 + $0x4] sm:$0xf]
        %v438 = vld [vmem:[%s331 + $0x8] sm:$0xf]
        %v439 = vld [vmem:[%s331 + $0xc] sm:$0xf]
        %v440 = vld [vmem:[%s331 + $0x10] sm:$0xf]
        %v441 = vld [vmem:[%s331 + $0x14] sm:$0xf]
        %v442 = vld [vmem:[%s331 + $0x18] sm:$0xf]
        %v443 = vld [vmem:[%s331 + $0x1c] sm:$0xf]
        %v444 = vld [vmem:[%s331 + $0x20] sm:$0xf]
        %v445 = vld [vmem:[%s331 + $0x24] sm:$0xf]
        %v446 = vld [vmem:[%s331 + $0x28] sm:$0xf]
        %v447 = vld [vmem:[%s331 + $0x2c] sm:$0xf]
        %v448 = vld [vmem:[%s331 + $0x30] sm:$0xf]
        %v449 = vld [vmem:[%s331 + $0x34] sm:$0xf]
        %v450 = vld [vmem:[%s331 + $0x38] sm:$0xf]
        %v451 = vld [vmem:[%s331 + $0x3c] sm:$0xf]
        %v468 = vunpack.c.l.b16 %v420
        %v469 = vunpack.c.l.b16 %v421
        %v470 = vunpack.c.l.b16 %v422
        %v471 = vunpack.c.l.b16 %v423
        %v472 = vunpack.c.l.b16 %v424
        %v473 = vunpack.c.l.b16 %v425
        %v474 = vunpack.c.l.b16 %v426
        %v475 = vunpack.c.l.b16 %v427
        %v476 = vunpack.c.l.b16 %v428
        %v477 = vunpack.c.l.b16 %v429
        %v478 = vunpack.c.l.b16 %v430
        %v479 = vunpack.c.l.b16 %v431
        %v480 = vunpack.c.l.b16 %v432
        %v481 = vunpack.c.l.b16 %v433
        %v482 = vunpack.c.l.b16 %v434
        %v483 = vunpack.c.l.b16 %v435
        %v484 = vpack.c.b16 %v469, %v468
        %v485 = vpack.c.b16 %v471, %v470
        %v486 = vpack.c.b16 %v473, %v472
        %v487 = vpack.c.b16 %v475, %v474
        %v488 = vpack.c.b16 %v477, %v476
        %v489 = vpack.c.b16 %v479, %v478
        %v490 = vpack.c.b16 %v481, %v480
        %v491 = vpack.c.b16 %v483, %v482
        %v516 = vunpack.c.l.b16 %v436
        %v517 = vunpack.c.l.b16 %v437
        %v518 = vunpack.c.l.b16 %v438
        %v519 = vunpack.c.l.b16 %v439
        %v520 = vunpack.c.l.b16 %v440
        %v521 = vunpack.c.l.b16 %v441
        %v522 = vunpack.c.l.b16 %v442
        %v523 = vunpack.c.l.b16 %v443
        %v524 = vunpack.c.l.b16 %v444
        %v525 = vunpack.c.l.b16 %v445
        %v526 = vunpack.c.l.b16 %v446
        %v527 = vunpack.c.l.b16 %v447
        %v528 = vunpack.c.l.b16 %v448
        %v529 = vunpack.c.l.b16 %v449
        %v530 = vunpack.c.l.b16 %v450
        %v531 = vunpack.c.l.b16 %v451
        %v532 = vpack.c.b16 %v517, %v516
        %v533 = vpack.c.b16 %v519, %v518
        %v534 = vpack.c.b16 %v521, %v520
        %v535 = vpack.c.b16 %v523, %v522
        %v536 = vpack.c.b16 %v525, %v524
        %v537 = vpack.c.b16 %v527, %v526
        %v538 = vpack.c.b16 %v529, %v528
        %v539 = vpack.c.b16 %v531, %v530
        %548 = vmatpush.bf16.msra.mxu0 %v539
        %549 = vmatpush.bf16.msra.mxu0 %v538
        %550 = vmatpush.bf16.msra.mxu0 %v537
        %551 = vmatpush.bf16.msra.mxu0 %v536
        %552 = vmatpush.bf16.msra.mxu0 %v535
        %553 = vmatpush.bf16.msra.mxu0 %v534
        %554 = vmatpush.bf16.msra.mxu0 %v533
        %555 = vmatpush.bf16.msra.mxu0 %v532
        %556 = vmatmul.bf16.gmra.mxu0 %v484
        %v557 = vpop.f32.mrf.mxu0
        %v558 = vadd.f32 0.0, %v557
        %v559 = vpop.f32.mrf.mxu0
        %v560 = vadd.f32 0.0, %v559
        %561 = vmatmul.bf16.gmra.mxu0 %v485
        %v562 = vpop.f32.mrf.mxu0
        %v563 = vadd.f32 0.0, %v562
        %v564 = vpop.f32.mrf.mxu0
        %v565 = vadd.f32 0.0, %v564
        %566 = vmatmul.bf16.gmra.mxu0 %v486
        %v567 = vpop.f32.mrf.mxu0
        %v568 = vadd.f32 0.0, %v567
        %v569 = vpop.f32.mrf.mxu0
        %v570 = vadd.f32 0.0, %v569
        %571 = vmatmul.bf16.gmra.mxu0 %v487
        %v572 = vpop.f32.mrf.mxu0
        %v573 = vadd.f32 0.0, %v572
        %v574 = vpop.f32.mrf.mxu0
        %v575 = vadd.f32 0.0, %v574
        %576 = vmatmul.bf16.gmra.mxu0 %v488
        %v577 = vpop.f32.mrf.mxu0
        %v578 = vadd.f32 0.0, %v577
        %v579 = vpop.f32.mrf.mxu0
        %v580 = vadd.f32 0.0, %v579
        %581 = vmatmul.bf16.gmra.mxu0 %v489
        %v582 = vpop.f32.mrf.mxu0
        %v583 = vadd.f32 0.0, %v582
        %v584 = vpop.f32.mrf.mxu0
        %v585 = vadd.f32 0.0, %v584
        %586 = vmatmul.bf16.gmra.mxu0 %v490
        %v587 = vpop.f32.mrf.mxu0
        %v588 = vadd.f32 0.0, %v587
        %v589 = vpop.f32.mrf.mxu0
        %v590 = vadd.f32 0.0, %v589
        %591 = vmatmul.bf16.gmra.mxu0 %v491
        %v592 = vpop.f32.mrf.mxu0
        %v593 = vadd.f32 0.0, %v592
        %v594 = vpop.f32.mrf.mxu0
        %v595 = vadd.f32 0.0, %v594
        %596 = vdwg.mxu0
        %v597 = vadd.f32 %v404, %v558
        %v598 = vadd.f32 %v405, %v560
        %v599 = vadd.f32 %v406, %v563
        %v600 = vadd.f32 %v407, %v565
        %v601 = vadd.f32 %v408, %v568
        %v602 = vadd.f32 %v409, %v570
        %v603 = vadd.f32 %v410, %v573
        %v604 = vadd.f32 %v411, %v575
        %v605 = vadd.f32 %v412, %v578
        %v606 = vadd.f32 %v413, %v580
        %v607 = vadd.f32 %v414, %v583
        %v608 = vadd.f32 %v415, %v585
        %v609 = vadd.f32 %v416, %v588
        %v610 = vadd.f32 %v417, %v590
        %v611 = vadd.f32 %v418, %v593
        %v612 = vadd.f32 %v419, %v595
        %613 = vst [vmem:[#allocation2] sm:$0xff] %v597
        %614 = vst [vmem:[#allocation2 + $0x8] sm:$0xff] %v598
        %615 = vst [vmem:[#allocation2 + $0x10] sm:$0xff] %v599
        %616 = vst [vmem:[#allocation2 + $0x18] sm:$0xff] %v600
        %617 = vst [vmem:[#allocation2 + $0x20] sm:$0xff] %v601
        %618 = vst [vmem:[#allocation2 + $0x28] sm:$0xff] %v602
        %619 = vst [vmem:[#allocation2 + $0x30] sm:$0xff] %v603
        %620 = vst [vmem:[#allocation2 + $0x38] sm:$0xff] %v604
        %621 = vst [vmem:[#allocation2 + $0x40] sm:$0xff] %v605
        %622 = vst [vmem:[#allocation2 + $0x48] sm:$0xff] %v606
        %623 = vst [vmem:[#allocation2 + $0x50] sm:$0xff] %v607
        %624 = vst [vmem:[#allocation2 + $0x58] sm:$0xff] %v608
        %625 = vst [vmem:[#allocation2 + $0x60] sm:$0xff] %v609
        %626 = vst [vmem:[#allocation2 + $0x68] sm:$0xff] %v610
        %627 = vst [vmem:[#allocation2 + $0x70] sm:$0xff] %v611
        %628 = vst [vmem:[#allocation2 + $0x78] sm:$0xff] %v612
        // Predicated region
        $region82: #{inception_b_forward.5} parent=72 // pred_check
          %p629 = pneg %p384
        $region83: #{inception_b_forward.5} parent=72 // pred_check_branch
          %631 = sbr.rel (%p629) target = $region85
        $region84: #{inception_b_forward.5} parent=72 // pred_region
          %v632 = vld [vmem:[#allocation2] sm:$0xff]
          %v633 = vld [vmem:[#allocation2 + $0x8] sm:$0xff]
          %v634 = vld [vmem:[#allocation2 + $0x10] sm:$0xff]
          %v635 = vld [vmem:[#allocation2 + $0x18] sm:$0xff]
          %v636 = vld [vmem:[#allocation2 + $0x20] sm:$0xff]
          %v637 = vld [vmem:[#allocation2 + $0x28] sm:$0xff]
          %v638 = vld [vmem:[#allocation2 + $0x30] sm:$0xff]
          %v639 = vld [vmem:[#allocation2 + $0x38] sm:$0xff]
          %v640 = vld [vmem:[#allocation2 + $0x40] sm:$0xff]
          %v641 = vld [vmem:[#allocation2 + $0x48] sm:$0xff]
          %v642 = vld [vmem:[#allocation2 + $0x50] sm:$0xff]
          %v643 = vld [vmem:[#allocation2 + $0x58] sm:$0xff]
          %v644 = vld [vmem:[#allocation2 + $0x60] sm:$0xff]
          %v645 = vld [vmem:[#allocation2 + $0x68] sm:$0xff]
          %v646 = vld [vmem:[#allocation2 + $0x70] sm:$0xff]
          %v647 = vld [vmem:[#allocation2 + $0x78] sm:$0xff]
          %v648 = vld [vmem:[%s379] sm:$0x1]
          %v650 = vperm.slane %v648, 0
          %v652 = vmul.f32 %v632, %v650
          %v653 = vmul.f32 %v633, %v650
          %v654 = vmul.f32 %v634, %v650
          %v655 = vmul.f32 %v635, %v650
          %v656 = vmul.f32 %v636, %v650
          %v657 = vmul.f32 %v637, %v650
          %v658 = vmul.f32 %v638, %v650
          %v659 = vmul.f32 %v639, %v650
          %v660 = vmul.f32 %v640, %v650
          %v661 = vmul.f32 %v641, %v650
          %v662 = vmul.f32 %v642, %v650
          %v663 = vmul.f32 %v643, %v650
          %v664 = vmul.f32 %v644, %v650
          %v665 = vmul.f32 %v645, %v650
          %v666 = vmul.f32 %v646, %v650
          %v667 = vmul.f32 %v647, %v650
          %v668 = vld [vmem:[%s382] sm:$0x1]
          %v670 = vperm.slane %v668, 0
          %v672 = vadd.f32 %v652, %v670
          %v673 = vadd.f32 %v653, %v670
          %v674 = vadd.f32 %v654, %v670
          %v675 = vadd.f32 %v655, %v670
          %v676 = vadd.f32 %v656, %v670
          %v677 = vadd.f32 %v657, %v670
          %v678 = vadd.f32 %v658, %v670
          %v679 = vadd.f32 %v659, %v670
          %v680 = vadd.f32 %v660, %v670
          %v681 = vadd.f32 %v661, %v670
          %v682 = vadd.f32 %v662, %v670
          %v683 = vadd.f32 %v663, %v670
          %v684 = vadd.f32 %v664, %v670
          %v685 = vadd.f32 %v665, %v670
          %v686 = vadd.f32 %v666, %v670
          %v687 = vadd.f32 %v667, %v670
          %v688 = vmax.f32 %v672, 0.0
          %v689 = vmax.f32 %v673, 0.0
          %v690 = vmax.f32 %v674, 0.0
          %v691 = vmax.f32 %v675, 0.0
          %v692 = vmax.f32 %v676, 0.0
          %v693 = vmax.f32 %v677, 0.0
          %v694 = vmax.f32 %v678, 0.0
          %v695 = vmax.f32 %v679, 0.0
          %v696 = vmax.f32 %v680, 0.0
          %v697 = vmax.f32 %v681, 0.0
          %v698 = vmax.f32 %v682, 0.0
          %v699 = vmax.f32 %v683, 0.0
          %v700 = vmax.f32 %v684, 0.0
          %v701 = vmax.f32 %v685, 0.0
          %v702 = vmax.f32 %v686, 0.0
          %v703 = vmax.f32 %v687, 0.0
          %704 = vst [vmem:[%s366] sm:$0xff] %v688
          %705 = vst [vmem:[%s366 + $0x8] sm:$0xff] %v689
          %706 = vst [vmem:[%s366 + $0x10] sm:$0xff] %v690
          %707 = vst [vmem:[%s366 + $0x18] sm:$0xff] %v691
          %708 = vst [vmem:[%s366 + $0x20] sm:$0xff] %v692
          %709 = vst [vmem:[%s366 + $0x28] sm:$0xff] %v693
          %710 = vst [vmem:[%s366 + $0x30] sm:$0xff] %v694
          %711 = vst [vmem:[%s366 + $0x38] sm:$0xff] %v695
          %712 = vst [vmem:[%s366 + $0x40] sm:$0xff] %v696
          %713 = vst [vmem:[%s366 + $0x48] sm:$0xff] %v697
          %714 = vst [vmem:[%s366 + $0x50] sm:$0xff] %v698
          %715 = vst [vmem:[%s366 + $0x58] sm:$0xff] %v699
          %716 = vst [vmem:[%s366 + $0x60] sm:$0xff] %v700
          %717 = vst [vmem:[%s366 + $0x68] sm:$0xff] %v701
          %718 = vst [vmem:[%s366 + $0x70] sm:$0xff] %v702
          %719 = vst [vmem:[%s366 + $0x78] sm:$0xff] %v703
        $region85: #{inception_b_forward.5} parent=72 // pred_fallthru
          _
        %s720 = sand.u32 %s152, 1
        %s721 = sand.u32 %s152, 1
        %s722 = smul.addr %s721, 128
        %s723 = scalar_lea.vmem [#allocation4], %s722
        // Predicated region
        $region86: #{inception_b_forward.5} parent=72 // pred_check
          %p724 = pneg %p162
        $region87: #{inception_b_forward.5} parent=72 // pred_check_branch
          %726 = sbr.rel (%p724) target = $region89
        $region88: #{inception_b_forward.5} parent=72 // pred_region
          %s727 = smul.u32 16, %s20
          %s728 = smul.addr %s727, 3
          %s729 = sadd.s32 %s21, %s728
          %s730 = smul.addr %s729, 8
          %s731 = scalar_lea.vmem %s4, %s730
          // Predicated region
          $region90: #{inception_b_forward.5} parent=88 // pred_check
            _
          $region91: #{inception_b_forward.5} parent=88 // pred_check_branch
            %733 = sbr.rel (0) target = $region93
          $region92: #{inception_b_forward.5} parent=88 // pred_region
            // Predicated region
            $region94: #{inception_b_forward.5} parent=92 // pred_check
              _
            $region95: #{inception_b_forward.5} parent=92 // pred_check_branch
              %735 = sbr.rel (0) target = $region97
            $region96: #{inception_b_forward.5} parent=92 // pred_region
              // Predicated region
              $region109: #{inception_b_forward.5} parent=96 // pred_check
                _
              $region110: #{inception_b_forward.5} parent=96 // pred_check_branch
                %781 = sbr.rel (0) target = $region112
              $region111: #{inception_b_forward.5} parent=96 // pred_region
                loop: start=0, step=1, limit=1
                $region113: #{inception_b_forward.5} parent=111 // loop_pre_header
                  _
                $region114: #{inception_b_forward.5} parent=111 // loop_header
                  %s783 = sphi 0, %s787
                  %p784 = scmp.ge.s32.totalorder %s783, 1
                  %s788 = sphi %s723, %s723
                  %s789 = sphi %s731, %s731
                $region115: #{inception_b_forward.5} parent=111 // loop_header_branch
                  %786 = sbr.rel (%p784) target = $region119
                $region116: #{inception_b_forward.5} parent=111 // loop_body
                  %v790 = vld [vmem:[%s788] sm:$0xff]
                  %791 = vst [vmem:[%s789] sm:$0xff] %v790
                  %v792 = vld [vmem:[%s788 + $0x8] sm:$0xff]
                  %793 = vst [vmem:[%s789 + $0x18] sm:$0xff] %v792
                  %v794 = vld [vmem:[%s788 + $0x10] sm:$0xff]
                  %795 = vst [vmem:[%s789 + $0x30] sm:$0xff] %v794
                  %v796 = vld [vmem:[%s788 + $0x18] sm:$0xff]
                  %797 = vst [vmem:[%s789 + $0x48] sm:$0xff] %v796
                  %v798 = vld [vmem:[%s788 + $0x20] sm:$0xff]
                  %799 = vst [vmem:[%s789 + $0x60] sm:$0xff] %v798
                  %v800 = vld [vmem:[%s788 + $0x28] sm:$0xff]
                  %801 = vst [vmem:[%s789 + $0x78] sm:$0xff] %v800
                  %v802 = vld [vmem:[%s788 + $0x30] sm:$0xff]
                  %803 = vst [vmem:[%s789 + $0x90] sm:$0xff] %v802
                  %v804 = vld [vmem:[%s788 + $0x38] sm:$0xff]
                  %805 = vst [vmem:[%s789 + $0xa8] sm:$0xff] %v804
                  %v806 = vld [vmem:[%s788 + $0x40] sm:$0xff]
                  %807 = vst [vmem:[%s789 + $0xc0] sm:$0xff] %v806
                  %v808 = vld [vmem:[%s788 + $0x48] sm:$0xff]
                  %809 = vst [vmem:[%s789 + $0xd8] sm:$0xff] %v808
                  %v810 = vld [vmem:[%s788 + $0x50] sm:$0xff]
                  %811 = vst [vmem:[%s789 + $0xf0] sm:$0xff] %v810
                  %v812 = vld [vmem:[%s788 + $0x58] sm:$0xff]
                  %813 = vst [vmem:[%s789 + $0x108] sm:$0xff] %v812
                  %v814 = vld [vmem:[%s788 + $0x60] sm:$0xff]
                  %815 = vst [vmem:[%s789 + $0x120] sm:$0xff] %v814
                  %v816 = vld [vmem:[%s788 + $0x68] sm:$0xff]
                  %817 = vst [vmem:[%s789 + $0x138] sm:$0xff] %v816
                  %v818 = vld [vmem:[%s788 + $0x70] sm:$0xff]
                  %819 = vst [vmem:[%s789 + $0x150] sm:$0xff] %v818
                  %v820 = vld [vmem:[%s788 + $0x78] sm:$0xff]
                  %821 = vst [vmem:[%s789 + $0x168] sm:$0xff] %v820
                $region117: #{inception_b_forward.5} parent=111 // loop_footer
                  %s787 = sadd.s32 1, %s783
                $region118: #{inception_b_forward.5} parent=111 // loop_footer_branch
                  %782 = sbr.rel target = $region114
                $region119: #{inception_b_forward.5} parent=111 // loop_exit
                  _
              $region112: #{inception_b_forward.5} parent=96 // pred_fallthru
                _
              // Predicated region
              $region120: #{inception_b_forward.5} parent=96 // pred_check
                _
              $region121: #{inception_b_forward.5} parent=96 // pred_check_branch
                %823 = sbr.rel target = $region123
              $region122: #{inception_b_forward.5} parent=96 // pred_region
                _
              $region123: #{inception_b_forward.5} parent=96 // pred_fallthru
                _
            $region97: #{inception_b_forward.5} parent=92 // pred_fallthru
              _
            // Predicated region
            $region98: #{inception_b_forward.5} parent=92 // pred_check
              _
            $region99: #{inception_b_forward.5} parent=92 // pred_check_branch
              %737 = sbr.rel target = $region101
            $region100: #{inception_b_forward.5} parent=92 // pred_region
              %s739 = ssub.s32 256, 1
              loop: start=0, step=1, limit=1
              $region102: #{inception_b_forward.5} parent=100 // loop_pre_header
                _
              $region103: #{inception_b_forward.5} parent=100 // loop_header
                %s741 = sphi 0, %s745
                %p742 = scmp.ge.s32.totalorder %s741, 1
                %s746 = sphi %s723, %s723
                %s747 = sphi %s731, %s731
              $region104: #{inception_b_forward.5} parent=100 // loop_header_branch
                %744 = sbr.rel (%p742) target = $region108
              $region105: #{inception_b_forward.5} parent=100 // loop_body
                %v748 = vld [vmem:[%s746] sm:%s739]
                %749 = vst [vmem:[%s747] sm:%s739] %v748
                %v750 = vld [vmem:[%s746 + $0x8] sm:%s739]
                %751 = vst [vmem:[%s747 + $0x18] sm:%s739] %v750
                %v752 = vld [vmem:[%s746 + $0x10] sm:%s739]
                %753 = vst [vmem:[%s747 + $0x30] sm:%s739] %v752
                %v754 = vld [vmem:[%s746 + $0x18] sm:%s739]
                %755 = vst [vmem:[%s747 + $0x48] sm:%s739] %v754
                %v756 = vld [vmem:[%s746 + $0x20] sm:%s739]
                %757 = vst [vmem:[%s747 + $0x60] sm:%s739] %v756
                %v758 = vld [vmem:[%s746 + $0x28] sm:%s739]
                %759 = vst [vmem:[%s747 + $0x78] sm:%s739] %v758
                %v760 = vld [vmem:[%s746 + $0x30] sm:%s739]
                %761 = vst [vmem:[%s747 + $0x90] sm:%s739] %v760
                %v762 = vld [vmem:[%s746 + $0x38] sm:%s739]
                %763 = vst [vmem:[%s747 + $0xa8] sm:%s739] %v762
                %v764 = vld [vmem:[%s746 + $0x40] sm:%s739]
                %765 = vst [vmem:[%s747 + $0xc0] sm:%s739] %v764
                %v766 = vld [vmem:[%s746 + $0x48] sm:%s739]
                %767 = vst [vmem:[%s747 + $0xd8] sm:%s739] %v766
                %v768 = vld [vmem:[%s746 + $0x50] sm:%s739]
                %769 = vst [vmem:[%s747 + $0xf0] sm:%s739] %v768
                %v770 = vld [vmem:[%s746 + $0x58] sm:%s739]
                %771 = vst [vmem:[%s747 + $0x108] sm:%s739] %v770
                %v772 = vld [vmem:[%s746 + $0x60] sm:%s739]
                %773 = vst [vmem:[%s747 + $0x120] sm:%s739] %v772
                %v774 = vld [vmem:[%s746 + $0x68] sm:%s739]
                %775 = vst [vmem:[%s747 + $0x138] sm:%s739] %v774
                %v776 = vld [vmem:[%s746 + $0x70] sm:%s739]
                %777 = vst [vmem:[%s747 + $0x150] sm:%s739] %v776
                %v778 = vld [vmem:[%s746 + $0x78] sm:%s739]
                %779 = vst [vmem:[%s747 + $0x168] sm:%s739] %v778
              $region106: #{inception_b_forward.5} parent=100 // loop_footer
                %s745 = sadd.s32 1, %s741
              $region107: #{inception_b_forward.5} parent=100 // loop_footer_branch
                %740 = sbr.rel target = $region103
              $region108: #{inception_b_forward.5} parent=100 // loop_exit
                _
            $region101: #{inception_b_forward.5} parent=92 // pred_fallthru
              _
          $region93: #{inception_b_forward.5} parent=88 // pred_fallthru
            _
          %824 = vnop
        $region89: #{inception_b_forward.5} parent=72 // pred_fallthru
          _
      $region73: #{inception_b_forward.5} parent=5 // pred_fallthru
        _
      %p825 = scmp.le.s32.totalorder 2, %s10
      // Predicated region
      $region124: #{inception_b_forward.5} parent=5 // pred_check
        %p826 = pneg %p825
      $region125: #{inception_b_forward.5} parent=5 // pred_check_branch
        %828 = sbr.rel (%p826) target = $region127
      $region126: #{inception_b_forward.5} parent=5 // pred_region
        %s829 = ssub.s32 %s10, 2
        // Predicated region
        $region128: #{inception_b_forward.5} parent=126 // pred_check
          %p830 = pneg %p168
        $region129: #{inception_b_forward.5} parent=126 // pred_check_branch
          %832 = sbr.rel (%p830) target = $region131
        $region130: #{inception_b_forward.5} parent=126 // pred_region
          %s833 = sand.u32 %s153, 1
          %s834 = sand.u32 %s153, 1
          %s835 = smul.addr %s834, 128
          %s836 = scalar_lea.vmem [#allocation4], %s835
        $region131: #{inception_b_forward.5} parent=126 // pred_fallthru
          _
      $region127: #{inception_b_forward.5} parent=5 // pred_fallthru
        _
    $region6: #{inception_b_forward.5} parent=1 // loop_footer
      %s14 = sadd.s32 1, %s10
    $region7: #{inception_b_forward.5} parent=1 // loop_footer_branch
      %9 = sbr.rel target = $region3
    $region8: #{inception_b_forward.5} parent=1 // loop_exit
      _

// kernel: inception_b_forward.9
$region0: #{inception_b_forward.9}
  #allocation0 [shape = 'u32[]', space=smem, size = 0x4, offset = 0x4, fixed_abs, tag = 'smem constant byte address 0x4 - core index']
  #allocation1 [shape = 'u32[72,128]{1,0:T(1,128)}', space=vmem, size = 0x9000, scoped, tag = 'internal scratch']
  %s0 = inlined_call_operand.vmem [shape: f32[9,8,128], index: 0, kind: input, shape index: {}]
  %s1 = inlined_call_operand.vmem [shape: f32[8,128], index: 1, kind: output, shape index: {}]
  %s2 = sld [smem:[#allocation0]]
  $region14: #{inception_b_forward.9} parent=0
    _
  %s4 = ssub.s32 1, %s2
  %s5 = scalar_select 0, %s4, %s2
  // Predicated region
  $region2: #{inception_b_forward.9} parent=0 // pred_check
    _
  $region3: #{inception_b_forward.9} parent=0 // pred_check_branch
    %7 = sbr.rel (0) target = $region5
  $region4: #{inception_b_forward.9} parent=0 // pred_region
    _
  $region5: #{inception_b_forward.9} parent=0 // pred_fallthru
    _
  %v8 = vld [vmem:[%s0] sm:$0xff]
  %s9 = scalar_lea.vmem %s0, 8
  %v10 = vld [vmem:[%s9] sm:$0xff]
  %v11 = vmax.f32 %v8, %v10
  %s12 = scalar_lea.vmem %s0, 16
  %v13 = vld [vmem:[%s12] sm:$0xff]
  %v14 = vmax.f32 %v11, %v13
  %s15 = scalar_lea.vmem %s0, 24
  %v16 = vld [vmem:[%s15] sm:$0xff]
  %v17 = vmax.f32 %v14, %v16
  %s18 = scalar_lea.vmem %s0, 32
  %v19 = vld [vmem:[%s18] sm:$0xff]
  %v20 = vmax.f32 %v17, %v19
  %s21 = scalar_lea.vmem %s0, 40
  %v22 = vld [vmem:[%s21] sm:$0xff]
  %v23 = vmax.f32 %v20, %v22
  %s24 = scalar_lea.vmem %s0, 48
  %v25 = vld [vmem:[%s24] sm:$0xff]
  %v26 = vmax.f32 %v23, %v25
  %s27 = scalar_lea.vmem %s0, 56
  %v28 = vld [vmem:[%s27] sm:$0xff]
  %v29 = vmax.f32 %v26, %v28
  %s30 = scalar_lea.vmem %s0, 64
  %v31 = vld [vmem:[%s30] sm:$0xff]
  %v32 = vmax.f32 %v29, %v31
  %33 = vst [vmem:[%s1] sm:$0xff] %v32
  // Predicated region
  $region6: #{inception_b_forward.9} parent=0 // pred_check
    _
  $region7: #{inception_b_forward.9} parent=0 // pred_check_branch
    %35 = sbr.rel (0) target = $region9
  $region8: #{inception_b_forward.9} parent=0 // pred_region
    _
  $region9: #{inception_b_forward.9} parent=0 // pred_fallthru
    _
  // Predicated region
  $region10: #{inception_b_forward.9} parent=0 // pred_check
    _
  $region11: #{inception_b_forward.9} parent=0 // pred_check_branch
    %37 = sbr.rel (0) target = $region13
  $region12: #{inception_b_forward.9} parent=0 // pred_region
    _
  $region13: #{inception_b_forward.9} parent=0 // pred_fallthru
    _

</llo_original>
